<compile_context>
chip_gen: v6e
topology: v6e:2x2x1
jax: 0.10.0
libtpu: 0.0.40
codegen_flags: <defaults>
</compile_context>

<pallas_src>
import functools
import math

import jax
import jax.numpy as jnp
from jax.experimental import pallas as pl
from jax.experimental.pallas import tpu as pltpu

# ---- small synthetic "bert-large-like" config (lane-aligned) ----
VOCAB = 100
TYPE_VOCAB = 2
B = 2            # batch
S = 8            # sequence length
H = 128          # hidden size (stands in for 1024), multiple of 128
N_HEADS = 4
D_HEAD = H // N_HEADS
INTER = 512      # intermediate (FFN) size, multiple of 128
N_LAYERS = 2
EPS = 1e-12
TM = 8           # row tile for dense/LN kernels (B*S = 16 -> 2 parallel tiles)


# -------------------- Pallas kernels --------------------

def _dense_kernel(x_ref, w_ref, b_ref, o_ref, *, activation):
    """o = act(x @ w + b).  x:(TM,K) f32, w:(K,N) bf16, b:(1,N) f32."""
    x = x_ref[...].astype(jnp.bfloat16)
    y = jnp.dot(x, w_ref[...], preferred_element_type=jnp.float32) + b_ref[...]
    if activation == "gelu":
        # TODO(synk): tanh-approx GELU (original BERT); HF default config uses erf GELU.
        y = 0.5 * y * (1.0 + jnp.tanh(0.7978845608028654 * (y + 0.044715 * y * y * y)))
    o_ref[...] = y.astype(o_ref.dtype)


def dense(x, w, b, activation="none"):
    M, K = x.shape
    _, N = w.shape
    cost = pl.CostEstimate(
        flops=2 * M * K * N,
        transcendentals=M * N if activation == "gelu" else 0,
        bytes_accessed=4 * M * K + 2 * K * N + 4 * N + 4 * M * N)
    return pl.pallas_call(
        functools.partial(_dense_kernel, activation=activation),
        out_shape=jax.ShapeDtypeStruct((M, N), jnp.float32),
        grid=(M // TM,),
        in_specs=[pl.BlockSpec((TM, K), lambda i: (i, 0)),
                  pl.BlockSpec((K, N), lambda i: (0, 0)),
                  pl.BlockSpec((1, N), lambda i: (0, 0))],
        out_specs=pl.BlockSpec((TM, N), lambda i: (i, 0)),
        compiler_params=pltpu.CompilerParams(dimension_semantics=("parallel",)),
        cost_estimate=cost,
    )(x, w, b)


def _dense_res_ln_kernel(x_ref, w_ref, b_ref, res_ref, g_ref, beta_ref, o_ref):
    """o = LayerNorm(x @ w + b + residual) * g + beta, all in one pass."""
    y = jnp.dot(x_ref[...].astype(jnp.bfloat16), w_ref[...],
                preferred_element_type=jnp.float32)
    y = y + b_ref[...] + res_ref[...]
    mu = jnp.mean(y, axis=-1, keepdims=True)
    var = jnp.mean(jnp.square(y - mu), axis=-1, keepdims=True)
    yn = (y - mu) * jax.lax.rsqrt(var + EPS)
    o_ref[...] = (yn * g_ref[...] + beta_ref[...]).astype(o_ref.dtype)


def dense_res_ln(x, w, b, res, g, beta):
    M, K = x.shape
    _, N = w.shape
    cost = pl.CostEstimate(
        flops=2 * M * K * N + 8 * M * N,
        transcendentals=M,
        bytes_accessed=4 * M * K + 2 * K * N + 8 * M * N + 12 * N)
    return pl.pallas_call(
        _dense_res_ln_kernel,
        out_shape=jax.ShapeDtypeStruct((M, N), jnp.float32),
        grid=(M // TM,),
        in_specs=[pl.BlockSpec((TM, K), lambda i: (i, 0)),
                  pl.BlockSpec((K, N), lambda i: (0, 0)),
                  pl.BlockSpec((1, N), lambda i: (0, 0)),
                  pl.BlockSpec((TM, N), lambda i: (i, 0)),
                  pl.BlockSpec((1, N), lambda i: (0, 0)),
                  pl.BlockSpec((1, N), lambda i: (0, 0))],
        out_specs=pl.BlockSpec((TM, N), lambda i: (i, 0)),
        input_output_aliases={3: 0},   # residual buffer reused for the output
        compiler_params=pltpu.CompilerParams(dimension_semantics=("parallel",)),
        cost_estimate=cost,
    )(x, w, b, res, g, beta)


def _layernorm_kernel(x_ref, g_ref, b_ref, o_ref):
    """Row-wise LayerNorm (used once, on the embeddings)."""
    x = x_ref[...]
    mu = jnp.mean(x, axis=-1, keepdims=True)
    var = jnp.mean(jnp.square(x - mu), axis=-1, keepdims=True)
    y = (x - mu) * jax.lax.rsqrt(var + EPS)
    o_ref[...] = (y * g_ref[...] + b_ref[...]).astype(o_ref.dtype)


def layernorm(x, g, b):
    M, N = x.shape
    return pl.pallas_call(
        _layernorm_kernel,
        out_shape=jax.ShapeDtypeStruct((M, N), jnp.float32),
        grid=(M // TM,),
        in_specs=[pl.BlockSpec((TM, N), lambda i: (i, 0)),
                  pl.BlockSpec((1, N), lambda i: (0, 0)),
                  pl.BlockSpec((1, N), lambda i: (0, 0))],
        out_specs=pl.BlockSpec((TM, N), lambda i: (i, 0)),
        compiler_params=pltpu.CompilerParams(dimension_semantics=("parallel",)),
    )(x, g, b)


def _attn_kernel(qkv_ref, m_ref, o_ref):
    """All heads of one batch element: softmax(q k^T / sqrt(d) + mask) v.

    qkv_ref: (1, S, 3H) fused projection, m_ref: (1, 1, S), o_ref: (1, S, H).
    Heads live on the lane axis of the fused projection -> no transposes needed.
    """
    qkv = qkv_ref[0]                     # (S, 3H) f32
    m = m_ref[0]                         # (1, S) additive mask
    scale = 1.0 / math.sqrt(D_HEAD)
    ctxs = []
    for h in range(N_HEADS):             # static unroll over heads
        q = qkv[:, h * D_HEAD:(h + 1) * D_HEAD].astype(jnp.bfloat16)
        k = qkv[:, H + h * D_HEAD:H + (h + 1) * D_HEAD].astype(jnp.bfloat16)
        v = qkv[:, 2 * H + h * D_HEAD:2 * H + (h + 1) * D_HEAD].astype(jnp.bfloat16)
        # contract last dims of q and k -> (S, S), avoids an explicit transpose
        s = jax.lax.dot_general(q, k, (((1,), (1,)), ((), ())),
                                preferred_element_type=jnp.float32)
        s = s * scale + m
        s = s - jnp.max(s, axis=-1, keepdims=True)
        p = jnp.exp(s)
        p = p * pl.reciprocal(jnp.sum(p, axis=-1, keepdims=True), approx=True)
        ctxs.append(jnp.dot(p.astype(jnp.bfloat16), v,
                            preferred_element_type=jnp.float32))
    o_ref[0] = jnp.concatenate(ctxs, axis=-1).astype(o_ref.dtype)


def attention(qkv, add_mask):
    """qkv: (B, S, 3H) row-major view of the fused projection."""
    Bq = qkv.shape[0]
    return pl.pallas_call(
        _attn_kernel,
        out_shape=jax.ShapeDtypeStruct((Bq, S, H), jnp.float32),
        grid=(Bq,),
        in_specs=[pl.BlockSpec((1, S, 3 * H), lambda b: (b, 0, 0)),
                  pl.BlockSpec((1, 1, S), lambda b: (b, 0, 0))],
        out_specs=pl.BlockSpec((1, S, H), lambda b: (b, 0, 0)),
        compiler_params=pltpu.CompilerParams(dimension_semantics=("parallel",)),
    )(qkv, add_mask)


def _pool_cls_kernel(cls_ref, wp_ref, bp_ref, wc_ref, bc_ref,
                     pooled_ref, logits_ref):
    """pooled = tanh(cls @ Wp + bp);  logits = pooled @ wc^T + bc (VPU path)."""
    pooled = jnp.tanh(
        jnp.dot(cls_ref[...].astype(jnp.bfloat16), wp_ref[...],
                preferred_element_type=jnp.float32) + bp_ref[...])
    pooled_ref[...] = pooled.astype(pooled_ref.dtype)
    # dropout(p=0) is the identity; H -> 1 classifier as multiply + lane reduce
    logits = jnp.sum(pooled * wc_ref[...], axis=-1, keepdims=True) + bc_ref[...]
    logits_ref[...] = logits.astype(logits_ref.dtype)


def pool_and_classify(cls, wp, bp, wc, bc):
    Bq, Hd = cls.shape
    return pl.pallas_call(
        _pool_cls_kernel,
        out_shape=(jax.ShapeDtypeStruct((Bq, Hd), jnp.float32),
                   jax.ShapeDtypeStruct((Bq, 1), jnp.float32)),
        grid=(1,),
        in_specs=[pl.BlockSpec((Bq, Hd), lambda i: (0, 0)),
                  pl.BlockSpec((Hd, Hd), lambda i: (0, 0)),
                  pl.BlockSpec((1, Hd), lambda i: (0, 0)),
                  pl.BlockSpec((1, Hd), lambda i: (0, 0)),
                  pl.BlockSpec((1, 1), lambda i: (0, 0))],
        out_specs=(pl.BlockSpec((Bq, Hd), lambda i: (0, 0)),
                   pl.BlockSpec((Bq, 1), lambda i: (0, 0))),
        compiler_params=pltpu.CompilerParams(dimension_semantics=("arbitrary",)),
    )(cls, wp, bp, wc, bc)


# -------------------- parameters (deterministic, synthetic) --------------------

def init_params(key):
    def nrm(k, shape, dtype=jnp.bfloat16):
        # weight matrices stored in bf16 (MXU operands); everything else f32
        return (0.02 * jax.random.normal(k, shape, jnp.float32)).astype(dtype)

    ks = jax.random.split(key, 8 + N_LAYERS)
    params = {
        "word_emb": nrm(ks[0], (VOCAB, H), jnp.float32),
        "pos_emb": nrm(ks[1], (S, H), jnp.float32),
        "type_emb": nrm(ks[2], (TYPE_VOCAB, H), jnp.float32),
        "emb_ln_g": jnp.ones((1, H), jnp.float32),
        "emb_ln_b": jnp.zeros((1, H), jnp.float32),
        "wp": nrm(ks[3], (H, H)),                       # pooler
        "bp": jnp.zeros((1, H), jnp.float32),
        "wc": nrm(ks[4], (1, H), jnp.float32),          # classifier (H -> 1) row
        "bc": jnp.zeros((1, 1), jnp.float32),
        "layers": [],
    }
    for i in range(N_LAYERS):
        lk = jax.random.split(ks[8 + i], 4)
        params["layers"].append({
            "wqkv": nrm(lk[0], (H, 3 * H)),             # fused Q|K|V projection
            "bqkv": jnp.zeros((1, 3 * H), jnp.float32),
            "wo": nrm(lk[1], (H, H)),
            "bo": jnp.zeros((1, H), jnp.float32),
            "ln1_g": jnp.ones((1, H), jnp.float32),
            "ln1_b": jnp.zeros((1, H), jnp.float32),
            "wi": nrm(lk[2], (H, INTER)),
            "bi": jnp.zeros((1, INTER), jnp.float32),
            "wf": nrm(lk[3], (INTER, H)),
            "bf": jnp.zeros((1, H), jnp.float32),
            "ln2_g": jnp.ones((1, H), jnp.float32),
            "ln2_b": jnp.zeros((1, H), jnp.float32),
        })
    return params


# -------------------- forward --------------------

def forward(params, input_ids, attention_mask):
    Bq, Sq = input_ids.shape

    # embeddings: gather + broadcast add in plain JAX (tiny), then LN kernel
    we = jnp.take(params["word_emb"], input_ids, axis=0)          # (B, S, H)
    pe = params["pos_emb"][None, :, :]                            # (1, S, H)
    te = params["type_emb"][0][None, None, :]                     # token_type = 0
    x = (we + pe + te).reshape(Bq * Sq, H)
    x = layernorm(x, params["emb_ln_g"], params["emb_ln_b"])

    # additive attention mask: (B, 1, S)
    add_mask = ((1.0 - attention_mask.astype(jnp.float32)) * -1e9).reshape(Bq, 1, Sq)

    for lyr in params["layers"]:
        qkv = dense(x, lyr["wqkv"], lyr["bqkv"])                  # fused Q|K|V
        ctx = attention(qkv.reshape(Bq, Sq, 3 * H), add_mask)     # (B, S, H)
        ctx = ctx.reshape(Bq * Sq, H)
        # attn-out dense + bias + residual + LayerNorm, fused
        x = dense_res_ln(ctx, lyr["wo"], lyr["bo"], x, lyr["ln1_g"], lyr["ln1_b"])
        inter = dense(x, lyr["wi"], lyr["bi"], activation="gelu")
        # FFN-out dense + bias + residual + LayerNorm, fused
        x = dense_res_ln(inter, lyr["wf"], lyr["bf"], x, lyr["ln2_g"], lyr["ln2_b"])

    cls = x.reshape(Bq, Sq, H)[:, 0, :]                           # (B, H) [CLS] rows
    # pooler(tanh) + dropout(p=0, identity) + classifier(H->1), one kernel
    pooled, logits = pool_and_classify(cls, params["wp"], params["bp"],
                                       params["wc"], params["bc"])
    return pooled, logits


if __name__ == "__main__":
    key = jax.random.PRNGKey(0)
    pkey, ikey = jax.random.split(key)
    params = init_params(pkey)

    input_ids = jax.random.randint(ikey, (B, S), 0, VOCAB, dtype=jnp.int32)
    attention_mask = jnp.ones((B, S), dtype=jnp.int32)

    fwd = jax.jit(forward)
    pooled, logits = fwd(params, input_ids, attention_mask)
    jax.block_until_ready((pooled, logits))

    assert pooled.shape == (B, H) and pooled.dtype == jnp.float32
    assert logits.shape == (B, 1) and logits.dtype == jnp.float32
    assert bool(jnp.all(jnp.isfinite(pooled))) and bool(jnp.all(jnp.isfinite(logits)))
    print("KERNEL_OK")
</pallas_src>

<mosaic_0001>
module attributes {stable_mosaic.version = 11 : i64} {
  func.func @_layernorm_kernel(%arg0: i32, %arg1: memref<8x128xf32, #tpu.memory_space<vmem>>, %arg2: memref<1x128xf32, #tpu.memory_space<vmem>>, %arg3: memref<1x128xf32, #tpu.memory_space<vmem>>, %arg4: memref<8x128xf32, #tpu.memory_space<vmem>>) attributes {dimension_semantics = [#tpu.dimension_semantics<parallel>], iteration_bounds = array<i64: 2>, scalar_prefetch = 0 : i64, scratch_operands = 0 : i64, tpu.core_type = #tpu.core_type<tc>, window_params = [{transform_indices = @transform_0, window_bounds = array<i64: 8, 128>}, {pipeline_mode = #tpu.pipeline_mode<synchronous>, transform_indices = @transform_1, window_bounds = array<i64: 1, 128>}, {pipeline_mode = #tpu.pipeline_mode<synchronous>, transform_indices = @transform_2, window_bounds = array<i64: 1, 128>}, {transform_indices = @transform_3, window_bounds = array<i64: 8, 128>}]} {
    %c0 = arith.constant 0 : index
    %c0_0 = arith.constant 0 : index
    %0 = vector.load %arg1[%c0, %c0_0] : memref<8x128xf32, #tpu.memory_space<vmem>>, vector<8x128xf32>
    %cst = arith.constant dense<0.000000e+00> : vector<8xf32>
    %1 = vector.multi_reduction <add>, %0, %cst [1] : vector<8x128xf32> to vector<8xf32>
    %2 = vector.shape_cast %1 : vector<8xf32> to vector<8x1xf32>
    %cst_1 = arith.constant 1.280000e+02 : f32
    %3 = vector.broadcast %cst_1 : f32 to vector<8x1xf32>
    %4 = arith.divf %2, %3 : vector<8x1xf32>
    %5 = vector.broadcast %4 : vector<8x1xf32> to vector<8x128xf32>
    %6 = arith.subf %0, %5 : vector<8x128xf32>
    %7 = arith.mulf %6, %6 : vector<8x128xf32>
    %cst_2 = arith.constant dense<0.000000e+00> : vector<8xf32>
    %8 = vector.multi_reduction <add>, %7, %cst_2 [1] : vector<8x128xf32> to vector<8xf32>
    %9 = vector.shape_cast %8 : vector<8xf32> to vector<8x1xf32>
    %cst_3 = arith.constant 1.280000e+02 : f32
    %10 = vector.broadcast %cst_3 : f32 to vector<8x1xf32>
    %11 = arith.divf %9, %10 : vector<8x1xf32>
    %12 = vector.broadcast %4 : vector<8x1xf32> to vector<8x128xf32>
    %13 = arith.subf %0, %12 : vector<8x128xf32>
    %cst_4 = arith.constant 9.99999996E-13 : f32
    %14 = vector.broadcast %cst_4 : f32 to vector<8x1xf32>
    %15 = arith.addf %11, %14 : vector<8x1xf32>
    %16 = math.rsqrt %15 : vector<8x1xf32>
    %17 = vector.broadcast %16 : vector<8x1xf32> to vector<8x128xf32>
    %18 = arith.mulf %13, %17 : vector<8x128xf32>
    %c0_5 = arith.constant 0 : index
    %c0_6 = arith.constant 0 : index
    %19 = vector.load %arg2[%c0_5, %c0_6] : memref<1x128xf32, #tpu.memory_space<vmem>>, vector<1x128xf32>
    %20 = vector.broadcast %19 : vector<1x128xf32> to vector<8x128xf32>
    %21 = arith.mulf %18, %20 : vector<8x128xf32>
    %c0_7 = arith.constant 0 : index
    %c0_8 = arith.constant 0 : index
    %22 = vector.load %arg3[%c0_7, %c0_8] : memref<1x128xf32, #tpu.memory_space<vmem>>, vector<1x128xf32>
    %23 = vector.broadcast %22 : vector<1x128xf32> to vector<8x128xf32>
    %24 = arith.addf %21, %23 : vector<8x128xf32>
    %c0_9 = arith.constant 0 : index
    %c0_10 = arith.constant 0 : index
    %25 = vector.load %arg4[%c0_9, %c0_10] : memref<8x128xf32, #tpu.memory_space<vmem>>, vector<8x128xf32>
    tpu.vector_store %arg4[%c0_9, %c0_10], %24 {strides = array<i32>} : memref<8x128xf32, #tpu.memory_space<vmem>>, vector<8x128xf32>,
    return
  }
  func.func @transform_0(%arg0: i32) -> (i32, i32) {
    %c0_i32 = arith.constant 0 : i32
    %c0_i32_0 = arith.constant 0 : i32
    return %arg0, %c0_i32 : i32, i32
  }
  func.func @transform_1(%arg0: i32) -> (i32, i32) {
    %c0_i32 = arith.constant 0 : i32
    %c0_i32_0 = arith.constant 0 : i32
    %c0_i32_1 = arith.constant 0 : i32
    return %c0_i32, %c0_i32_0 : i32, i32
  }
  func.func @transform_2(%arg0: i32) -> (i32, i32) {
    %c0_i32 = arith.constant 0 : i32
    %c0_i32_0 = arith.constant 0 : i32
    %c0_i32_1 = arith.constant 0 : i32
    return %c0_i32, %c0_i32_0 : i32, i32
  }
  func.func @transform_3(%arg0: i32) -> (i32, i32) {
    %c0_i32 = arith.constant 0 : i32
    %c0_i32_0 = arith.constant 0 : i32
    return %arg0, %c0_i32 : i32, i32
  }
}

module attributes {stable_mosaic.version = 11 : i64} {
  func.func @_dense_kernel(%arg0: i32, %arg1: memref<8x128xf32, #tpu.memory_space<vmem>>, %arg2: memref<128x384xbf16, #tpu.memory_space<vmem>>, %arg3: memref<1x384xf32, #tpu.memory_space<vmem>>, %arg4: memref<8x384xf32, #tpu.memory_space<vmem>>) attributes {dimension_semantics = [#tpu.dimension_semantics<parallel>], iteration_bounds = array<i64: 2>, scalar_prefetch = 0 : i64, scratch_operands = 0 : i64, tpu.core_type = #tpu.core_type<tc>, window_params = [{transform_indices = @transform_0, window_bounds = array<i64: 8, 128>}, {pipeline_mode = #tpu.pipeline_mode<synchronous>, transform_indices = @transform_1, window_bounds = array<i64: 128, 384>}, {pipeline_mode = #tpu.pipeline_mode<synchronous>, transform_indices = @transform_2, window_bounds = array<i64: 1, 384>}, {transform_indices = @transform_3, window_bounds = array<i64: 8, 384>}]} {
    %c0 = arith.constant 0 : index
    %c0_0 = arith.constant 0 : index
    %0 = vector.load %arg1[%c0, %c0_0] : memref<8x128xf32, #tpu.memory_space<vmem>>, vector<8x128xf32>
    %1 = arith.truncf %0 : vector<8x128xf32> to vector<8x128xbf16>
    %c0_1 = arith.constant 0 : index
    %c0_2 = arith.constant 0 : index
    %2 = vector.load %arg2[%c0_1, %c0_2] : memref<128x384xbf16, #tpu.memory_space<vmem>>, vector<128x384xbf16>
    %cst = arith.constant dense<0.000000e+00> : vector<8x384xf32>
    %3 = tpu.matmul %1, %2, %cst {dimension_numbers = #tpu.dot_dimension_numbers<[1], [0], [0], [1], [0, 0, 1, 1], [], []>} : vector<8x128xbf16>, vector<128x384xbf16>, vector<8x384xf32> -> vector<8x384xf32>
    %c0_3 = arith.constant 0 : index
    %c0_4 = arith.constant 0 : index
    %4 = vector.load %arg3[%c0_3, %c0_4] : memref<1x384xf32, #tpu.memory_space<vmem>>, vector<1x384xf32>
    %5 = vector.broadcast %4 : vector<1x384xf32> to vector<8x384xf32>
    %6 = arith.addf %3, %5 : vector<8x384xf32>
    %c0_5 = arith.constant 0 : index
    %c0_6 = arith.constant 0 : index
    %7 = vector.load %arg4[%c0_5, %c0_6] : memref<8x384xf32, #tpu.memory_space<vmem>>, vector<8x384xf32>
    tpu.vector_store %arg4[%c0_5, %c0_6], %6 {strides = array<i32>} : memref<8x384xf32, #tpu.memory_space<vmem>>, vector<8x384xf32>,
    return
  }
  func.func @transform_0(%arg0: i32) -> (i32, i32) {
    %c0_i32 = arith.constant 0 : i32
    %c0_i32_0 = arith.constant 0 : i32
    return %arg0, %c0_i32 : i32, i32
  }
  func.func @transform_1(%arg0: i32) -> (i32, i32) {
    %c0_i32 = arith.constant 0 : i32
    %c0_i32_0 = arith.constant 0 : i32
    %c0_i32_1 = arith.constant 0 : i32
    return %c0_i32, %c0_i32_0 : i32, i32
  }
  func.func @transform_2(%arg0: i32) -> (i32, i32) {
    %c0_i32 = arith.constant 0 : i32
    %c0_i32_0 = arith.constant 0 : i32
    %c0_i32_1 = arith.constant 0 : i32
    return %c0_i32, %c0_i32_0 : i32, i32
  }
  func.func @transform_3(%arg0: i32) -> (i32, i32) {
    %c0_i32 = arith.constant 0 : i32
    %c0_i32_0 = arith.constant 0 : i32
    return %arg0, %c0_i32 : i32, i32
  }
}

module attributes {stable_mosaic.version = 11 : i64} {
  func.func @_attn_kernel(%arg0: i32, %arg1: memref<1x8x384xf32, #tpu.memory_space<vmem>>, %arg2: memref<1x1x8xf32, #tpu.memory_space<vmem>>, %arg3: memref<1x8x128xf32, #tpu.memory_space<vmem>>) attributes {dimension_semantics = [#tpu.dimension_semantics<parallel>], iteration_bounds = array<i64: 2>, scalar_prefetch = 0 : i64, scratch_operands = 0 : i64, tpu.core_type = #tpu.core_type<tc>, window_params = [{transform_indices = @transform_0, window_bounds = array<i64: 1, 8, 384>}, {transform_indices = @transform_1, window_bounds = array<i64: 1, 1, 8>}, {transform_indices = @transform_2, window_bounds = array<i64: 1, 8, 128>}]} {
    %c0 = arith.constant 0 : index
    %c0_0 = arith.constant 0 : index
    %c0_1 = arith.constant 0 : index
    %0 = vector.load %arg1[%c0, %c0_0, %c0_1] : memref<1x8x384xf32, #tpu.memory_space<vmem>>, vector<1x8x384xf32>
    %1 = vector.shape_cast %0 : vector<1x8x384xf32> to vector<8x384xf32>
    %c0_2 = arith.constant 0 : index
    %c0_3 = arith.constant 0 : index
    %c0_4 = arith.constant 0 : index
    %2 = vector.load %arg2[%c0_2, %c0_3, %c0_4] : memref<1x1x8xf32, #tpu.memory_space<vmem>>, vector<1x1x8xf32>
    %3 = vector.shape_cast %2 : vector<1x1x8xf32> to vector<1x8xf32>
    %4 = vector.extract_strided_slice %1 {offsets = [0, 0], sizes = [8, 32], strides = [1, 1]} : vector<8x384xf32> to vector<8x32xf32>
    %5 = arith.truncf %4 : vector<8x32xf32> to vector<8x32xbf16>
    %6 = vector.extract_strided_slice %1 {offsets = [0, 128], sizes = [8, 32], strides = [1, 1]} : vector<8x384xf32> to vector<8x32xf32>
    %7 = arith.truncf %6 : vector<8x32xf32> to vector<8x32xbf16>
    %8 = vector.extract_strided_slice %1 {offsets = [0, 256], sizes = [8, 32], strides = [1, 1]} : vector<8x384xf32> to vector<8x32xf32>
    %9 = arith.truncf %8 : vector<8x32xf32> to vector<8x32xbf16>
    %cst = arith.constant dense<0.000000e+00> : vector<8x8xf32>
    %10 = tpu.matmul %5, %7, %cst {dimension_numbers = #tpu.dot_dimension_numbers<[1], [1], [0], [0], [0, 0, 1, 0], [], []>} : vector<8x32xbf16>, vector<8x32xbf16>, vector<8x8xf32> -> vector<8x8xf32>
    %cst_5 = arith.constant 0.176776692 : f32
    %11 = vector.broadcast %cst_5 : f32 to vector<8x8xf32>
    %12 = arith.mulf %10, %11 : vector<8x8xf32>
    %13 = vector.broadcast %3 : vector<1x8xf32> to vector<8x8xf32>
    %14 = arith.addf %12, %13 : vector<8x8xf32>
    %cst_6 = arith.constant dense<0xFF800000> : vector<8xf32>
    %15 = vector.multi_reduction <maximumf>, %14, %cst_6 [1] : vector<8x8xf32> to vector<8xf32>
    %16 = vector.shape_cast %15 : vector<8xf32> to vector<8x1xf32>
    %17 = vector.broadcast %16 : vector<8x1xf32> to vector<8x8xf32>
    %18 = arith.subf %14, %17 : vector<8x8xf32>
    %19 = math.exp %18 : vector<8x8xf32>
    %cst_7 = arith.constant dense<0.000000e+00> : vector<8xf32>
    %20 = vector.multi_reduction <add>, %19, %cst_7 [1] : vector<8x8xf32> to vector<8xf32>
    %21 = vector.shape_cast %20 : vector<8xf32> to vector<8x1xf32>
    %22 = tpu.reciprocal %21 {approx = true} : vector<8x1xf32> -> vector<8x1xf32>
    %23 = vector.broadcast %22 : vector<8x1xf32> to vector<8x8xf32>
    %24 = arith.mulf %19, %23 : vector<8x8xf32>
    %25 = arith.truncf %24 : vector<8x8xf32> to vector<8x8xbf16>
    %cst_8 = arith.constant dense<0.000000e+00> : vector<8x32xf32>
    %26 = tpu.matmul %25, %9, %cst_8 {dimension_numbers = #tpu.dot_dimension_numbers<[1], [0], [0], [1], [0, 0, 1, 1], [], []>} : vector<8x8xbf16>, vector<8x32xbf16>, vector<8x32xf32> -> vector<8x32xf32>
    %27 = vector.extract_strided_slice %1 {offsets = [0, 32], sizes = [8, 32], strides = [1, 1]} : vector<8x384xf32> to vector<8x32xf32>
    %28 = arith.truncf %27 : vector<8x32xf32> to vector<8x32xbf16>
    %29 = vector.extract_strided_slice %1 {offsets = [0, 160], sizes = [8, 32], strides = [1, 1]} : vector<8x384xf32> to vector<8x32xf32>
    %30 = arith.truncf %29 : vector<8x32xf32> to vector<8x32xbf16>
    %31 = vector.extract_strided_slice %1 {offsets = [0, 288], sizes = [8, 32], strides = [1, 1]} : vector<8x384xf32> to vector<8x32xf32>
    %32 = arith.truncf %31 : vector<8x32xf32> to vector<8x32xbf16>
    %cst_9 = arith.constant dense<0.000000e+00> : vector<8x8xf32>
    %33 = tpu.matmul %28, %30, %cst_9 {dimension_numbers = #tpu.dot_dimension_numbers<[1], [1], [0], [0], [0, 0, 1, 0], [], []>} : vector<8x32xbf16>, vector<8x32xbf16>, vector<8x8xf32> -> vector<8x8xf32>
    %cst_10 = arith.constant 0.176776692 : f32
    %34 = vector.broadcast %cst_10 : f32 to vector<8x8xf32>
    %35 = arith.mulf %33, %34 : vector<8x8xf32>
    %36 = vector.broadcast %3 : vector<1x8xf32> to vector<8x8xf32>
    %37 = arith.addf %35, %36 : vector<8x8xf32>
    %cst_11 = arith.constant dense<0xFF800000> : vector<8xf32>
    %38 = vector.multi_reduction <maximumf>, %37, %cst_11 [1] : vector<8x8xf32> to vector<8xf32>
    %39 = vector.shape_cast %38 : vector<8xf32> to vector<8x1xf32>
    %40 = vector.broadcast %39 : vector<8x1xf32> to vector<8x8xf32>
    %41 = arith.subf %37, %40 : vector<8x8xf32>
    %42 = math.exp %41 : vector<8x8xf32>
    %cst_12 = arith.constant dense<0.000000e+00> : vector<8xf32>
    %43 = vector.multi_reduction <add>, %42, %cst_12 [1] : vector<8x8xf32> to vector<8xf32>
    %44 = vector.shape_cast %43 : vector<8xf32> to vector<8x1xf32>
    %45 = tpu.reciprocal %44 {approx = true} : vector<8x1xf32> -> vector<8x1xf32>
    %46 = vector.broadcast %45 : vector<8x1xf32> to vector<8x8xf32>
    %47 = arith.mulf %42, %46 : vector<8x8xf32>
    %48 = arith.truncf %47 : vector<8x8xf32> to vector<8x8xbf16>
    %cst_13 = arith.constant dense<0.000000e+00> : vector<8x32xf32>
    %49 = tpu.matmul %48, %32, %cst_13 {dimension_numbers = #tpu.dot_dimension_numbers<[1], [0], [0], [1], [0, 0, 1, 1], [], []>} : vector<8x8xbf16>, vector<8x32xbf16>, vector<8x32xf32> -> vector<8x32xf32>
    %50 = vector.extract_strided_slice %1 {offsets = [0, 64], sizes = [8, 32], strides = [1, 1]} : vector<8x384xf32> to vector<8x32xf32>
    %51 = arith.truncf %50 : vector<8x32xf32> to vector<8x32xbf16>
    %52 = vector.extract_strided_slice %1 {offsets = [0, 192], sizes = [8, 32], strides = [1, 1]} : vector<8x384xf32> to vector<8x32xf32>
    %53 = arith.truncf %52 : vector<8x32xf32> to vector<8x32xbf16>
    %54 = vector.extract_strided_slice %1 {offsets = [0, 320], sizes = [8, 32], strides = [1, 1]} : vector<8x384xf32> to vector<8x32xf32>
    %55 = arith.truncf %54 : vector<8x32xf32> to vector<8x32xbf16>
    %cst_14 = arith.constant dense<0.000000e+00> : vector<8x8xf32>
    %56 = tpu.matmul %51, %53, %cst_14 {dimension_numbers = #tpu.dot_dimension_numbers<[1], [1], [0], [0], [0, 0, 1, 0], [], []>} : vector<8x32xbf16>, vector<8x32xbf16>, vector<8x8xf32> -> vector<8x8xf32>
    %cst_15 = arith.constant 0.176776692 : f32
    %57 = vector.broadcast %cst_15 : f32 to vector<8x8xf32>
    %58 = arith.mulf %56, %57 : vector<8x8xf32>
    %59 = vector.broadcast %3 : vector<1x8xf32> to vector<8x8xf32>
    %60 = arith.addf %58, %59 : vector<8x8xf32>
    %cst_16 = arith.constant dense<0xFF800000> : vector<8xf32>
    %61 = vector.multi_reduction <maximumf>, %60, %cst_16 [1] : vector<8x8xf32> to vector<8xf32>
    %62 = vector.shape_cast %61 : vector<8xf32> to vector<8x1xf32>
    %63 = vector.broadcast %62 : vector<8x1xf32> to vector<8x8xf32>
    %64 = arith.subf %60, %63 : vector<8x8xf32>
    %65 = math.exp %64 : vector<8x8xf32>
    %cst_17 = arith.constant dense<0.000000e+00> : vector<8xf32>
    %66 = vector.multi_reduction <add>, %65, %cst_17 [1] : vector<8x8xf32> to vector<8xf32>
    %67 = vector.shape_cast %66 : vector<8xf32> to vector<8x1xf32>
    %68 = tpu.reciprocal %67 {approx = true} : vector<8x1xf32> -> vector<8x1xf32>
    %69 = vector.broadcast %68 : vector<8x1xf32> to vector<8x8xf32>
    %70 = arith.mulf %65, %69 : vector<8x8xf32>
    %71 = arith.truncf %70 : vector<8x8xf32> to vector<8x8xbf16>
    %cst_18 = arith.constant dense<0.000000e+00> : vector<8x32xf32>
    %72 = tpu.matmul %71, %55, %cst_18 {dimension_numbers = #tpu.dot_dimension_numbers<[1], [0], [0], [1], [0, 0, 1, 1], [], []>} : vector<8x8xbf16>, vector<8x32xbf16>, vector<8x32xf32> -> vector<8x32xf32>
    %73 = vector.extract_strided_slice %1 {offsets = [0, 96], sizes = [8, 32], strides = [1, 1]} : vector<8x384xf32> to vector<8x32xf32>
    %74 = arith.truncf %73 : vector<8x32xf32> to vector<8x32xbf16>
    %75 = vector.extract_strided_slice %1 {offsets = [0, 224], sizes = [8, 32], strides = [1, 1]} : vector<8x384xf32> to vector<8x32xf32>
    %76 = arith.truncf %75 : vector<8x32xf32> to vector<8x32xbf16>
    %77 = vector.extract_strided_slice %1 {offsets = [0, 352], sizes = [8, 32], strides = [1, 1]} : vector<8x384xf32> to vector<8x32xf32>
    %78 = arith.truncf %77 : vector<8x32xf32> to vector<8x32xbf16>
    %cst_19 = arith.constant dense<0.000000e+00> : vector<8x8xf32>
    %79 = tpu.matmul %74, %76, %cst_19 {dimension_numbers = #tpu.dot_dimension_numbers<[1], [1], [0], [0], [0, 0, 1, 0], [], []>} : vector<8x32xbf16>, vector<8x32xbf16>, vector<8x8xf32> -> vector<8x8xf32>
    %cst_20 = arith.constant 0.176776692 : f32
    %80 = vector.broadcast %cst_20 : f32 to vector<8x8xf32>
    %81 = arith.mulf %79, %80 : vector<8x8xf32>
    %82 = vector.broadcast %3 : vector<1x8xf32> to vector<8x8xf32>
    %83 = arith.addf %81, %82 : vector<8x8xf32>
    %cst_21 = arith.constant dense<0xFF800000> : vector<8xf32>
    %84 = vector.multi_reduction <maximumf>, %83, %cst_21 [1] : vector<8x8xf32> to vector<8xf32>
    %85 = vector.shape_cast %84 : vector<8xf32> to vector<8x1xf32>
    %86 = vector.broadcast %85 : vector<8x1xf32> to vector<8x8xf32>
    %87 = arith.subf %83, %86 : vector<8x8xf32>
    %88 = math.exp %87 : vector<8x8xf32>
    %cst_22 = arith.constant dense<0.000000e+00> : vector<8xf32>
    %89 = vector.multi_reduction <add>, %88, %cst_22 [1] : vector<8x8xf32> to vector<8xf32>
    %90 = vector.shape_cast %89 : vector<8xf32> to vector<8x1xf32>
    %91 = tpu.reciprocal %90 {approx = true} : vector<8x1xf32> -> vector<8x1xf32>
    %92 = vector.broadcast %91 : vector<8x1xf32> to vector<8x8xf32>
    %93 = arith.mulf %88, %92 : vector<8x8xf32>
    %94 = arith.truncf %93 : vector<8x8xf32> to vector<8x8xbf16>
    %cst_23 = arith.constant dense<0.000000e+00> : vector<8x32xf32>
    %95 = tpu.matmul %94, %78, %cst_23 {dimension_numbers = #tpu.dot_dimension_numbers<[1], [0], [0], [1], [0, 0, 1, 1], [], []>} : vector<8x8xbf16>, vector<8x32xbf16>, vector<8x32xf32> -> vector<8x32xf32>
    %96 = tpu.concatenate %26, %49, %72, %95 in 1 : vector<8x32xf32>, vector<8x32xf32>, vector<8x32xf32>, vector<8x32xf32> -> vector<8x128xf32>
    %c0_24 = arith.constant 0 : index
    %c0_25 = arith.constant 0 : index
    %c0_26 = arith.constant 0 : index
    %97 = vector.load %arg3[%c0_24, %c0_25, %c0_26] : memref<1x8x128xf32, #tpu.memory_space<vmem>>, vector<1x8x128xf32>
    %98 = vector.shape_cast %97 : vector<1x8x128xf32> to vector<8x128xf32>
    %99 = vector.shape_cast %96 : vector<8x128xf32> to vector<1x8x128xf32>
    tpu.vector_store %arg3[%c0_24, %c0_25, %c0_26], %99 {strides = array<i32>} : memref<1x8x128xf32, #tpu.memory_space<vmem>>, vector<1x8x128xf32>,
    return
  }
  func.func @transform_0(%arg0: i32) -> (i32, i32, i32) {
    %c0_i32 = arith.constant 0 : i32
    %c0_i32_0 = arith.constant 0 : i32
    %c0_i32_1 = arith.constant 0 : i32
    return %arg0, %c0_i32, %c0_i32_0 : i32, i32, i32
  }
  func.func @transform_1(%arg0: i32) -> (i32, i32, i32) {
    %c0_i32 = arith.constant 0 : i32
    %c0_i32_0 = arith.constant 0 : i32
    %c0_i32_1 = arith.constant 0 : i32
    return %arg0, %c0_i32, %c0_i32_0 : i32, i32, i32
  }
  func.func @transform_2(%arg0: i32) -> (i32, i32, i32) {
    %c0_i32 = arith.constant 0 : i32
    %c0_i32_0 = arith.constant 0 : i32
    %c0_i32_1 = arith.constant 0 : i32
    return %arg0, %c0_i32, %c0_i32_0 : i32, i32, i32
  }
}

module attributes {stable_mosaic.version = 11 : i64} {
  func.func @_dense_res_ln_kernel(%arg0: i32, %arg1: memref<8x128xf32, #tpu.memory_space<vmem>>, %arg2: memref<128x128xbf16, #tpu.memory_space<vmem>>, %arg3: memref<1x128xf32, #tpu.memory_space<vmem>>, %arg4: memref<8x128xf32, #tpu.memory_space<vmem>>, %arg5: memref<1x128xf32, #tpu.memory_space<vmem>>, %arg6: memref<1x128xf32, #tpu.memory_space<vmem>>, %arg7: memref<8x128xf32, #tpu.memory_space<vmem>>) attributes {dimension_semantics = [#tpu.dimension_semantics<parallel>], iteration_bounds = array<i64: 2>, scalar_prefetch = 0 : i64, scratch_operands = 0 : i64, tpu.core_type = #tpu.core_type<tc>, window_params = [{transform_indices = @transform_0, window_bounds = array<i64: 8, 128>}, {pipeline_mode = #tpu.pipeline_mode<synchronous>, transform_indices = @transform_1, window_bounds = array<i64: 128, 128>}, {pipeline_mode = #tpu.pipeline_mode<synchronous>, transform_indices = @transform_2, window_bounds = array<i64: 1, 128>}, {transform_indices = @transform_3, window_bounds = array<i64: 8, 128>}, {pipeline_mode = #tpu.pipeline_mode<synchronous>, transform_indices = @transform_4, window_bounds = array<i64: 1, 128>}, {pipeline_mode = #tpu.pipeline_mode<synchronous>, transform_indices = @transform_5, window_bounds = array<i64: 1, 128>}, {transform_indices = @transform_6, window_bounds = array<i64: 8, 128>}]} {
    %c0 = arith.constant 0 : index
    %c0_0 = arith.constant 0 : index
    %0 = vector.load %arg1[%c0, %c0_0] : memref<8x128xf32, #tpu.memory_space<vmem>>, vector<8x128xf32>
    %1 = arith.truncf %0 : vector<8x128xf32> to vector<8x128xbf16>
    %c0_1 = arith.constant 0 : index
    %c0_2 = arith.constant 0 : index
    %2 = vector.load %arg2[%c0_1, %c0_2] : memref<128x128xbf16, #tpu.memory_space<vmem>>, vector<128x128xbf16>
    %cst = arith.constant dense<0.000000e+00> : vector<8x128xf32>
    %3 = tpu.matmul %1, %2, %cst {dimension_numbers = #tpu.dot_dimension_numbers<[1], [0], [0], [1], [0, 0, 1, 1], [], []>} : vector<8x128xbf16>, vector<128x128xbf16>, vector<8x128xf32> -> vector<8x128xf32>
    %c0_3 = arith.constant 0 : index
    %c0_4 = arith.constant 0 : index
    %4 = vector.load %arg3[%c0_3, %c0_4] : memref<1x128xf32, #tpu.memory_space<vmem>>, vector<1x128xf32>
    %5 = vector.broadcast %4 : vector<1x128xf32> to vector<8x128xf32>
    %6 = arith.addf %3, %5 : vector<8x128xf32>
    %c0_5 = arith.constant 0 : index
    %c0_6 = arith.constant 0 : index
    %7 = vector.load %arg4[%c0_5, %c0_6] : memref<8x128xf32, #tpu.memory_space<vmem>>, vector<8x128xf32>
    %8 = arith.addf %6, %7 : vector<8x128xf32>
    %cst_7 = arith.constant dense<0.000000e+00> : vector<8xf32>
    %9 = vector.multi_reduction <add>, %8, %cst_7 [1] : vector<8x128xf32> to vector<8xf32>
    %10 = vector.shape_cast %9 : vector<8xf32> to vector<8x1xf32>
    %cst_8 = arith.constant 1.280000e+02 : f32
    %11 = vector.broadcast %cst_8 : f32 to vector<8x1xf32>
    %12 = arith.divf %10, %11 : vector<8x1xf32>
    %13 = vector.broadcast %12 : vector<8x1xf32> to vector<8x128xf32>
    %14 = arith.subf %8, %13 : vector<8x128xf32>
    %15 = arith.mulf %14, %14 : vector<8x128xf32>
    %cst_9 = arith.constant dense<0.000000e+00> : vector<8xf32>
    %16 = vector.multi_reduction <add>, %15, %cst_9 [1] : vector<8x128xf32> to vector<8xf32>
    %17 = vector.shape_cast %16 : vector<8xf32> to vector<8x1xf32>
    %cst_10 = arith.constant 1.280000e+02 : f32
    %18 = vector.broadcast %cst_10 : f32 to vector<8x1xf32>
    %19 = arith.divf %17, %18 : vector<8x1xf32>
    %20 = vector.broadcast %12 : vector<8x1xf32> to vector<8x128xf32>
    %21 = arith.subf %8, %20 : vector<8x128xf32>
    %cst_11 = arith.constant 9.99999996E-13 : f32
    %22 = vector.broadcast %cst_11 : f32 to vector<8x1xf32>
    %23 = arith.addf %19, %22 : vector<8x1xf32>
    %24 = math.rsqrt %23 : vector<8x1xf32>
    %25 = vector.broadcast %24 : vector<8x1xf32> to vector<8x128xf32>
    %26 = arith.mulf %21, %25 : vector<8x128xf32>
    %c0_12 = arith.constant 0 : index
    %c0_13 = arith.constant 0 : index
    %27 = vector.load %arg5[%c0_12, %c0_13] : memref<1x128xf32, #tpu.memory_space<vmem>>, vector<1x128xf32>
    %28 = vector.broadcast %27 : vector<1x128xf32> to vector<8x128xf32>
    %29 = arith.mulf %26, %28 : vector<8x128xf32>
    %c0_14 = arith.constant 0 : index
    %c0_15 = arith.constant 0 : index
    %30 = vector.load %arg6[%c0_14, %c0_15] : memref<1x128xf32, #tpu.memory_space<vmem>>, vector<1x128xf32>
    %31 = vector.broadcast %30 : vector<1x128xf32> to vector<8x128xf32>
    %32 = arith.addf %29, %31 : vector<8x128xf32>
    %c0_16 = arith.constant 0 : index
    %c0_17 = arith.constant 0 : index
    %33 = vector.load %arg7[%c0_16, %c0_17] : memref<8x128xf32, #tpu.memory_space<vmem>>, vector<8x128xf32>
    tpu.vector_store %arg7[%c0_16, %c0_17], %32 {strides = array<i32>} : memref<8x128xf32, #tpu.memory_space<vmem>>, vector<8x128xf32>,
    return
  }
  func.func @transform_0(%arg0: i32) -> (i32, i32) {
    %c0_i32 = arith.constant 0 : i32
    %c0_i32_0 = arith.constant 0 : i32
    return %arg0, %c0_i32 : i32, i32
  }
  func.func @transform_1(%arg0: i32) -> (i32, i32) {
    %c0_i32 = arith.constant 0 : i32
    %c0_i32_0 = arith.constant 0 : i32
    %c0_i32_1 = arith.constant 0 : i32
    return %c0_i32, %c0_i32_0 : i32, i32
  }
  func.func @transform_2(%arg0: i32) -> (i32, i32) {
    %c0_i32 = arith.constant 0 : i32
    %c0_i32_0 = arith.constant 0 : i32
    %c0_i32_1 = arith.constant 0 : i32
    return %c0_i32, %c0_i32_0 : i32, i32
  }
  func.func @transform_3(%arg0: i32) -> (i32, i32) {
    %c0_i32 = arith.constant 0 : i32
    %c0_i32_0 = arith.constant 0 : i32
    return %arg0, %c0_i32 : i32, i32
  }
  func.func @transform_4(%arg0: i32) -> (i32, i32) {
    %c0_i32 = arith.constant 0 : i32
    %c0_i32_0 = arith.constant 0 : i32
    %c0_i32_1 = arith.constant 0 : i32
    return %c0_i32, %c0_i32_0 : i32, i32
  }
  func.func @transform_5(%arg0: i32) -> (i32, i32) {
    %c0_i32 = arith.constant 0 : i32
    %c0_i32_0 = arith.constant 0 : i32
    %c0_i32_1 = arith.constant 0 : i32
    return %c0_i32, %c0_i32_0 : i32, i32
  }
  func.func @transform_6(%arg0: i32) -> (i32, i32) {
    %c0_i32 = arith.constant 0 : i32
    %c0_i32_0 = arith.constant 0 : i32
    return %arg0, %c0_i32 : i32, i32
  }
}

module attributes {stable_mosaic.version = 11 : i64} {
  func.func @_dense_kernel(%arg0: i32, %arg1: memref<8x128xf32, #tpu.memory_space<vmem>>, %arg2: memref<128x512xbf16, #tpu.memory_space<vmem>>, %arg3: memref<1x512xf32, #tpu.memory_space<vmem>>, %arg4: memref<8x512xf32, #tpu.memory_space<vmem>>) attributes {dimension_semantics = [#tpu.dimension_semantics<parallel>], iteration_bounds = array<i64: 2>, scalar_prefetch = 0 : i64, scratch_operands = 0 : i64, tpu.core_type = #tpu.core_type<tc>, window_params = [{transform_indices = @transform_0, window_bounds = array<i64: 8, 128>}, {pipeline_mode = #tpu.pipeline_mode<synchronous>, transform_indices = @transform_1, window_bounds = array<i64: 128, 512>}, {pipeline_mode = #tpu.pipeline_mode<synchronous>, transform_indices = @transform_2, window_bounds = array<i64: 1, 512>}, {transform_indices = @transform_3, window_bounds = array<i64: 8, 512>}]} {
    %c0 = arith.constant 0 : index
    %c0_0 = arith.constant 0 : index
    %0 = vector.load %arg1[%c0, %c0_0] : memref<8x128xf32, #tpu.memory_space<vmem>>, vector<8x128xf32>
    %1 = arith.truncf %0 : vector<8x128xf32> to vector<8x128xbf16>
    %c0_1 = arith.constant 0 : index
    %c0_2 = arith.constant 0 : index
    %2 = vector.load %arg2[%c0_1, %c0_2] : memref<128x512xbf16, #tpu.memory_space<vmem>>, vector<128x512xbf16>
    %cst = arith.constant dense<0.000000e+00> : vector<8x512xf32>
    %3 = tpu.matmul %1, %2, %cst {dimension_numbers = #tpu.dot_dimension_numbers<[1], [0], [0], [1], [0, 0, 1, 1], [], []>} : vector<8x128xbf16>, vector<128x512xbf16>, vector<8x512xf32> -> vector<8x512xf32>
    %c0_3 = arith.constant 0 : index
    %c0_4 = arith.constant 0 : index
    %4 = vector.load %arg3[%c0_3, %c0_4] : memref<1x512xf32, #tpu.memory_space<vmem>>, vector<1x512xf32>
    %5 = vector.broadcast %4 : vector<1x512xf32> to vector<8x512xf32>
    %6 = arith.addf %3, %5 : vector<8x512xf32>
    %cst_5 = arith.constant 5.000000e-01 : f32
    %7 = vector.broadcast %cst_5 : f32 to vector<8x512xf32>
    %8 = arith.mulf %7, %6 : vector<8x512xf32>
    %cst_6 = arith.constant 4.471500e-02 : f32
    %9 = vector.broadcast %cst_6 : f32 to vector<8x512xf32>
    %10 = arith.mulf %9, %6 : vector<8x512xf32>
    %11 = arith.mulf %10, %6 : vector<8x512xf32>
    %12 = arith.mulf %11, %6 : vector<8x512xf32>
    %13 = arith.addf %6, %12 : vector<8x512xf32>
    %cst_7 = arith.constant 0.797884583 : f32
    %14 = vector.broadcast %cst_7 : f32 to vector<8x512xf32>
    %15 = arith.mulf %14, %13 : vector<8x512xf32>
    %16 = math.tanh %15 : vector<8x512xf32>
    %cst_8 = arith.constant 1.000000e+00 : f32
    %17 = vector.broadcast %cst_8 : f32 to vector<8x512xf32>
    %18 = arith.addf %17, %16 : vector<8x512xf32>
    %19 = arith.mulf %8, %18 : vector<8x512xf32>
    %c0_9 = arith.constant 0 : index
    %c0_10 = arith.constant 0 : index
    %20 = vector.load %arg4[%c0_9, %c0_10] : memref<8x512xf32, #tpu.memory_space<vmem>>, vector<8x512xf32>
    tpu.vector_store %arg4[%c0_9, %c0_10], %19 {strides = array<i32>} : memref<8x512xf32, #tpu.memory_space<vmem>>, vector<8x512xf32>,
    return
  }
  func.func @transform_0(%arg0: i32) -> (i32, i32) {
    %c0_i32 = arith.constant 0 : i32
    %c0_i32_0 = arith.constant 0 : i32
    return %arg0, %c0_i32 : i32, i32
  }
  func.func @transform_1(%arg0: i32) -> (i32, i32) {
    %c0_i32 = arith.constant 0 : i32
    %c0_i32_0 = arith.constant 0 : i32
    %c0_i32_1 = arith.constant 0 : i32
    return %c0_i32, %c0_i32_0 : i32, i32
  }
  func.func @transform_2(%arg0: i32) -> (i32, i32) {
    %c0_i32 = arith.constant 0 : i32
    %c0_i32_0 = arith.constant 0 : i32
    %c0_i32_1 = arith.constant 0 : i32
    return %c0_i32, %c0_i32_0 : i32, i32
  }
  func.func @transform_3(%arg0: i32) -> (i32, i32) {
    %c0_i32 = arith.constant 0 : i32
    %c0_i32_0 = arith.constant 0 : i32
    return %arg0, %c0_i32 : i32, i32
  }
}

module attributes {stable_mosaic.version = 11 : i64} {
  func.func @_pool_cls_kernel(%arg0: i32, %arg1: memref<2x128xf32, #tpu.memory_space<vmem>>, %arg2: memref<128x128xbf16, #tpu.memory_space<vmem>>, %arg3: memref<1x128xf32, #tpu.memory_space<vmem>>, %arg4: memref<1x128xf32, #tpu.memory_space<vmem>>, %arg5: memref<1x1xf32, #tpu.memory_space<vmem>>, %arg6: memref<2x128xf32, #tpu.memory_space<vmem>>, %arg7: memref<2x1xf32, #tpu.memory_space<vmem>>) attributes {dimension_semantics = [#tpu.dimension_semantics<arbitrary>], iteration_bounds = array<i64: 1>, scalar_prefetch = 0 : i64, scratch_operands = 0 : i64, tpu.core_type = #tpu.core_type<tc>, window_params = [{pipeline_mode = #tpu.pipeline_mode<synchronous>, transform_indices = @transform_0, window_bounds = array<i64: 2, 128>}, {pipeline_mode = #tpu.pipeline_mode<synchronous>, transform_indices = @transform_1, window_bounds = array<i64: 128, 128>}, {pipeline_mode = #tpu.pipeline_mode<synchronous>, transform_indices = @transform_2, window_bounds = array<i64: 1, 128>}, {pipeline_mode = #tpu.pipeline_mode<synchronous>, transform_indices = @transform_3, window_bounds = array<i64: 1, 128>}, {pipeline_mode = #tpu.pipeline_mode<synchronous>, transform_indices = @transform_4, window_bounds = array<i64: 1, 1>}, {pipeline_mode = #tpu.pipeline_mode<synchronous>, transform_indices = @transform_5, window_bounds = array<i64: 2, 128>}, {pipeline_mode = #tpu.pipeline_mode<synchronous>, transform_indices = @transform_6, window_bounds = array<i64: 2, 1>}]} {
    %c0 = arith.constant 0 : index
    %c0_0 = arith.constant 0 : index
    %0 = vector.load %arg1[%c0, %c0_0] : memref<2x128xf32, #tpu.memory_space<vmem>>, vector<2x128xf32>
    %1 = arith.truncf %0 : vector<2x128xf32> to vector<2x128xbf16>
    %c0_1 = arith.constant 0 : index
    %c0_2 = arith.constant 0 : index
    %2 = vector.load %arg2[%c0_1, %c0_2] : memref<128x128xbf16, #tpu.memory_space<vmem>>, vector<128x128xbf16>
    %cst = arith.constant dense<0.000000e+00> : vector<2x128xf32>
    %3 = tpu.matmul %1, %2, %cst {dimension_numbers = #tpu.dot_dimension_numbers<[1], [0], [0], [1], [0, 0, 1, 1], [], []>} : vector<2x128xbf16>, vector<128x128xbf16>, vector<2x128xf32> -> vector<2x128xf32>
    %c0_3 = arith.constant 0 : index
    %c0_4 = arith.constant 0 : index
    %4 = vector.load %arg3[%c0_3, %c0_4] : memref<1x128xf32, #tpu.memory_space<vmem>>, vector<1x128xf32>
    %5 = vector.broadcast %4 : vector<1x128xf32> to vector<2x128xf32>
    %6 = arith.addf %3, %5 : vector<2x128xf32>
    %7 = math.tanh %6 : vector<2x128xf32>
    %c0_5 = arith.constant 0 : index
    %c0_6 = arith.constant 0 : index
    %8 = vector.load %arg6[%c0_5, %c0_6] : memref<2x128xf32, #tpu.memory_space<vmem>>, vector<2x128xf32>
    tpu.vector_store %arg6[%c0_5, %c0_6], %7 {strides = array<i32>} : memref<2x128xf32, #tpu.memory_space<vmem>>, vector<2x128xf32>,
    %c0_7 = arith.constant 0 : index
    %c0_8 = arith.constant 0 : index
    %9 = vector.load %arg4[%c0_7, %c0_8] : memref<1x128xf32, #tpu.memory_space<vmem>>, vector<1x128xf32>
    %10 = vector.broadcast %9 : vector<1x128xf32> to vector<2x128xf32>
    %11 = arith.mulf %7, %10 : vector<2x128xf32>
    %cst_9 = arith.constant dense<0.000000e+00> : vector<2xf32>
    %12 = vector.multi_reduction <add>, %11, %cst_9 [1] : vector<2x128xf32> to vector<2xf32>
    %13 = vector.shape_cast %12 : vector<2xf32> to vector<2x1xf32>
    %c0_10 = arith.constant 0 : index
    %c0_11 = arith.constant 0 : index
    %14 = vector.load %arg5[%c0_10, %c0_11] : memref<1x1xf32, #tpu.memory_space<vmem>>, vector<1x1xf32>
    %15 = vector.broadcast %14 : vector<1x1xf32> to vector<2x1xf32>
    %16 = arith.addf %13, %15 : vector<2x1xf32>
    %c0_12 = arith.constant 0 : index
    %c0_13 = arith.constant 0 : index
    %17 = vector.load %arg7[%c0_12, %c0_13] : memref<2x1xf32, #tpu.memory_space<vmem>>, vector<2x1xf32>
    tpu.vector_store %arg7[%c0_12, %c0_13], %16 {strides = array<i32>} : memref<2x1xf32, #tpu.memory_space<vmem>>, vector<2x1xf32>,
    return
  }
  func.func @transform_0(%arg0: i32) -> (i32, i32) {
    %c0_i32 = arith.constant 0 : i32
    %c0_i32_0 = arith.constant 0 : i32
    %c0_i32_1 = arith.constant 0 : i32
    return %c0_i32, %c0_i32_0 : i32, i32
  }
  func.func @transform_1(%arg0: i32) -> (i32, i32) {
    %c0_i32 = arith.constant 0 : i32
    %c0_i32_0 = arith.constant 0 : i32
    %c0_i32_1 = arith.constant 0 : i32
    return %c0_i32, %c0_i32_0 : i32, i32
  }
  func.func @transform_2(%arg0: i32) -> (i32, i32) {
    %c0_i32 = arith.constant 0 : i32
    %c0_i32_0 = arith.constant 0 : i32
    %c0_i32_1 = arith.constant 0 : i32
    return %c0_i32, %c0_i32_0 : i32, i32
  }
  func.func @transform_3(%arg0: i32) -> (i32, i32) {
    %c0_i32 = arith.constant 0 : i32
    %c0_i32_0 = arith.constant 0 : i32
    %c0_i32_1 = arith.constant 0 : i32
    return %c0_i32, %c0_i32_0 : i32, i32
  }
  func.func @transform_4(%arg0: i32) -> (i32, i32) {
    %c0_i32 = arith.constant 0 : i32
    %c0_i32_0 = arith.constant 0 : i32
    %c0_i32_1 = arith.constant 0 : i32
    return %c0_i32, %c0_i32_0 : i32, i32
  }
  func.func @transform_5(%arg0: i32) -> (i32, i32) {
    %c0_i32 = arith.constant 0 : i32
    %c0_i32_0 = arith.constant 0 : i32
    %c0_i32_1 = arith.constant 0 : i32
    return %c0_i32, %c0_i32_0 : i32, i32
  }
  func.func @transform_6(%arg0: i32) -> (i32, i32) {
    %c0_i32 = arith.constant 0 : i32
    %c0_i32_0 = arith.constant 0 : i32
    %c0_i32_1 = arith.constant 0 : i32
    return %c0_i32, %c0_i32_0 : i32, i32
  }
}

module attributes {stable_mosaic.version = 11 : i64} {
  func.func @_dense_res_ln_kernel(%arg0: i32, %arg1: memref<8x512xf32, #tpu.memory_space<vmem>>, %arg2: memref<512x128xbf16, #tpu.memory_space<vmem>>, %arg3: memref<1x128xf32, #tpu.memory_space<vmem>>, %arg4: memref<8x128xf32, #tpu.memory_space<vmem>>, %arg5: memref<1x128xf32, #tpu.memory_space<vmem>>, %arg6: memref<1x128xf32, #tpu.memory_space<vmem>>, %arg7: memref<8x128xf32, #tpu.memory_space<vmem>>) attributes {dimension_semantics = [#tpu.dimension_semantics<parallel>], iteration_bounds = array<i64: 2>, scalar_prefetch = 0 : i64, scratch_operands = 0 : i64, tpu.core_type = #tpu.core_type<tc>, window_params = [{transform_indices = @transform_0, window_bounds = array<i64: 8, 512>}, {pipeline_mode = #tpu.pipeline_mode<synchronous>, transform_indices = @transform_1, window_bounds = array<i64: 512, 128>}, {pipeline_mode = #tpu.pipeline_mode<synchronous>, transform_indices = @transform_2, window_bounds = array<i64: 1, 128>}, {transform_indices = @transform_3, window_bounds = array<i64: 8, 128>}, {pipeline_mode = #tpu.pipeline_mode<synchronous>, transform_indices = @transform_4, window_bounds = array<i64: 1, 128>}, {pipeline_mode = #tpu.pipeline_mode<synchronous>, transform_indices = @transform_5, window_bounds = array<i64: 1, 128>}, {transform_indices = @transform_6, window_bounds = array<i64: 8, 128>}]} {
    %c0 = arith.constant 0 : index
    %c0_0 = arith.constant 0 : index
    %0 = vector.load %arg1[%c0, %c0_0] : memref<8x512xf32, #tpu.memory_space<vmem>>, vector<8x512xf32>
    %1 = arith.truncf %0 : vector<8x512xf32> to vector<8x512xbf16>
    %c0_1 = arith.constant 0 : index
    %c0_2 = arith.constant 0 : index
    %2 = vector.load %arg2[%c0_1, %c0_2] : memref<512x128xbf16, #tpu.memory_space<vmem>>, vector<512x128xbf16>
    %cst = arith.constant dense<0.000000e+00> : vector<8x128xf32>
    %3 = tpu.matmul %1, %2, %cst {dimension_numbers = #tpu.dot_dimension_numbers<[1], [0], [0], [1], [0, 0, 1, 1], [], []>} : vector<8x512xbf16>, vector<512x128xbf16>, vector<8x128xf32> -> vector<8x128xf32>
    %c0_3 = arith.constant 0 : index
    %c0_4 = arith.constant 0 : index
    %4 = vector.load %arg3[%c0_3, %c0_4] : memref<1x128xf32, #tpu.memory_space<vmem>>, vector<1x128xf32>
    %5 = vector.broadcast %4 : vector<1x128xf32> to vector<8x128xf32>
    %6 = arith.addf %3, %5 : vector<8x128xf32>
    %c0_5 = arith.constant 0 : index
    %c0_6 = arith.constant 0 : index
    %7 = vector.load %arg4[%c0_5, %c0_6] : memref<8x128xf32, #tpu.memory_space<vmem>>, vector<8x128xf32>
    %8 = arith.addf %6, %7 : vector<8x128xf32>
    %cst_7 = arith.constant dense<0.000000e+00> : vector<8xf32>
    %9 = vector.multi_reduction <add>, %8, %cst_7 [1] : vector<8x128xf32> to vector<8xf32>
    %10 = vector.shape_cast %9 : vector<8xf32> to vector<8x1xf32>
    %cst_8 = arith.constant 1.280000e+02 : f32
    %11 = vector.broadcast %cst_8 : f32 to vector<8x1xf32>
    %12 = arith.divf %10, %11 : vector<8x1xf32>
    %13 = vector.broadcast %12 : vector<8x1xf32> to vector<8x128xf32>
    %14 = arith.subf %8, %13 : vector<8x128xf32>
    %15 = arith.mulf %14, %14 : vector<8x128xf32>
    %cst_9 = arith.constant dense<0.000000e+00> : vector<8xf32>
    %16 = vector.multi_reduction <add>, %15, %cst_9 [1] : vector<8x128xf32> to vector<8xf32>
    %17 = vector.shape_cast %16 : vector<8xf32> to vector<8x1xf32>
    %cst_10 = arith.constant 1.280000e+02 : f32
    %18 = vector.broadcast %cst_10 : f32 to vector<8x1xf32>
    %19 = arith.divf %17, %18 : vector<8x1xf32>
    %20 = vector.broadcast %12 : vector<8x1xf32> to vector<8x128xf32>
    %21 = arith.subf %8, %20 : vector<8x128xf32>
    %cst_11 = arith.constant 9.99999996E-13 : f32
    %22 = vector.broadcast %cst_11 : f32 to vector<8x1xf32>
    %23 = arith.addf %19, %22 : vector<8x1xf32>
    %24 = math.rsqrt %23 : vector<8x1xf32>
    %25 = vector.broadcast %24 : vector<8x1xf32> to vector<8x128xf32>
    %26 = arith.mulf %21, %25 : vector<8x128xf32>
    %c0_12 = arith.constant 0 : index
    %c0_13 = arith.constant 0 : index
    %27 = vector.load %arg5[%c0_12, %c0_13] : memref<1x128xf32, #tpu.memory_space<vmem>>, vector<1x128xf32>
    %28 = vector.broadcast %27 : vector<1x128xf32> to vector<8x128xf32>
    %29 = arith.mulf %26, %28 : vector<8x128xf32>
    %c0_14 = arith.constant 0 : index
    %c0_15 = arith.constant 0 : index
    %30 = vector.load %arg6[%c0_14, %c0_15] : memref<1x128xf32, #tpu.memory_space<vmem>>, vector<1x128xf32>
    %31 = vector.broadcast %30 : vector<1x128xf32> to vector<8x128xf32>
    %32 = arith.addf %29, %31 : vector<8x128xf32>
    %c0_16 = arith.constant 0 : index
    %c0_17 = arith.constant 0 : index
    %33 = vector.load %arg7[%c0_16, %c0_17] : memref<8x128xf32, #tpu.memory_space<vmem>>, vector<8x128xf32>
    tpu.vector_store %arg7[%c0_16, %c0_17], %32 {strides = array<i32>} : memref<8x128xf32, #tpu.memory_space<vmem>>, vector<8x128xf32>,
    return
  }
  func.func @transform_0(%arg0: i32) -> (i32, i32) {
    %c0_i32 = arith.constant 0 : i32
    %c0_i32_0 = arith.constant 0 : i32
    return %arg0, %c0_i32 : i32, i32
  }
  func.func @transform_1(%arg0: i32) -> (i32, i32) {
    %c0_i32 = arith.constant 0 : i32
    %c0_i32_0 = arith.constant 0 : i32
    %c0_i32_1 = arith.constant 0 : i32
    return %c0_i32, %c0_i32_0 : i32, i32
  }
  func.func @transform_2(%arg0: i32) -> (i32, i32) {
    %c0_i32 = arith.constant 0 : i32
    %c0_i32_0 = arith.constant 0 : i32
    %c0_i32_1 = arith.constant 0 : i32
    return %c0_i32, %c0_i32_0 : i32, i32
  }
  func.func @transform_3(%arg0: i32) -> (i32, i32) {
    %c0_i32 = arith.constant 0 : i32
    %c0_i32_0 = arith.constant 0 : i32
    return %arg0, %c0_i32 : i32, i32
  }
  func.func @transform_4(%arg0: i32) -> (i32, i32) {
    %c0_i32 = arith.constant 0 : i32
    %c0_i32_0 = arith.constant 0 : i32
    %c0_i32_1 = arith.constant 0 : i32
    return %c0_i32, %c0_i32_0 : i32, i32
  }
  func.func @transform_5(%arg0: i32) -> (i32, i32) {
    %c0_i32 = arith.constant 0 : i32
    %c0_i32_0 = arith.constant 0 : i32
    %c0_i32_1 = arith.constant 0 : i32
    return %c0_i32, %c0_i32_0 : i32, i32
  }
  func.func @transform_6(%arg0: i32) -> (i32, i32) {
    %c0_i32 = arith.constant 0 : i32
    %c0_i32_0 = arith.constant 0 : i32
    return %arg0, %c0_i32 : i32, i32
  }
}

</mosaic_0001>

<llo_original>
// kernel: forward.12
$region0: #{forward.12}
  #allocation0 [shape = 'u32[]', space=smem, size = 0x4, offset = 0x4, fixed_abs, tag = 'smem constant byte address 0x4 - core index']
  #allocation1 [shape = 'u32[144,128]{1,0:T(1,128)}', space=vmem, size = 0x12000, scoped, tag = 'internal scratch']
  %s0 = inlined_call_operand.vmem [shape: f32[16,128], index: 0, kind: input, shape index: {}]
  %s1 = inlined_call_operand.vmem [shape: f32[1,128], index: 1, kind: input, shape index: {}]
  %s2 = inlined_call_operand.vmem [shape: f32[1,128], index: 2, kind: input, shape index: {}]
  %s3 = inlined_call_operand.vmem [shape: f32[16,128], index: 3, kind: output, shape index: {}]
  %s4 = sld [smem:[#allocation0]]
  $region45: #{forward.12} parent=0
    _
  %s6 = ssub.s32 1, %s4
  %s7 = scalar_select 0, %s6, %s4
  loop: start=0, step=1, limit=4
  $region2: #{forward.12} parent=0 // loop_pre_header
    _
  $region3: #{forward.12} parent=0 // loop_header
    %s9 = sphi 0, %s13
    %p10 = scmp.ge.s32.totalorder %s9, 4
    %s19 = sphi 0, %s21
    %s22 = sphi 0, %s19
    %s23 = sphi 0, %s22
    %s39 = sphi 0, %s23
    %s43 = sphi 0, %s43
    %s45 = sphi 0, %s43
    %s46 = sphi 0, %s45
    %s60 = sphi 0, %s46
    %s64 = sphi 0, %s64
    %s66 = sphi 0, %s64
    %s67 = sphi 0, %s66
    %s81 = sphi 0, %s67
    %s87 = sphi 0, %s89
    %s90 = sphi 0, %s87
    %s91 = sphi 0, %s90
    %s107 = sphi 0, %s91
  $region4: #{forward.12} parent=0 // loop_header_branch
    %12 = sbr.rel (%p10) target = $region8
  $region5: #{forward.12} parent=0 // loop_body
    %s14 = ssub.s32 %s9, 1
    %s15 = ssub.s32 %s9, 2
    %s16 = sadd.s32 %s9, 1
    %s17 = ssub.s32 %s9, %s16
    %p18 = scmp.eq.s32.totalorder %s17, 0
    %s20 = sadd.s32 %s19, 1
    %s21 = scalar_select %p18, %s19, %s20
    %p24 = pneg %p18
    %p25 = scmp.eq.s32.totalorder %s9, 1
    %p26 = por %p24, %p25
    %p27 = scmp.ne.s32.totalorder %s19, %s22
    %p28 = scmp.eq.s32.totalorder %s9, 0
    %p29 = por %p27, %p28
    %p30 = scmp.ne.s32.totalorder %s19, %s22
    %p31 = scmp.eq.s32.totalorder %s14, 1
    %p32 = por %p30, %p31
    %p33 = scmp.ne.s32.totalorder %s22, %s23
    %p34 = scmp.eq.s32.totalorder %s14, 0
    %p35 = por %p33, %p34
    %p36 = scmp.ne.s32.totalorder %s22, %s23
    %p37 = scmp.eq.s32.totalorder %s15, 1
    %p38 = por %p36, %p37
    %p40 = scmp.ne.s32.totalorder %s23, %s39
    %p41 = scmp.eq.s32.totalorder %s15, 0
    %p42 = por %p40, %p41
    %s44 = sadd.s32 %s43, 1
    %p47 = scmp.eq.s32.totalorder %s9, 1
    %p48 = scmp.ne.s32.totalorder %s43, %s45
    %p49 = scmp.eq.s32.totalorder %s9, 0
    %p50 = por %p48, %p49
    %p51 = scmp.ne.s32.totalorder %s43, %s45
    %p52 = scmp.eq.s32.totalorder %s14, 1
    %p53 = por %p51, %p52
    %p54 = scmp.ne.s32.totalorder %s45, %s46
    %p55 = scmp.eq.s32.totalorder %s14, 0
    %p56 = por %p54, %p55
    %p57 = scmp.ne.s32.totalorder %s45, %s46
    %p58 = scmp.eq.s32.totalorder %s15, 1
    %p59 = por %p57, %p58
    %p61 = scmp.ne.s32.totalorder %s46, %s60
    %p62 = scmp.eq.s32.totalorder %s15, 0
    %p63 = por %p61, %p62
    %s65 = sadd.s32 %s64, 1
    %p68 = scmp.eq.s32.totalorder %s9, 1
    %p69 = scmp.ne.s32.totalorder %s64, %s66
    %p70 = scmp.eq.s32.totalorder %s9, 0
    %p71 = por %p69, %p70
    %p72 = scmp.ne.s32.totalorder %s64, %s66
    %p73 = scmp.eq.s32.totalorder %s14, 1
    %p74 = por %p72, %p73
    %p75 = scmp.ne.s32.totalorder %s66, %s67
    %p76 = scmp.eq.s32.totalorder %s14, 0
    %p77 = por %p75, %p76
    %p78 = scmp.ne.s32.totalorder %s66, %s67
    %p79 = scmp.eq.s32.totalorder %s15, 1
    %p80 = por %p78, %p79
    %p82 = scmp.ne.s32.totalorder %s67, %s81
    %p83 = scmp.eq.s32.totalorder %s15, 0
    %p84 = por %p82, %p83
    %s85 = ssub.s32 %s9, %s16
    %p86 = scmp.eq.s32.totalorder %s85, 0
    %s88 = sadd.s32 %s87, 1
    %s89 = scalar_select %p86, %s87, %s88
    %p92 = pneg %p86
    %p93 = scmp.eq.s32.totalorder %s9, 1
    %p94 = por %p92, %p93
    %p95 = scmp.ne.s32.totalorder %s87, %s90
    %p96 = scmp.eq.s32.totalorder %s9, 0
    %p97 = por %p95, %p96
    %p98 = scmp.ne.s32.totalorder %s87, %s90
    %p99 = scmp.eq.s32.totalorder %s14, 1
    %p100 = por %p98, %p99
    %p101 = scmp.ne.s32.totalorder %s90, %s91
    %p102 = scmp.eq.s32.totalorder %s14, 0
    %p103 = por %p101, %p102
    %p104 = scmp.ne.s32.totalorder %s90, %s91
    %p105 = scmp.eq.s32.totalorder %s15, 1
    %p106 = por %p104, %p105
    %p108 = scmp.ne.s32.totalorder %s91, %s107
    %p109 = scmp.eq.s32.totalorder %s15, 0
    %p110 = por %p108, %p109
    %p111 = scmp.le.s32.totalorder 1, %s9
    %p112 = scmp.lt.s32.totalorder %s9, 3
    %p113 = pnand %p111, %p112
    %p114 = pneg %p113
    // Predicated region
    $region9: #{forward.12} parent=5 // pred_check
      _
    $region10: #{forward.12} parent=5 // pred_check_branch
      %116 = sbr.rel (%p113) target = $region12
    $region11: #{forward.12} parent=5 // pred_region
      %s117 = ssub.s32 %s9, 1
      // Predicated region
      $region13: #{forward.12} parent=11 // pred_check
        %p118 = pneg %p56
      $region14: #{forward.12} parent=11 // pred_check_branch
        %120 = sbr.rel (%p118) target = $region16
      $region15: #{forward.12} parent=11 // pred_region
        _
      $region16: #{forward.12} parent=11 // pred_fallthru
        _
      // Predicated region
      $region17: #{forward.12} parent=11 // pred_check
        %p121 = pneg %p77
      $region18: #{forward.12} parent=11 // pred_check_branch
        %123 = sbr.rel (%p121) target = $region20
      $region19: #{forward.12} parent=11 // pred_region
        _
      $region20: #{forward.12} parent=11 // pred_fallthru
        _
    $region12: #{forward.12} parent=5 // pred_fallthru
      _
    %p124 = scmp.lt.s32.totalorder %s9, 2
    // Predicated region
    $region21: #{forward.12} parent=5 // pred_check
      %p125 = pneg %p124
    $region22: #{forward.12} parent=5 // pred_check_branch
      %127 = sbr.rel (%p125) target = $region24
    $region23: #{forward.12} parent=5 // pred_region
      // Predicated region
      $region25: #{forward.12} parent=23 // pred_check
        %p128 = pneg %p29
      $region26: #{forward.12} parent=23 // pred_check_branch
        %130 = sbr.rel (%p128) target = $region28
      $region27: #{forward.12} parent=23 // pred_region
        %p131 = scmp.lt.s32.totalorder %s9, 1
        %s132 = scalar_select %p131, %s9, 1
        %s133 = smul.addr %s132, 8
        %s134 = scalar_lea.vmem %s0, %s133
      $region28: #{forward.12} parent=23 // pred_fallthru
        _
    $region24: #{forward.12} parent=5 // pred_fallthru
      _
    %p135 = scmp.le.s32.totalorder 1, %s9
    %p136 = scmp.lt.s32.totalorder %s9, 3
    %p137 = pnand %p135, %p136
    %p138 = pneg %p137
    // Predicated region
    $region29: #{forward.12} parent=5 // pred_check
      _
    $region30: #{forward.12} parent=5 // pred_check_branch
      %140 = sbr.rel (%p137) target = $region32
    $region31: #{forward.12} parent=5 // pred_region
      %s141 = ssub.s32 %s9, 1
      %p142 = scmp.lt.s32.totalorder %s14, 1
      %s143 = scalar_select %p142, %s14, 1
      %s144 = smul.addr %s143, 8
      %s145 = scalar_lea.vmem %s0, %s144
      %p146 = pneg %p35
      %p147 = pneg %p32
      %p148 = pneg %p56
      %p149 = pneg %p53
      %p150 = pneg %p77
      %p151 = pneg %p74
      %p152 = pneg %p103
      %p153 = pneg %p100
      %p154 = scmp.lt.s32.totalorder %s14, 1
      %s155 = scalar_select %p154, %s14, 1
      %s156 = smul.addr %s155, 8
      %s157 = scalar_lea.vmem %s3, %s156
      %p158 = scmp.lt.s32.totalorder %s14, 1
      %s159 = scalar_select %p158, %s14, 1
      %s160 = smul.addr %s159, 8
      %s161 = scalar_lea.vmem %s0, %s160
      %p162 = scmp.lt.s32.totalorder %s14, 1
      %s163 = scalar_select %p162, %s14, 1
      %s164 = smul.addr %s163, 8
      %s165 = scalar_lea.vmem %s3, %s164
      %v166 = vld [vmem:[%s161] sm:$0xff]
      %167 = vadd.xlane.f32.xlu0 %v166
      %v168 = vpop.xlane.xlu0 %167
      %v169 = vrcp.pop 128.0
      %v170 = vmul.f32 %v168, %v169
      %v171 = vsub.f32 %v166, %v170
      %v172 = vmul.f32 %v171, %v171
      %173 = vadd.xlane.f32.xlu0 %v172
      %v174 = vpop.xlane.xlu0 %173
      %v175 = vmul.f32 %v174, %v169
      %v176 = vadd.f32 %v175, 1e-12
      %v177 = vrsqrt.pop %v176
      %v178 = vmul.f32 %v171, %v177
      %v179 = vld [vmem:[%s1] sm:$0x1]
      %v181 = vlaneseq
      %v182 = vshrl.u32 %v181, 7
      %v183 = vsub.s32 0, %v182
      %v184 = vrot.slane %v179, %v183
      %v186 = vmul.f32 %v178, %v184
      %v187 = vld [vmem:[%s2] sm:$0x1]
      %v189 = vlaneseq
      %v190 = vshrl.u32 %v189, 7
      %v191 = vsub.s32 0, %v190
      %v192 = vrot.slane %v187, %v191
      %v194 = vadd.f32 %v186, %v192
      %195 = vst [vmem:[%s165] sm:$0xff] %v194
      %p196 = scmp.lt.s32.totalorder %s14, 1
      %s197 = scalar_select %p196, %s14, 1
      %s198 = smul.addr %s197, 8
      %s199 = scalar_lea.vmem %s3, %s198
      // Predicated region
      $region33: #{forward.12} parent=31 // pred_check
        %p200 = pneg %p100
      $region34: #{forward.12} parent=31 // pred_check_branch
        %202 = sbr.rel (%p200) target = $region36
      $region35: #{forward.12} parent=31 // pred_region
        _
      $region36: #{forward.12} parent=31 // pred_fallthru
        _
    $region32: #{forward.12} parent=5 // pred_fallthru
      _
    %p203 = scmp.le.s32.totalorder 2, %s9
    // Predicated region
    $region37: #{forward.12} parent=5 // pred_check
      %p204 = pneg %p203
    $region38: #{forward.12} parent=5 // pred_check_branch
      %206 = sbr.rel (%p204) target = $region40
    $region39: #{forward.12} parent=5 // pred_region
      %s207 = ssub.s32 %s9, 2
      // Predicated region
      $region41: #{forward.12} parent=39 // pred_check
        %p208 = pneg %p106
      $region42: #{forward.12} parent=39 // pred_check_branch
        %210 = sbr.rel (%p208) target = $region44
      $region43: #{forward.12} parent=39 // pred_region
        %p211 = scmp.lt.s32.totalorder %s15, 1
        %s212 = scalar_select %p211, %s15, 1
        %s213 = smul.addr %s212, 8
        %s214 = scalar_lea.vmem %s3, %s213
      $region44: #{forward.12} parent=39 // pred_fallthru
        _
    $region40: #{forward.12} parent=5 // pred_fallthru
      _
  $region6: #{forward.12} parent=0 // loop_footer
    %s13 = sadd.s32 1, %s9
  $region7: #{forward.12} parent=0 // loop_footer_branch
    %8 = sbr.rel target = $region3
  $region8: #{forward.12} parent=0 // loop_exit
    _

// kernel: forward.15
$region0: #{forward.15}
  #allocation0 [shape = 'u32[]', space=smem, size = 0x4, offset = 0x4, fixed_abs, tag = 'smem constant byte address 0x4 - core index']
  #allocation1 [shape = 'u32[144,128]{1,0:T(1,128)}', space=vmem, size = 0x12000, scoped, tag = 'internal scratch']
  %s0 = inlined_call_operand.vmem [shape: f32[16,128], index: 0, kind: input, shape index: {}]
  %s1 = inlined_call_operand.vmem [shape: bf16[128,128], index: 1, kind: input, shape index: {}]
  %s2 = inlined_call_operand.vmem [shape: f32[1,128], index: 2, kind: input, shape index: {}]
  %s3 = inlined_call_operand.vmem [shape: f32[16,128], index: 3, kind: input, shape index: {}, may-alias: {3,6}]
  %s4 = inlined_call_operand.vmem [shape: f32[1,128], index: 4, kind: input, shape index: {}]
  %s5 = inlined_call_operand.vmem [shape: f32[1,128], index: 5, kind: input, shape index: {}]
  %s6 = inlined_call_operand.vmem [shape: f32[16,128], index: 6, kind: output, shape index: {}, may-alias: {3,6}]
  %s7 = sld [smem:[#allocation0]]
  $region57: #{forward.15} parent=0
    _
  %s9 = ssub.s32 1, %s7
  %s10 = scalar_select 0, %s9, %s7
  loop: start=0, step=1, limit=4
  $region2: #{forward.15} parent=0 // loop_pre_header
    _
  $region3: #{forward.15} parent=0 // loop_header
    %s12 = sphi 0, %s16
    %p13 = scmp.ge.s32.totalorder %s12, 4
    %s22 = sphi 0, %s24
    %s25 = sphi 0, %s22
    %s26 = sphi 0, %s25
    %s42 = sphi 0, %s26
    %s46 = sphi 0, %s46
    %s48 = sphi 0, %s46
    %s49 = sphi 0, %s48
    %s63 = sphi 0, %s49
    %s67 = sphi 0, %s67
    %s69 = sphi 0, %s67
    %s70 = sphi 0, %s69
    %s84 = sphi 0, %s70
    %s90 = sphi 0, %s92
    %s93 = sphi 0, %s90
    %s94 = sphi 0, %s93
    %s110 = sphi 0, %s94
    %s114 = sphi 0, %s114
    %s116 = sphi 0, %s114
    %s117 = sphi 0, %s116
    %s131 = sphi 0, %s117
    %s135 = sphi 0, %s135
    %s137 = sphi 0, %s135
    %s138 = sphi 0, %s137
    %s152 = sphi 0, %s138
    %s158 = sphi 0, %s160
    %s161 = sphi 0, %s158
    %s162 = sphi 0, %s161
    %s178 = sphi 0, %s162
  $region4: #{forward.15} parent=0 // loop_header_branch
    %15 = sbr.rel (%p13) target = $region8
  $region5: #{forward.15} parent=0 // loop_body
    %s17 = ssub.s32 %s12, 1
    %s18 = ssub.s32 %s12, 2
    %s19 = sadd.s32 %s12, 1
    %s20 = ssub.s32 %s12, %s19
    %p21 = scmp.eq.s32.totalorder %s20, 0
    %s23 = sadd.s32 %s22, 1
    %s24 = scalar_select %p21, %s22, %s23
    %p27 = pneg %p21
    %p28 = scmp.eq.s32.totalorder %s12, 1
    %p29 = por %p27, %p28
    %p30 = scmp.ne.s32.totalorder %s22, %s25
    %p31 = scmp.eq.s32.totalorder %s12, 0
    %p32 = por %p30, %p31
    %p33 = scmp.ne.s32.totalorder %s22, %s25
    %p34 = scmp.eq.s32.totalorder %s17, 1
    %p35 = por %p33, %p34
    %p36 = scmp.ne.s32.totalorder %s25, %s26
    %p37 = scmp.eq.s32.totalorder %s17, 0
    %p38 = por %p36, %p37
    %p39 = scmp.ne.s32.totalorder %s25, %s26
    %p40 = scmp.eq.s32.totalorder %s18, 1
    %p41 = por %p39, %p40
    %p43 = scmp.ne.s32.totalorder %s26, %s42
    %p44 = scmp.eq.s32.totalorder %s18, 0
    %p45 = por %p43, %p44
    %s47 = sadd.s32 %s46, 1
    %p50 = scmp.eq.s32.totalorder %s12, 1
    %p51 = scmp.ne.s32.totalorder %s46, %s48
    %p52 = scmp.eq.s32.totalorder %s12, 0
    %p53 = por %p51, %p52
    %p54 = scmp.ne.s32.totalorder %s46, %s48
    %p55 = scmp.eq.s32.totalorder %s17, 1
    %p56 = por %p54, %p55
    %p57 = scmp.ne.s32.totalorder %s48, %s49
    %p58 = scmp.eq.s32.totalorder %s17, 0
    %p59 = por %p57, %p58
    %p60 = scmp.ne.s32.totalorder %s48, %s49
    %p61 = scmp.eq.s32.totalorder %s18, 1
    %p62 = por %p60, %p61
    %p64 = scmp.ne.s32.totalorder %s49, %s63
    %p65 = scmp.eq.s32.totalorder %s18, 0
    %p66 = por %p64, %p65
    %s68 = sadd.s32 %s67, 1
    %p71 = scmp.eq.s32.totalorder %s12, 1
    %p72 = scmp.ne.s32.totalorder %s67, %s69
    %p73 = scmp.eq.s32.totalorder %s12, 0
    %p74 = por %p72, %p73
    %p75 = scmp.ne.s32.totalorder %s67, %s69
    %p76 = scmp.eq.s32.totalorder %s17, 1
    %p77 = por %p75, %p76
    %p78 = scmp.ne.s32.totalorder %s69, %s70
    %p79 = scmp.eq.s32.totalorder %s17, 0
    %p80 = por %p78, %p79
    %p81 = scmp.ne.s32.totalorder %s69, %s70
    %p82 = scmp.eq.s32.totalorder %s18, 1
    %p83 = por %p81, %p82
    %p85 = scmp.ne.s32.totalorder %s70, %s84
    %p86 = scmp.eq.s32.totalorder %s18, 0
    %p87 = por %p85, %p86
    %s88 = ssub.s32 %s12, %s19
    %p89 = scmp.eq.s32.totalorder %s88, 0
    %s91 = sadd.s32 %s90, 1
    %s92 = scalar_select %p89, %s90, %s91
    %p95 = pneg %p89
    %p96 = scmp.eq.s32.totalorder %s12, 1
    %p97 = por %p95, %p96
    %p98 = scmp.ne.s32.totalorder %s90, %s93
    %p99 = scmp.eq.s32.totalorder %s12, 0
    %p100 = por %p98, %p99
    %p101 = scmp.ne.s32.totalorder %s90, %s93
    %p102 = scmp.eq.s32.totalorder %s17, 1
    %p103 = por %p101, %p102
    %p104 = scmp.ne.s32.totalorder %s93, %s94
    %p105 = scmp.eq.s32.totalorder %s17, 0
    %p106 = por %p104, %p105
    %p107 = scmp.ne.s32.totalorder %s93, %s94
    %p108 = scmp.eq.s32.totalorder %s18, 1
    %p109 = por %p107, %p108
    %p111 = scmp.ne.s32.totalorder %s94, %s110
    %p112 = scmp.eq.s32.totalorder %s18, 0
    %p113 = por %p111, %p112
    %s115 = sadd.s32 %s114, 1
    %p118 = scmp.eq.s32.totalorder %s12, 1
    %p119 = scmp.ne.s32.totalorder %s114, %s116
    %p120 = scmp.eq.s32.totalorder %s12, 0
    %p121 = por %p119, %p120
    %p122 = scmp.ne.s32.totalorder %s114, %s116
    %p123 = scmp.eq.s32.totalorder %s17, 1
    %p124 = por %p122, %p123
    %p125 = scmp.ne.s32.totalorder %s116, %s117
    %p126 = scmp.eq.s32.totalorder %s17, 0
    %p127 = por %p125, %p126
    %p128 = scmp.ne.s32.totalorder %s116, %s117
    %p129 = scmp.eq.s32.totalorder %s18, 1
    %p130 = por %p128, %p129
    %p132 = scmp.ne.s32.totalorder %s117, %s131
    %p133 = scmp.eq.s32.totalorder %s18, 0
    %p134 = por %p132, %p133
    %s136 = sadd.s32 %s135, 1
    %p139 = scmp.eq.s32.totalorder %s12, 1
    %p140 = scmp.ne.s32.totalorder %s135, %s137
    %p141 = scmp.eq.s32.totalorder %s12, 0
    %p142 = por %p140, %p141
    %p143 = scmp.ne.s32.totalorder %s135, %s137
    %p144 = scmp.eq.s32.totalorder %s17, 1
    %p145 = por %p143, %p144
    %p146 = scmp.ne.s32.totalorder %s137, %s138
    %p147 = scmp.eq.s32.totalorder %s17, 0
    %p148 = por %p146, %p147
    %p149 = scmp.ne.s32.totalorder %s137, %s138
    %p150 = scmp.eq.s32.totalorder %s18, 1
    %p151 = por %p149, %p150
    %p153 = scmp.ne.s32.totalorder %s138, %s152
    %p154 = scmp.eq.s32.totalorder %s18, 0
    %p155 = por %p153, %p154
    %s156 = ssub.s32 %s12, %s19
    %p157 = scmp.eq.s32.totalorder %s156, 0
    %s159 = sadd.s32 %s158, 1
    %s160 = scalar_select %p157, %s158, %s159
    %p163 = pneg %p157
    %p164 = scmp.eq.s32.totalorder %s12, 1
    %p165 = por %p163, %p164
    %p166 = scmp.ne.s32.totalorder %s158, %s161
    %p167 = scmp.eq.s32.totalorder %s12, 0
    %p168 = por %p166, %p167
    %p169 = scmp.ne.s32.totalorder %s158, %s161
    %p170 = scmp.eq.s32.totalorder %s17, 1
    %p171 = por %p169, %p170
    %p172 = scmp.ne.s32.totalorder %s161, %s162
    %p173 = scmp.eq.s32.totalorder %s17, 0
    %p174 = por %p172, %p173
    %p175 = scmp.ne.s32.totalorder %s161, %s162
    %p176 = scmp.eq.s32.totalorder %s18, 1
    %p177 = por %p175, %p176
    %p179 = scmp.ne.s32.totalorder %s162, %s178
    %p180 = scmp.eq.s32.totalorder %s18, 0
    %p181 = por %p179, %p180
    %p182 = scmp.le.s32.totalorder 1, %s12
    %p183 = scmp.lt.s32.totalorder %s12, 3
    %p184 = pnand %p182, %p183
    %p185 = pneg %p184
    // Predicated region
    $region9: #{forward.15} parent=5 // pred_check
      _
    $region10: #{forward.15} parent=5 // pred_check_branch
      %187 = sbr.rel (%p184) target = $region12
    $region11: #{forward.15} parent=5 // pred_region
      %s188 = ssub.s32 %s12, 1
      // Predicated region
      $region13: #{forward.15} parent=11 // pred_check
        %p189 = pneg %p59
      $region14: #{forward.15} parent=11 // pred_check_branch
        %191 = sbr.rel (%p189) target = $region16
      $region15: #{forward.15} parent=11 // pred_region
        _
      $region16: #{forward.15} parent=11 // pred_fallthru
        _
      // Predicated region
      $region17: #{forward.15} parent=11 // pred_check
        %p192 = pneg %p80
      $region18: #{forward.15} parent=11 // pred_check_branch
        %194 = sbr.rel (%p192) target = $region20
      $region19: #{forward.15} parent=11 // pred_region
        _
      $region20: #{forward.15} parent=11 // pred_fallthru
        _
      // Predicated region
      $region21: #{forward.15} parent=11 // pred_check
        %p195 = pneg %p127
      $region22: #{forward.15} parent=11 // pred_check_branch
        %197 = sbr.rel (%p195) target = $region24
      $region23: #{forward.15} parent=11 // pred_region
        _
      $region24: #{forward.15} parent=11 // pred_fallthru
        _
      // Predicated region
      $region25: #{forward.15} parent=11 // pred_check
        %p198 = pneg %p148
      $region26: #{forward.15} parent=11 // pred_check_branch
        %200 = sbr.rel (%p198) target = $region28
      $region27: #{forward.15} parent=11 // pred_region
        _
      $region28: #{forward.15} parent=11 // pred_fallthru
        _
    $region12: #{forward.15} parent=5 // pred_fallthru
      _
    %p201 = scmp.lt.s32.totalorder %s12, 2
    // Predicated region
    $region29: #{forward.15} parent=5 // pred_check
      %p202 = pneg %p201
    $region30: #{forward.15} parent=5 // pred_check_branch
      %204 = sbr.rel (%p202) target = $region32
    $region31: #{forward.15} parent=5 // pred_region
      // Predicated region
      $region33: #{forward.15} parent=31 // pred_check
        %p205 = pneg %p32
      $region34: #{forward.15} parent=31 // pred_check_branch
        %207 = sbr.rel (%p205) target = $region36
      $region35: #{forward.15} parent=31 // pred_region
        %p208 = scmp.lt.s32.totalorder %s12, 1
        %s209 = scalar_select %p208, %s12, 1
        %s210 = smul.addr %s209, 8
        %s211 = scalar_lea.vmem %s0, %s210
      $region36: #{forward.15} parent=31 // pred_fallthru
        _
      // Predicated region
      $region37: #{forward.15} parent=31 // pred_check
        %p212 = pneg %p100
      $region38: #{forward.15} parent=31 // pred_check_branch
        %214 = sbr.rel (%p212) target = $region40
      $region39: #{forward.15} parent=31 // pred_region
        %p215 = scmp.lt.s32.totalorder %s12, 1
        %s216 = scalar_select %p215, %s12, 1
        %s217 = smul.addr %s216, 8
        %s218 = scalar_lea.vmem %s3, %s217
      $region40: #{forward.15} parent=31 // pred_fallthru
        _
    $region32: #{forward.15} parent=5 // pred_fallthru
      _
    %p219 = scmp.le.s32.totalorder 1, %s12
    %p220 = scmp.lt.s32.totalorder %s12, 3
    %p221 = pnand %p219, %p220
    %p222 = pneg %p221
    // Predicated region
    $region41: #{forward.15} parent=5 // pred_check
      _
    $region42: #{forward.15} parent=5 // pred_check_branch
      %224 = sbr.rel (%p221) target = $region44
    $region43: #{forward.15} parent=5 // pred_region
      %s225 = ssub.s32 %s12, 1
      %p226 = scmp.lt.s32.totalorder %s17, 1
      %s227 = scalar_select %p226, %s17, 1
      %s228 = smul.addr %s227, 8
      %s229 = scalar_lea.vmem %s0, %s228
      %p230 = pneg %p38
      %p231 = pneg %p35
      %p232 = pneg %p59
      %p233 = pneg %p56
      %p234 = pneg %p80
      %p235 = pneg %p77
      %p236 = scmp.lt.s32.totalorder %s17, 1
      %s237 = scalar_select %p236, %s17, 1
      %s238 = smul.addr %s237, 8
      %s239 = scalar_lea.vmem %s3, %s238
      %p240 = pneg %p106
      %p241 = pneg %p103
      %p242 = pneg %p127
      %p243 = pneg %p124
      %p244 = pneg %p148
      %p245 = pneg %p145
      %p246 = pneg %p174
      %p247 = pneg %p171
      %p248 = scmp.lt.s32.totalorder %s17, 1
      %s249 = scalar_select %p248, %s17, 1
      %s250 = smul.addr %s249, 8
      %s251 = scalar_lea.vmem %s6, %s250
      %p252 = scmp.lt.s32.totalorder %s17, 1
      %s253 = scalar_select %p252, %s17, 1
      %s254 = smul.addr %s253, 8
      %s255 = scalar_lea.vmem %s0, %s254
      %p256 = scmp.lt.s32.totalorder %s17, 1
      %s257 = scalar_select %p256, %s17, 1
      %s258 = smul.addr %s257, 8
      %s259 = scalar_lea.vmem %s3, %s258
      %p260 = scmp.lt.s32.totalorder %s17, 1
      %s261 = scalar_select %p260, %s17, 1
      %s262 = smul.addr %s261, 8
      %s263 = scalar_lea.vmem %s6, %s262
      %v265 = vld [vmem:[%s255] sm:$0xff]
      %v266 = vpack.c.bf16 %v265, %v265
      %v267 = vld [vmem:[%s1] sm:$0xf]
      %v268 = vld [vmem:[%s1 + $0x4] sm:$0xf]
      %v269 = vld [vmem:[%s1 + $0x8] sm:$0xf]
      %v270 = vld [vmem:[%s1 + $0xc] sm:$0xf]
      %v271 = vld [vmem:[%s1 + $0x10] sm:$0xf]
      %v272 = vld [vmem:[%s1 + $0x14] sm:$0xf]
      %v273 = vld [vmem:[%s1 + $0x18] sm:$0xf]
      %v274 = vld [vmem:[%s1 + $0x1c] sm:$0xf]
      %v275 = vld [vmem:[%s1 + $0x20] sm:$0xf]
      %v276 = vld [vmem:[%s1 + $0x24] sm:$0xf]
      %v277 = vld [vmem:[%s1 + $0x28] sm:$0xf]
      %v278 = vld [vmem:[%s1 + $0x2c] sm:$0xf]
      %v279 = vld [vmem:[%s1 + $0x30] sm:$0xf]
      %v280 = vld [vmem:[%s1 + $0x34] sm:$0xf]
      %v281 = vld [vmem:[%s1 + $0x38] sm:$0xf]
      %v282 = vld [vmem:[%s1 + $0x3c] sm:$0xf]
      %v283 = vld [vmem:[%s2] sm:$0x1]
      %v285 = vlaneseq
      %v286 = vshrl.u32 %v285, 7
      %v287 = vsub.s32 0, %v286
      %v288 = vrot.slane %v283, %v287
      %v306 = vunpack.c.l.b16 %v267
      %v307 = vunpack.c.l.b16 %v268
      %v308 = vunpack.c.l.b16 %v269
      %v309 = vunpack.c.l.b16 %v270
      %v310 = vunpack.c.l.b16 %v271
      %v311 = vunpack.c.l.b16 %v272
      %v312 = vunpack.c.l.b16 %v273
      %v313 = vunpack.c.l.b16 %v274
      %v314 = vunpack.c.l.b16 %v275
      %v315 = vunpack.c.l.b16 %v276
      %v316 = vunpack.c.l.b16 %v277
      %v317 = vunpack.c.l.b16 %v278
      %v318 = vunpack.c.l.b16 %v279
      %v319 = vunpack.c.l.b16 %v280
      %v320 = vunpack.c.l.b16 %v281
      %v321 = vunpack.c.l.b16 %v282
      %v322 = vpack.c.b16 %v307, %v306
      %v323 = vpack.c.b16 %v309, %v308
      %v324 = vpack.c.b16 %v311, %v310
      %v325 = vpack.c.b16 %v313, %v312
      %v326 = vpack.c.b16 %v315, %v314
      %v327 = vpack.c.b16 %v317, %v316
      %v328 = vpack.c.b16 %v319, %v318
      %v329 = vpack.c.b16 %v321, %v320
      %338 = vmatprep.subr.bf16.mxu0 0
      %339 = vmatpush1.bf16.msra.mxu0 %v329
      %340 = vmatprep.subr.bf16.mxu0 0
      %341 = vmatpush1.bf16.msra.mxu0 %v328
      %342 = vmatprep.subr.bf16.mxu0 0
      %343 = vmatpush1.bf16.msra.mxu0 %v327
      %344 = vmatprep.subr.bf16.mxu0 0
      %345 = vmatpush1.bf16.msra.mxu0 %v326
      %346 = vmatprep.subr.bf16.mxu0 0
      %347 = vmatpush1.bf16.msra.mxu0 %v325
      %348 = vmatprep.subr.bf16.mxu0 0
      %349 = vmatpush1.bf16.msra.mxu0 %v324
      %350 = vmatprep.subr.bf16.mxu0 0
      %351 = vmatpush1.bf16.msra.mxu0 %v323
      %352 = vmatprep.subr.bf16.mxu0 0
      %353 = vmatpush1.bf16.msra.mxu0 %v322
      %354 = vmatprep.subr.bf16.mxu0 0
      %355 = vmatpush2.bf16.msra.mxu0 0
      %356 = vmatprep.subr.bf16.mxu0 0
      %357 = vmatpush2.bf16.msra.mxu0 0
      %358 = vmatprep.subr.bf16.mxu0 0
      %359 = vmatpush2.bf16.msra.mxu0 0
      %360 = vmatprep.subr.bf16.mxu0 0
      %361 = vmatpush2.bf16.msra.mxu0 0
      %362 = vmatprep.subr.bf16.mxu0 0
      %363 = vmatpush2.bf16.msra.mxu0 0
      %364 = vmatprep.subr.bf16.mxu0 0
      %365 = vmatpush2.bf16.msra.mxu0 0
      %366 = vmatprep.subr.bf16.mxu0 0
      %367 = vmatpush2.bf16.msra.mxu0 0
      %368 = vmatprep.subr.bf16.mxu0 0
      %369 = vmatpush2.bf16.msra.mxu0 0
      %370 = vmatprep.mubr.bf16.mxu0 0
      %371 = vmatmul.mubr.bf16.gmra.mxu0 %v266
      %v372 = vpop.f32.mrf.mxu0
      %v373 = vadd.f32 %v288, %v372
      %v374 = vpop.f32.mrf.mxu0
      %v375 = vpop.f32.mrf.mxu0
      %v376 = vpop.f32.mrf.mxu0
      %377 = vdwg.mxu0
      %v378 = vld [vmem:[%s259] sm:$0xff]
      %v379 = vadd.f32 %v373, %v378
      %380 = vadd.xlane.f32.xlu0 %v379
      %v381 = vpop.xlane.xlu0 %380
      %v382 = vrcp.pop 128.0
      %v383 = vmul.f32 %v381, %v382
      %v384 = vsub.f32 %v379, %v383
      %v385 = vmul.f32 %v384, %v384
      %386 = vadd.xlane.f32.xlu0 %v385
      %v387 = vpop.xlane.xlu0 %386
      %v388 = vmul.f32 %v387, %v382
      %v389 = vadd.f32 %v388, 1e-12
      %v390 = vrsqrt.pop %v389
      %v391 = vmul.f32 %v384, %v390
      %v392 = vld [vmem:[%s4] sm:$0x1]
      %v394 = vlaneseq
      %v395 = vshrl.u32 %v394, 7
      %v396 = vsub.s32 0, %v395
      %v397 = vrot.slane %v392, %v396
      %v399 = vmul.f32 %v391, %v397
      %v400 = vld [vmem:[%s5] sm:$0x1]
      %v402 = vlaneseq
      %v403 = vshrl.u32 %v402, 7
      %v404 = vsub.s32 0, %v403
      %v405 = vrot.slane %v400, %v404
      %v407 = vadd.f32 %v399, %v405
      %408 = vst [vmem:[%s263] sm:$0xff] %v407
      %p409 = scmp.lt.s32.totalorder %s17, 1
      %s410 = scalar_select %p409, %s17, 1
      %s411 = smul.addr %s410, 8
      %s412 = scalar_lea.vmem %s6, %s411
      // Predicated region
      $region45: #{forward.15} parent=43 // pred_check
        %p413 = pneg %p171
      $region46: #{forward.15} parent=43 // pred_check_branch
        %415 = sbr.rel (%p413) target = $region48
      $region47: #{forward.15} parent=43 // pred_region
        _
      $region48: #{forward.15} parent=43 // pred_fallthru
        _
    $region44: #{forward.15} parent=5 // pred_fallthru
      _
    %p416 = scmp.le.s32.totalorder 2, %s12
    // Predicated region
    $region49: #{forward.15} parent=5 // pred_check
      %p417 = pneg %p416
    $region50: #{forward.15} parent=5 // pred_check_branch
      %419 = sbr.rel (%p417) target = $region52
    $region51: #{forward.15} parent=5 // pred_region
      %s420 = ssub.s32 %s12, 2
      // Predicated region
      $region53: #{forward.15} parent=51 // pred_check
        %p421 = pneg %p177
      $region54: #{forward.15} parent=51 // pred_check_branch
        %423 = sbr.rel (%p421) target = $region56
      $region55: #{forward.15} parent=51 // pred_region
        %p424 = scmp.lt.s32.totalorder %s18, 1
        %s425 = scalar_select %p424, %s18, 1
        %s426 = smul.addr %s425, 8
        %s427 = scalar_lea.vmem %s6, %s426
      $region56: #{forward.15} parent=51 // pred_fallthru
        _
    $region52: #{forward.15} parent=5 // pred_fallthru
      _
  $region6: #{forward.15} parent=0 // loop_footer
    %s16 = sadd.s32 1, %s12
  $region7: #{forward.15} parent=0 // loop_footer_branch
    %11 = sbr.rel target = $region3
  $region8: #{forward.15} parent=0 // loop_exit
    _

// kernel: forward.13
$region0: #{forward.13}
  #allocation0 [shape = 'u32[]', space=smem, size = 0x4, offset = 0x4, fixed_abs, tag = 'smem constant byte address 0x4 - core index']
  #allocation1 [shape = 'u32[144,128]{1,0:T(1,128)}', space=vmem, size = 0x12000, scoped, tag = 'internal scratch']
  %s0 = inlined_call_operand.vmem [shape: f32[16,128], index: 0, kind: input, shape index: {}]
  %s1 = inlined_call_operand.vmem [shape: bf16[128,384], index: 1, kind: input, shape index: {}]
  %s2 = inlined_call_operand.vmem [shape: f32[1,384], index: 2, kind: input, shape index: {}]
  %s3 = inlined_call_operand.vmem [shape: f32[16,384], index: 3, kind: output, shape index: {}]
  %s4 = sld [smem:[#allocation0]]
  $region45: #{forward.13} parent=0
    _
  %s6 = ssub.s32 1, %s4
  %s7 = scalar_select 0, %s6, %s4
  loop: start=0, step=1, limit=4
  $region2: #{forward.13} parent=0 // loop_pre_header
    _
  $region3: #{forward.13} parent=0 // loop_header
    %s9 = sphi 0, %s13
    %p10 = scmp.ge.s32.totalorder %s9, 4
    %s19 = sphi 0, %s21
    %s22 = sphi 0, %s19
    %s23 = sphi 0, %s22
    %s39 = sphi 0, %s23
    %s43 = sphi 0, %s43
    %s45 = sphi 0, %s43
    %s46 = sphi 0, %s45
    %s60 = sphi 0, %s46
    %s64 = sphi 0, %s64
    %s66 = sphi 0, %s64
    %s67 = sphi 0, %s66
    %s81 = sphi 0, %s67
    %s87 = sphi 0, %s89
    %s90 = sphi 0, %s87
    %s91 = sphi 0, %s90
    %s107 = sphi 0, %s91
  $region4: #{forward.13} parent=0 // loop_header_branch
    %12 = sbr.rel (%p10) target = $region8
  $region5: #{forward.13} parent=0 // loop_body
    %s14 = ssub.s32 %s9, 1
    %s15 = ssub.s32 %s9, 2
    %s16 = sadd.s32 %s9, 1
    %s17 = ssub.s32 %s9, %s16
    %p18 = scmp.eq.s32.totalorder %s17, 0
    %s20 = sadd.s32 %s19, 1
    %s21 = scalar_select %p18, %s19, %s20
    %p24 = pneg %p18
    %p25 = scmp.eq.s32.totalorder %s9, 1
    %p26 = por %p24, %p25
    %p27 = scmp.ne.s32.totalorder %s19, %s22
    %p28 = scmp.eq.s32.totalorder %s9, 0
    %p29 = por %p27, %p28
    %p30 = scmp.ne.s32.totalorder %s19, %s22
    %p31 = scmp.eq.s32.totalorder %s14, 1
    %p32 = por %p30, %p31
    %p33 = scmp.ne.s32.totalorder %s22, %s23
    %p34 = scmp.eq.s32.totalorder %s14, 0
    %p35 = por %p33, %p34
    %p36 = scmp.ne.s32.totalorder %s22, %s23
    %p37 = scmp.eq.s32.totalorder %s15, 1
    %p38 = por %p36, %p37
    %p40 = scmp.ne.s32.totalorder %s23, %s39
    %p41 = scmp.eq.s32.totalorder %s15, 0
    %p42 = por %p40, %p41
    %s44 = sadd.s32 %s43, 1
    %p47 = scmp.eq.s32.totalorder %s9, 1
    %p48 = scmp.ne.s32.totalorder %s43, %s45
    %p49 = scmp.eq.s32.totalorder %s9, 0
    %p50 = por %p48, %p49
    %p51 = scmp.ne.s32.totalorder %s43, %s45
    %p52 = scmp.eq.s32.totalorder %s14, 1
    %p53 = por %p51, %p52
    %p54 = scmp.ne.s32.totalorder %s45, %s46
    %p55 = scmp.eq.s32.totalorder %s14, 0
    %p56 = por %p54, %p55
    %p57 = scmp.ne.s32.totalorder %s45, %s46
    %p58 = scmp.eq.s32.totalorder %s15, 1
    %p59 = por %p57, %p58
    %p61 = scmp.ne.s32.totalorder %s46, %s60
    %p62 = scmp.eq.s32.totalorder %s15, 0
    %p63 = por %p61, %p62
    %s65 = sadd.s32 %s64, 1
    %p68 = scmp.eq.s32.totalorder %s9, 1
    %p69 = scmp.ne.s32.totalorder %s64, %s66
    %p70 = scmp.eq.s32.totalorder %s9, 0
    %p71 = por %p69, %p70
    %p72 = scmp.ne.s32.totalorder %s64, %s66
    %p73 = scmp.eq.s32.totalorder %s14, 1
    %p74 = por %p72, %p73
    %p75 = scmp.ne.s32.totalorder %s66, %s67
    %p76 = scmp.eq.s32.totalorder %s14, 0
    %p77 = por %p75, %p76
    %p78 = scmp.ne.s32.totalorder %s66, %s67
    %p79 = scmp.eq.s32.totalorder %s15, 1
    %p80 = por %p78, %p79
    %p82 = scmp.ne.s32.totalorder %s67, %s81
    %p83 = scmp.eq.s32.totalorder %s15, 0
    %p84 = por %p82, %p83
    %s85 = ssub.s32 %s9, %s16
    %p86 = scmp.eq.s32.totalorder %s85, 0
    %s88 = sadd.s32 %s87, 1
    %s89 = scalar_select %p86, %s87, %s88
    %p92 = pneg %p86
    %p93 = scmp.eq.s32.totalorder %s9, 1
    %p94 = por %p92, %p93
    %p95 = scmp.ne.s32.totalorder %s87, %s90
    %p96 = scmp.eq.s32.totalorder %s9, 0
    %p97 = por %p95, %p96
    %p98 = scmp.ne.s32.totalorder %s87, %s90
    %p99 = scmp.eq.s32.totalorder %s14, 1
    %p100 = por %p98, %p99
    %p101 = scmp.ne.s32.totalorder %s90, %s91
    %p102 = scmp.eq.s32.totalorder %s14, 0
    %p103 = por %p101, %p102
    %p104 = scmp.ne.s32.totalorder %s90, %s91
    %p105 = scmp.eq.s32.totalorder %s15, 1
    %p106 = por %p104, %p105
    %p108 = scmp.ne.s32.totalorder %s91, %s107
    %p109 = scmp.eq.s32.totalorder %s15, 0
    %p110 = por %p108, %p109
    %p111 = scmp.le.s32.totalorder 1, %s9
    %p112 = scmp.lt.s32.totalorder %s9, 3
    %p113 = pnand %p111, %p112
    %p114 = pneg %p113
    // Predicated region
    $region9: #{forward.13} parent=5 // pred_check
      _
    $region10: #{forward.13} parent=5 // pred_check_branch
      %116 = sbr.rel (%p113) target = $region12
    $region11: #{forward.13} parent=5 // pred_region
      %s117 = ssub.s32 %s9, 1
      // Predicated region
      $region13: #{forward.13} parent=11 // pred_check
        %p118 = pneg %p56
      $region14: #{forward.13} parent=11 // pred_check_branch
        %120 = sbr.rel (%p118) target = $region16
      $region15: #{forward.13} parent=11 // pred_region
        _
      $region16: #{forward.13} parent=11 // pred_fallthru
        _
      // Predicated region
      $region17: #{forward.13} parent=11 // pred_check
        %p121 = pneg %p77
      $region18: #{forward.13} parent=11 // pred_check_branch
        %123 = sbr.rel (%p121) target = $region20
      $region19: #{forward.13} parent=11 // pred_region
        _
      $region20: #{forward.13} parent=11 // pred_fallthru
        _
    $region12: #{forward.13} parent=5 // pred_fallthru
      _
    %p124 = scmp.lt.s32.totalorder %s9, 2
    // Predicated region
    $region21: #{forward.13} parent=5 // pred_check
      %p125 = pneg %p124
    $region22: #{forward.13} parent=5 // pred_check_branch
      %127 = sbr.rel (%p125) target = $region24
    $region23: #{forward.13} parent=5 // pred_region
      // Predicated region
      $region25: #{forward.13} parent=23 // pred_check
        %p128 = pneg %p29
      $region26: #{forward.13} parent=23 // pred_check_branch
        %130 = sbr.rel (%p128) target = $region28
      $region27: #{forward.13} parent=23 // pred_region
        %p131 = scmp.lt.s32.totalorder %s9, 1
        %s132 = scalar_select %p131, %s9, 1
        %s133 = smul.addr %s132, 8
        %s134 = scalar_lea.vmem %s0, %s133
      $region28: #{forward.13} parent=23 // pred_fallthru
        _
    $region24: #{forward.13} parent=5 // pred_fallthru
      _
    %p135 = scmp.le.s32.totalorder 1, %s9
    %p136 = scmp.lt.s32.totalorder %s9, 3
    %p137 = pnand %p135, %p136
    %p138 = pneg %p137
    // Predicated region
    $region29: #{forward.13} parent=5 // pred_check
      _
    $region30: #{forward.13} parent=5 // pred_check_branch
      %140 = sbr.rel (%p137) target = $region32
    $region31: #{forward.13} parent=5 // pred_region
      %s141 = ssub.s32 %s9, 1
      %p142 = scmp.lt.s32.totalorder %s14, 1
      %s143 = scalar_select %p142, %s14, 1
      %s144 = smul.addr %s143, 8
      %s145 = scalar_lea.vmem %s0, %s144
      %p146 = pneg %p35
      %p147 = pneg %p32
      %p148 = pneg %p56
      %p149 = pneg %p53
      %p150 = pneg %p77
      %p151 = pneg %p74
      %p152 = pneg %p103
      %p153 = pneg %p100
      %p154 = scmp.lt.s32.totalorder %s14, 1
      %s155 = scalar_select %p154, %s14, 1
      %s156 = smul.addr %s155, 3
      %s157 = smul.addr %s156, 8
      %s158 = scalar_lea.vmem %s3, %s157
      %p159 = scmp.lt.s32.totalorder %s14, 1
      %s160 = scalar_select %p159, %s14, 1
      %s161 = smul.addr %s160, 8
      %s162 = scalar_lea.vmem %s0, %s161
      %p163 = scmp.lt.s32.totalorder %s14, 1
      %s164 = scalar_select %p163, %s14, 1
      %s165 = smul.addr %s164, 3
      %s166 = smul.addr %s165, 8
      %s167 = scalar_lea.vmem %s3, %s166
      %v169 = vld [vmem:[%s162] sm:$0xff]
      %v170 = vpack.c.bf16 %v169, %v169
      %v171 = vld [vmem:[%s1] sm:$0xff]
      %v172 = vld [vmem:[%s1 + $0x8] sm:$0xf]
      %v173 = vld [vmem:[%s1 + $0xc] sm:$0xff]
      %v174 = vld [vmem:[%s1 + $0x14] sm:$0xf]
      %v175 = vld [vmem:[%s1 + $0x18] sm:$0xff]
      %v176 = vld [vmem:[%s1 + $0x20] sm:$0xf]
      %v177 = vld [vmem:[%s1 + $0x24] sm:$0xff]
      %v178 = vld [vmem:[%s1 + $0x2c] sm:$0xf]
      %v179 = vld [vmem:[%s1 + $0x30] sm:$0xff]
      %v180 = vld [vmem:[%s1 + $0x38] sm:$0xf]
      %v181 = vld [vmem:[%s1 + $0x3c] sm:$0xff]
      %v182 = vld [vmem:[%s1 + $0x44] sm:$0xf]
      %v183 = vld [vmem:[%s1 + $0x48] sm:$0xff]
      %v184 = vld [vmem:[%s1 + $0x50] sm:$0xf]
      %v185 = vld [vmem:[%s1 + $0x54] sm:$0xff]
      %v186 = vld [vmem:[%s1 + $0x5c] sm:$0xf]
      %v187 = vld [vmem:[%s1 + $0x60] sm:$0xff]
      %v188 = vld [vmem:[%s1 + $0x68] sm:$0xf]
      %v189 = vld [vmem:[%s1 + $0x6c] sm:$0xff]
      %v190 = vld [vmem:[%s1 + $0x74] sm:$0xf]
      %v191 = vld [vmem:[%s1 + $0x78] sm:$0xff]
      %v192 = vld [vmem:[%s1 + $0x80] sm:$0xf]
      %v193 = vld [vmem:[%s1 + $0x84] sm:$0xff]
      %v194 = vld [vmem:[%s1 + $0x8c] sm:$0xf]
      %v195 = vld [vmem:[%s1 + $0x90] sm:$0xff]
      %v196 = vld [vmem:[%s1 + $0x98] sm:$0xf]
      %v197 = vld [vmem:[%s1 + $0x9c] sm:$0xff]
      %v198 = vld [vmem:[%s1 + $0xa4] sm:$0xf]
      %v199 = vld [vmem:[%s1 + $0xa8] sm:$0xff]
      %v200 = vld [vmem:[%s1 + $0xb0] sm:$0xf]
      %v201 = vld [vmem:[%s1 + $0xb4] sm:$0xff]
      %v202 = vld [vmem:[%s1 + $0xbc] sm:$0xf]
      %v203 = vld [vmem:[%s2] sm:$0x7]
      %v205 = vlaneseq
      %v206 = vshrl.u32 %v205, 7
      %v207 = vsub.s32 0, %v206
      %v208 = vrot.slane %v203, %v207
      %v209 = vlaneseq
      %v210 = vshrl.u32 %v209, 7
      %v211 = vsub.s32 1, %v210
      %v212 = vrot.slane %v203, %v211
      %v213 = vlaneseq
      %v214 = vshrl.u32 %v213, 7
      %v215 = vsub.s32 2, %v214
      %v216 = vrot.slane %v203, %v215
      %v252 = vunpack.c.l.b16 %v171
      %v253 = vunpack.c.h.b16 %v171
      %v254 = vunpack.c.l.b16 %v172
      %v255 = vunpack.c.l.b16 %v173
      %v256 = vunpack.c.h.b16 %v173
      %v257 = vunpack.c.l.b16 %v174
      %v258 = vunpack.c.l.b16 %v175
      %v259 = vunpack.c.h.b16 %v175
      %v260 = vunpack.c.l.b16 %v176
      %v261 = vunpack.c.l.b16 %v177
      %v262 = vunpack.c.h.b16 %v177
      %v263 = vunpack.c.l.b16 %v178
      %v264 = vunpack.c.l.b16 %v179
      %v265 = vunpack.c.h.b16 %v179
      %v266 = vunpack.c.l.b16 %v180
      %v267 = vunpack.c.l.b16 %v181
      %v268 = vunpack.c.h.b16 %v181
      %v269 = vunpack.c.l.b16 %v182
      %v270 = vunpack.c.l.b16 %v183
      %v271 = vunpack.c.h.b16 %v183
      %v272 = vunpack.c.l.b16 %v184
      %v273 = vunpack.c.l.b16 %v185
      %v274 = vunpack.c.h.b16 %v185
      %v275 = vunpack.c.l.b16 %v186
      %v276 = vunpack.c.l.b16 %v187
      %v277 = vunpack.c.h.b16 %v187
      %v278 = vunpack.c.l.b16 %v188
      %v279 = vunpack.c.l.b16 %v189
      %v280 = vunpack.c.h.b16 %v189
      %v281 = vunpack.c.l.b16 %v190
      %v282 = vunpack.c.l.b16 %v191
      %v283 = vunpack.c.h.b16 %v191
      %v284 = vunpack.c.l.b16 %v192
      %v285 = vunpack.c.l.b16 %v193
      %v286 = vunpack.c.h.b16 %v193
      %v287 = vunpack.c.l.b16 %v194
      %v288 = vunpack.c.l.b16 %v195
      %v289 = vunpack.c.h.b16 %v195
      %v290 = vunpack.c.l.b16 %v196
      %v291 = vunpack.c.l.b16 %v197
      %v292 = vunpack.c.h.b16 %v197
      %v293 = vunpack.c.l.b16 %v198
      %v294 = vunpack.c.l.b16 %v199
      %v295 = vunpack.c.h.b16 %v199
      %v296 = vunpack.c.l.b16 %v200
      %v297 = vunpack.c.l.b16 %v201
      %v298 = vunpack.c.h.b16 %v201
      %v299 = vunpack.c.l.b16 %v202
      %v300 = vpack.c.b16 %v255, %v252
      %v301 = vpack.c.b16 %v256, %v253
      %v302 = vpack.c.b16 %v257, %v254
      %v303 = vpack.c.b16 %v261, %v258
      %v304 = vpack.c.b16 %v262, %v259
      %v305 = vpack.c.b16 %v263, %v260
      %v306 = vpack.c.b16 %v267, %v264
      %v307 = vpack.c.b16 %v268, %v265
      %v308 = vpack.c.b16 %v269, %v266
      %v309 = vpack.c.b16 %v273, %v270
      %v310 = vpack.c.b16 %v274, %v271
      %v311 = vpack.c.b16 %v275, %v272
      %v312 = vpack.c.b16 %v279, %v276
      %v313 = vpack.c.b16 %v280, %v277
      %v314 = vpack.c.b16 %v281, %v278
      %v315 = vpack.c.b16 %v285, %v282
      %v316 = vpack.c.b16 %v286, %v283
      %v317 = vpack.c.b16 %v287, %v284
      %v318 = vpack.c.b16 %v291, %v288
      %v319 = vpack.c.b16 %v292, %v289
      %v320 = vpack.c.b16 %v293, %v290
      %v321 = vpack.c.b16 %v297, %v294
      %v322 = vpack.c.b16 %v298, %v295
      %v323 = vpack.c.b16 %v299, %v296
      %348 = vmatprep.subr.bf16.mxu0 %v322
      %349 = vmatpush1.bf16.msra.mxu0 %v321
      %350 = vmatprep.subr.bf16.mxu0 %v319
      %351 = vmatpush1.bf16.msra.mxu0 %v318
      %352 = vmatprep.subr.bf16.mxu0 %v316
      %353 = vmatpush1.bf16.msra.mxu0 %v315
      %354 = vmatprep.subr.bf16.mxu0 %v313
      %355 = vmatpush1.bf16.msra.mxu0 %v312
      %356 = vmatprep.subr.bf16.mxu0 %v310
      %357 = vmatpush1.bf16.msra.mxu0 %v309
      %358 = vmatprep.subr.bf16.mxu0 %v307
      %359 = vmatpush1.bf16.msra.mxu0 %v306
      %360 = vmatprep.subr.bf16.mxu0 %v304
      %361 = vmatpush1.bf16.msra.mxu0 %v303
      %362 = vmatprep.subr.bf16.mxu0 %v301
      %363 = vmatpush1.bf16.msra.mxu0 %v300
      %364 = vmatprep.subr.bf16.mxu0 0
      %365 = vmatpush2.bf16.msra.mxu0 0
      %366 = vmatprep.subr.bf16.mxu0 0
      %367 = vmatpush2.bf16.msra.mxu0 0
      %368 = vmatprep.subr.bf16.mxu0 0
      %369 = vmatpush2.bf16.msra.mxu0 0
      %370 = vmatprep.subr.bf16.mxu0 0
      %371 = vmatpush2.bf16.msra.mxu0 0
      %372 = vmatprep.subr.bf16.mxu0 0
      %373 = vmatpush2.bf16.msra.mxu0 0
      %374 = vmatprep.subr.bf16.mxu0 0
      %375 = vmatpush2.bf16.msra.mxu0 0
      %376 = vmatprep.subr.bf16.mxu0 0
      %377 = vmatpush2.bf16.msra.mxu0 0
      %378 = vmatprep.subr.bf16.mxu0 0
      %379 = vmatpush2.bf16.msra.mxu0 0
      %380 = vmatprep.mubr.bf16.mxu0 0
      %381 = vmatmul.mubr.bf16.gmra.mxu0 %v170
      %v382 = vpop.f32.mrf.mxu0
      %v383 = vadd.f32 %v208, %v382
      %v384 = vpop.f32.mrf.mxu0
      %v385 = vadd.f32 %v212, %v384
      %v386 = vpop.f32.mrf.mxu0
      %v387 = vpop.f32.mrf.mxu0
      %388 = vdwg.mxu0
      %389 = vmatprep.subr.bf16.mxu0 0
      %390 = vmatpush1.bf16.msra.mxu0 %v323
      %391 = vmatprep.subr.bf16.mxu0 0
      %392 = vmatpush1.bf16.msra.mxu0 %v320
      %393 = vmatprep.subr.bf16.mxu0 0
      %394 = vmatpush1.bf16.msra.mxu0 %v317
      %395 = vmatprep.subr.bf16.mxu0 0
      %396 = vmatpush1.bf16.msra.mxu0 %v314
      %397 = vmatprep.subr.bf16.mxu0 0
      %398 = vmatpush1.bf16.msra.mxu0 %v311
      %399 = vmatprep.subr.bf16.mxu0 0
      %400 = vmatpush1.bf16.msra.mxu0 %v308
      %401 = vmatprep.subr.bf16.mxu0 0
      %402 = vmatpush1.bf16.msra.mxu0 %v305
      %403 = vmatprep.subr.bf16.mxu0 0
      %404 = vmatpush1.bf16.msra.mxu0 %v302
      %405 = vmatprep.subr.bf16.mxu0 0
      %406 = vmatpush2.bf16.msra.mxu0 0
      %407 = vmatprep.subr.bf16.mxu0 0
      %408 = vmatpush2.bf16.msra.mxu0 0
      %409 = vmatprep.subr.bf16.mxu0 0
      %410 = vmatpush2.bf16.msra.mxu0 0
      %411 = vmatprep.subr.bf16.mxu0 0
      %412 = vmatpush2.bf16.msra.mxu0 0
      %413 = vmatprep.subr.bf16.mxu0 0
      %414 = vmatpush2.bf16.msra.mxu0 0
      %415 = vmatprep.subr.bf16.mxu0 0
      %416 = vmatpush2.bf16.msra.mxu0 0
      %417 = vmatprep.subr.bf16.mxu0 0
      %418 = vmatpush2.bf16.msra.mxu0 0
      %419 = vmatprep.subr.bf16.mxu0 0
      %420 = vmatpush2.bf16.msra.mxu0 0
      %421 = vmatprep.mubr.bf16.mxu0 0
      %422 = vmatmul.mubr.bf16.gmra.mxu0 %v170
      %v423 = vpop.f32.mrf.mxu0
      %v424 = vadd.f32 %v216, %v423
      %v425 = vpop.f32.mrf.mxu0
      %v426 = vpop.f32.mrf.mxu0
      %v427 = vpop.f32.mrf.mxu0
      %428 = vdwg.mxu0
      %429 = vst [vmem:[%s167] sm:$0xff] %v383
      %430 = vst [vmem:[%s167 + $0x8] sm:$0xff] %v385
      %431 = vst [vmem:[%s167 + $0x10] sm:$0xff] %v424
      %p432 = scmp.lt.s32.totalorder %s14, 1
      %s433 = scalar_select %p432, %s14, 1
      %s434 = smul.addr %s433, 3
      %s435 = smul.addr %s434, 8
      %s436 = scalar_lea.vmem %s3, %s435
      // Predicated region
      $region33: #{forward.13} parent=31 // pred_check
        %p437 = pneg %p100
      $region34: #{forward.13} parent=31 // pred_check_branch
        %439 = sbr.rel (%p437) target = $region36
      $region35: #{forward.13} parent=31 // pred_region
        _
      $region36: #{forward.13} parent=31 // pred_fallthru
        _
    $region32: #{forward.13} parent=5 // pred_fallthru
      _
    %p440 = scmp.le.s32.totalorder 2, %s9
    // Predicated region
    $region37: #{forward.13} parent=5 // pred_check
      %p441 = pneg %p440
    $region38: #{forward.13} parent=5 // pred_check_branch
      %443 = sbr.rel (%p441) target = $region40
    $region39: #{forward.13} parent=5 // pred_region
      %s444 = ssub.s32 %s9, 2
      // Predicated region
      $region41: #{forward.13} parent=39 // pred_check
        %p445 = pneg %p106
      $region42: #{forward.13} parent=39 // pred_check_branch
        %447 = sbr.rel (%p445) target = $region44
      $region43: #{forward.13} parent=39 // pred_region
        %p448 = scmp.lt.s32.totalorder %s15, 1
        %s449 = scalar_select %p448, %s15, 1
        %s450 = smul.addr %s449, 3
        %s451 = smul.addr %s450, 8
        %s452 = scalar_lea.vmem %s3, %s451
      $region44: #{forward.13} parent=39 // pred_fallthru
        _
    $region40: #{forward.13} parent=5 // pred_fallthru
      _
  $region6: #{forward.13} parent=0 // loop_footer
    %s13 = sadd.s32 1, %s9
  $region7: #{forward.13} parent=0 // loop_footer_branch
    %8 = sbr.rel target = $region3
  $region8: #{forward.13} parent=0 // loop_exit
    _

// kernel: forward.14
$region0: #{forward.14}
  #allocation0 [shape = 'u32[]', space=smem, size = 0x4, offset = 0x4, fixed_abs, tag = 'smem constant byte address 0x4 - core index']
  #allocation1 [shape = 'u32[144,128]{1,0:T(1,128)}', space=vmem, size = 0x12000, scoped, tag = 'internal scratch']
  %s0 = inlined_call_operand.vmem [shape: f32[2,8,384], index: 0, kind: input, shape index: {}]
  %s1 = inlined_call_operand.vmem [shape: f32[2,1,8], index: 1, kind: input, shape index: {}]
  %s2 = inlined_call_operand.vmem [shape: f32[2,8,128], index: 2, kind: output, shape index: {}]
  %s3 = sld [smem:[#allocation0]]
  $region41: #{forward.14} parent=0
    _
  %s5 = ssub.s32 1, %s3
  %s6 = scalar_select 0, %s5, %s3
  loop: start=0, step=1, limit=4
  $region2: #{forward.14} parent=0 // loop_pre_header
    _
  $region3: #{forward.14} parent=0 // loop_header
    %s8 = sphi 0, %s12
    %p9 = scmp.ge.s32.totalorder %s8, 4
    %s18 = sphi 0, %s20
    %s21 = sphi 0, %s18
    %s22 = sphi 0, %s21
    %s38 = sphi 0, %s22
    %s44 = sphi 0, %s46
    %s47 = sphi 0, %s44
    %s48 = sphi 0, %s47
    %s64 = sphi 0, %s48
    %s70 = sphi 0, %s72
    %s73 = sphi 0, %s70
    %s74 = sphi 0, %s73
    %s90 = sphi 0, %s74
  $region4: #{forward.14} parent=0 // loop_header_branch
    %11 = sbr.rel (%p9) target = $region8
  $region5: #{forward.14} parent=0 // loop_body
    %s13 = ssub.s32 %s8, 1
    %s14 = ssub.s32 %s8, 2
    %s15 = sadd.s32 %s8, 1
    %s16 = ssub.s32 %s8, %s15
    %p17 = scmp.eq.s32.totalorder %s16, 0
    %s19 = sadd.s32 %s18, 1
    %s20 = scalar_select %p17, %s18, %s19
    %p23 = pneg %p17
    %p24 = scmp.eq.s32.totalorder %s8, 1
    %p25 = por %p23, %p24
    %p26 = scmp.ne.s32.totalorder %s18, %s21
    %p27 = scmp.eq.s32.totalorder %s8, 0
    %p28 = por %p26, %p27
    %p29 = scmp.ne.s32.totalorder %s18, %s21
    %p30 = scmp.eq.s32.totalorder %s13, 1
    %p31 = por %p29, %p30
    %p32 = scmp.ne.s32.totalorder %s21, %s22
    %p33 = scmp.eq.s32.totalorder %s13, 0
    %p34 = por %p32, %p33
    %p35 = scmp.ne.s32.totalorder %s21, %s22
    %p36 = scmp.eq.s32.totalorder %s14, 1
    %p37 = por %p35, %p36
    %p39 = scmp.ne.s32.totalorder %s22, %s38
    %p40 = scmp.eq.s32.totalorder %s14, 0
    %p41 = por %p39, %p40
    %s42 = ssub.s32 %s8, %s15
    %p43 = scmp.eq.s32.totalorder %s42, 0
    %s45 = sadd.s32 %s44, 1
    %s46 = scalar_select %p43, %s44, %s45
    %p49 = pneg %p43
    %p50 = scmp.eq.s32.totalorder %s8, 1
    %p51 = por %p49, %p50
    %p52 = scmp.ne.s32.totalorder %s44, %s47
    %p53 = scmp.eq.s32.totalorder %s8, 0
    %p54 = por %p52, %p53
    %p55 = scmp.ne.s32.totalorder %s44, %s47
    %p56 = scmp.eq.s32.totalorder %s13, 1
    %p57 = por %p55, %p56
    %p58 = scmp.ne.s32.totalorder %s47, %s48
    %p59 = scmp.eq.s32.totalorder %s13, 0
    %p60 = por %p58, %p59
    %p61 = scmp.ne.s32.totalorder %s47, %s48
    %p62 = scmp.eq.s32.totalorder %s14, 1
    %p63 = por %p61, %p62
    %p65 = scmp.ne.s32.totalorder %s48, %s64
    %p66 = scmp.eq.s32.totalorder %s14, 0
    %p67 = por %p65, %p66
    %s68 = ssub.s32 %s8, %s15
    %p69 = scmp.eq.s32.totalorder %s68, 0
    %s71 = sadd.s32 %s70, 1
    %s72 = scalar_select %p69, %s70, %s71
    %p75 = pneg %p69
    %p76 = scmp.eq.s32.totalorder %s8, 1
    %p77 = por %p75, %p76
    %p78 = scmp.ne.s32.totalorder %s70, %s73
    %p79 = scmp.eq.s32.totalorder %s8, 0
    %p80 = por %p78, %p79
    %p81 = scmp.ne.s32.totalorder %s70, %s73
    %p82 = scmp.eq.s32.totalorder %s13, 1
    %p83 = por %p81, %p82
    %p84 = scmp.ne.s32.totalorder %s73, %s74
    %p85 = scmp.eq.s32.totalorder %s13, 0
    %p86 = por %p84, %p85
    %p87 = scmp.ne.s32.totalorder %s73, %s74
    %p88 = scmp.eq.s32.totalorder %s14, 1
    %p89 = por %p87, %p88
    %p91 = scmp.ne.s32.totalorder %s74, %s90
    %p92 = scmp.eq.s32.totalorder %s14, 0
    %p93 = por %p91, %p92
    %p94 = scmp.le.s32.totalorder 1, %s8
    %p95 = scmp.lt.s32.totalorder %s8, 3
    %p96 = pnand %p94, %p95
    %p97 = pneg %p96
    // Predicated region
    $region9: #{forward.14} parent=5 // pred_check
      _
    $region10: #{forward.14} parent=5 // pred_check_branch
      %99 = sbr.rel (%p96) target = $region12
    $region11: #{forward.14} parent=5 // pred_region
      %s100 = ssub.s32 %s8, 1
    $region12: #{forward.14} parent=5 // pred_fallthru
      _
    %p101 = scmp.lt.s32.totalorder %s8, 2
    // Predicated region
    $region13: #{forward.14} parent=5 // pred_check
      %p102 = pneg %p101
    $region14: #{forward.14} parent=5 // pred_check_branch
      %104 = sbr.rel (%p102) target = $region16
    $region15: #{forward.14} parent=5 // pred_region
      // Predicated region
      $region17: #{forward.14} parent=15 // pred_check
        %p105 = pneg %p28
      $region18: #{forward.14} parent=15 // pred_check_branch
        %107 = sbr.rel (%p105) target = $region20
      $region19: #{forward.14} parent=15 // pred_region
        %p108 = scmp.lt.s32.totalorder %s8, 1
        %s109 = scalar_select %p108, %s8, 1
        %s110 = smul.addr %s109, 3
        %s111 = smul.addr %s110, 8
        %s112 = scalar_lea.vmem %s0, %s111
      $region20: #{forward.14} parent=15 // pred_fallthru
        _
      // Predicated region
      $region21: #{forward.14} parent=15 // pred_check
        %p113 = pneg %p54
      $region22: #{forward.14} parent=15 // pred_check_branch
        %115 = sbr.rel (%p113) target = $region24
      $region23: #{forward.14} parent=15 // pred_region
        %p116 = scmp.lt.s32.totalorder %s8, 1
        %s117 = scalar_select %p116, %s8, 1
        %s118 = scalar_lea.vmem %s1, %s117
      $region24: #{forward.14} parent=15 // pred_fallthru
        _
    $region16: #{forward.14} parent=5 // pred_fallthru
      _
    %p119 = scmp.le.s32.totalorder 1, %s8
    %p120 = scmp.lt.s32.totalorder %s8, 3
    %p121 = pnand %p119, %p120
    %p122 = pneg %p121
    // Predicated region
    $region25: #{forward.14} parent=5 // pred_check
      _
    $region26: #{forward.14} parent=5 // pred_check_branch
      %124 = sbr.rel (%p121) target = $region28
    $region27: #{forward.14} parent=5 // pred_region
      %s125 = ssub.s32 %s8, 1
      %p126 = scmp.lt.s32.totalorder %s13, 1
      %s127 = scalar_select %p126, %s13, 1
      %s128 = smul.addr %s127, 3
      %s129 = smul.addr %s128, 8
      %s130 = scalar_lea.vmem %s0, %s129
      %p131 = pneg %p34
      %p132 = pneg %p31
      %p133 = scmp.lt.s32.totalorder %s13, 1
      %s134 = scalar_select %p133, %s13, 1
      %s135 = scalar_lea.vmem %s1, %s134
      %p136 = pneg %p60
      %p137 = pneg %p57
      %p138 = pneg %p86
      %p139 = pneg %p83
      %p140 = scmp.lt.s32.totalorder %s13, 1
      %s141 = scalar_select %p140, %s13, 1
      %s142 = smul.addr %s141, 8
      %s143 = scalar_lea.vmem %s2, %s142
      %p144 = scmp.lt.s32.totalorder %s13, 1
      %s145 = scalar_select %p144, %s13, 1
      %s146 = smul.addr %s145, 3
      %s147 = smul.addr %s146, 8
      %s148 = scalar_lea.vmem %s0, %s147
      %p149 = scmp.lt.s32.totalorder %s13, 1
      %s150 = scalar_select %p149, %s13, 1
      %s151 = scalar_lea.vmem %s1, %s150
      %p152 = scmp.lt.s32.totalorder %s13, 1
      %s153 = scalar_select %p152, %s13, 1
      %s154 = smul.addr %s153, 8
      %s155 = scalar_lea.vmem %s2, %s154
      %v157 = vld [vmem:[%s148] sm:$0xff]
      %v158 = vld [vmem:[%s148 + $0x8] sm:$0xff]
      %v159 = vld [vmem:[%s148 + $0x10] sm:$0xff]
      %v160 = vld [vmem:[%s151] sm:$0x1]
      %v161 = vpack.c.bf16 %v157, %v157
      %v162 = vpack.c.bf16 %v158, %v158
      %v163 = vpack.c.bf16 %v159, %v159
      %vm164 = vcmask 261120
      %v166 = vsel %vm164, %v161, 0
      %v169 = vsel %vm164, %v162, 0
      %171 = vmatprep.subr.bf16.mxu0 0
      %172 = vmatpush1.bf16.xpose.msra.mxu0 0
      %173 = vmatprep.subr.bf16.mxu0 0
      %174 = vmatpush1.bf16.xpose.msra.mxu0 0
      %175 = vmatprep.subr.bf16.mxu0 0
      %176 = vmatpush1.bf16.xpose.msra.mxu0 0
      %177 = vmatprep.subr.bf16.mxu0 0
      %178 = vmatpush1.bf16.xpose.msra.mxu0 0
      %179 = vmatprep.subr.bf16.mxu0 0
      %180 = vmatpush1.bf16.xpose.msra.mxu0 0
      %181 = vmatprep.subr.bf16.mxu0 0
      %182 = vmatpush1.bf16.xpose.msra.mxu0 0
      %183 = vmatprep.subr.bf16.mxu0 0
      %184 = vmatpush1.bf16.xpose.msra.mxu0 0
      %185 = vmatprep.subr.bf16.mxu0 0
      %186 = vmatpush1.bf16.xpose.msra.mxu0 %v169
      %187 = vmatprep.subr.bf16.mxu0 0
      %188 = vmatpush2.bf16.xpose.msra.mxu0 0
      %189 = vmatprep.subr.bf16.mxu0 0
      %190 = vmatpush2.bf16.xpose.msra.mxu0 0
      %191 = vmatprep.subr.bf16.mxu0 0
      %192 = vmatpush2.bf16.xpose.msra.mxu0 0
      %193 = vmatprep.subr.bf16.mxu0 0
      %194 = vmatpush2.bf16.xpose.msra.mxu0 0
      %195 = vmatprep.subr.bf16.mxu0 0
      %196 = vmatpush2.bf16.xpose.msra.mxu0 0
      %197 = vmatprep.subr.bf16.mxu0 0
      %198 = vmatpush2.bf16.xpose.msra.mxu0 0
      %199 = vmatprep.subr.bf16.mxu0 0
      %200 = vmatpush2.bf16.xpose.msra.mxu0 0
      %201 = vmatprep.subr.bf16.mxu0 0
      %202 = vmatpush2.bf16.xpose.msra.mxu0 0
      %203 = vmatprep.mubr.bf16.mxu0 0
      %204 = vmatmul.mubr.bf16.gmra.mxu0 %v166
      %v205 = vpop.f32.mrf.mxu0
      %v206 = vadd.f32 0.0, %v205
      %v207 = vpop.f32.mrf.mxu0
      %v208 = vpop.f32.mrf.mxu0
      %v209 = vpop.f32.mrf.mxu0
      %210 = vdwg.mxu0
      %v211 = vmul.f32 %v206, 0.17677669
      %v213 = vlaneseq
      %v214 = vshrl.u32 %v213, 7
      %v215 = vsub.s32 0, %v214
      %v216 = vrot.slane %v160, %v215
      %v218 = vadd.f32 %v211, %v216
      %vm219 = vcmask 64512
      %v220 = vsel %vm219, %v218, -inf
      %221 = vmax.xlane.f32.xlu0 %v220
      %v222 = vpop.xlane.xlu0 %221
      %v223 = vsub.f32 %v218, %v222
      %v224 = vmul.f32 %v223, 1.442695
      %v225 = vpow.pop %v224
      %v226 = vsel %vm219, %v225, 0.0
      %227 = vadd.xlane.f32.xlu0 %v226
      %v228 = vpop.xlane.xlu0 %227
      %v229 = vrcp.pop %v228
      %v230 = vmul.f32 %v225, %v229
      %v231 = vpack.c.bf16 %v230, %v230
      %v233 = vsel %vm219, %v231, 0
      %vm235 = vcmask 1043456
      %v237 = vsel %vm235, %v163, 0
      %239 = vmatprep.subr.bf16.mxu0 0
      %240 = vmatpush1.bf16.msra.mxu0 0
      %241 = vmatprep.subr.bf16.mxu0 0
      %242 = vmatpush1.bf16.msra.mxu0 0
      %243 = vmatprep.subr.bf16.mxu0 0
      %244 = vmatpush1.bf16.msra.mxu0 0
      %245 = vmatprep.subr.bf16.mxu0 0
      %246 = vmatpush1.bf16.msra.mxu0 0
      %247 = vmatprep.subr.bf16.mxu0 0
      %248 = vmatpush1.bf16.msra.mxu0 0
      %249 = vmatprep.subr.bf16.mxu0 0
      %250 = vmatpush1.bf16.msra.mxu0 0
      %251 = vmatprep.subr.bf16.mxu0 0
      %252 = vmatpush1.bf16.msra.mxu0 0
      %253 = vmatprep.subr.bf16.mxu0 0
      %254 = vmatpush1.bf16.msra.mxu0 %v237
      %255 = vmatprep.subr.bf16.mxu0 0
      %256 = vmatpush2.bf16.msra.mxu0 0
      %257 = vmatprep.subr.bf16.mxu0 0
      %258 = vmatpush2.bf16.msra.mxu0 0
      %259 = vmatprep.subr.bf16.mxu0 0
      %260 = vmatpush2.bf16.msra.mxu0 0
      %261 = vmatprep.subr.bf16.mxu0 0
      %262 = vmatpush2.bf16.msra.mxu0 0
      %263 = vmatprep.subr.bf16.mxu0 0
      %264 = vmatpush2.bf16.msra.mxu0 0
      %265 = vmatprep.subr.bf16.mxu0 0
      %266 = vmatpush2.bf16.msra.mxu0 0
      %267 = vmatprep.subr.bf16.mxu0 0
      %268 = vmatpush2.bf16.msra.mxu0 0
      %269 = vmatprep.subr.bf16.mxu0 0
      %270 = vmatpush2.bf16.msra.mxu0 0
      %271 = vmatprep.mubr.bf16.mxu0 0
      %272 = vmatmul.mubr.bf16.gmra.mxu0 %v233
      %v273 = vpop.f32.mrf.mxu0
      %v274 = vadd.f32 0.0, %v273
      %v275 = vpop.f32.mrf.mxu0
      %v276 = vpop.f32.mrf.mxu0
      %v277 = vpop.f32.mrf.mxu0
      %278 = vdwg.mxu0
      %280 = vrot.lane.b32.xlu0 %v161, 96
      %v281 = vpop.permute.xlu0 %280
      %283 = vrot.lane.b32.xlu0 %v162, 96
      %v284 = vpop.permute.xlu0 %283
      %v286 = vsel %vm164, %v281, 0
      %v289 = vsel %vm164, %v284, 0
      %291 = vmatprep.subr.bf16.mxu0 0
      %292 = vmatpush1.bf16.xpose.msra.mxu0 0
      %293 = vmatprep.subr.bf16.mxu0 0
      %294 = vmatpush1.bf16.xpose.msra.mxu0 0
      %295 = vmatprep.subr.bf16.mxu0 0
      %296 = vmatpush1.bf16.xpose.msra.mxu0 0
      %297 = vmatprep.subr.bf16.mxu0 0
      %298 = vmatpush1.bf16.xpose.msra.mxu0 0
      %299 = vmatprep.subr.bf16.mxu0 0
      %300 = vmatpush1.bf16.xpose.msra.mxu0 0
      %301 = vmatprep.subr.bf16.mxu0 0
      %302 = vmatpush1.bf16.xpose.msra.mxu0 0
      %303 = vmatprep.subr.bf16.mxu0 0
      %304 = vmatpush1.bf16.xpose.msra.mxu0 0
      %305 = vmatprep.subr.bf16.mxu0 0
      %306 = vmatpush1.bf16.xpose.msra.mxu0 %v289
      %307 = vmatprep.subr.bf16.mxu0 0
      %308 = vmatpush2.bf16.xpose.msra.mxu0 0
      %309 = vmatprep.subr.bf16.mxu0 0
      %310 = vmatpush2.bf16.xpose.msra.mxu0 0
      %311 = vmatprep.subr.bf16.mxu0 0
      %312 = vmatpush2.bf16.xpose.msra.mxu0 0
      %313 = vmatprep.subr.bf16.mxu0 0
      %314 = vmatpush2.bf16.xpose.msra.mxu0 0
      %315 = vmatprep.subr.bf16.mxu0 0
      %316 = vmatpush2.bf16.xpose.msra.mxu0 0
      %317 = vmatprep.subr.bf16.mxu0 0
      %318 = vmatpush2.bf16.xpose.msra.mxu0 0
      %319 = vmatprep.subr.bf16.mxu0 0
      %320 = vmatpush2.bf16.xpose.msra.mxu0 0
      %321 = vmatprep.subr.bf16.mxu0 0
      %322 = vmatpush2.bf16.xpose.msra.mxu0 0
      %323 = vmatprep.mubr.bf16.mxu0 0
      %324 = vmatmul.mubr.bf16.gmra.mxu0 %v286
      %v325 = vpop.f32.mrf.mxu0
      %v326 = vadd.f32 0.0, %v325
      %v327 = vpop.f32.mrf.mxu0
      %v328 = vpop.f32.mrf.mxu0
      %v329 = vpop.f32.mrf.mxu0
      %330 = vdwg.mxu0
      %v331 = vmul.f32 %v326, 0.17677669
      %v332 = vadd.f32 %v331, %v216
      %v333 = vsel %vm219, %v332, -inf
      %334 = vmax.xlane.f32.xlu0 %v333
      %v335 = vpop.xlane.xlu0 %334
      %v336 = vsub.f32 %v332, %v335
      %v337 = vmul.f32 %v336, 1.442695
      %v338 = vpow.pop %v337
      %v339 = vsel %vm219, %v338, 0.0
      %340 = vadd.xlane.f32.xlu0 %v339
      %v341 = vpop.xlane.xlu0 %340
      %v342 = vrcp.pop %v341
      %v343 = vmul.f32 %v338, %v342
      %v344 = vpack.c.bf16 %v343, %v343
      %346 = vrot.lane.b32.xlu0 %v163, 96
      %v347 = vpop.permute.xlu0 %346
      %v349 = vsel %vm219, %v344, 0
      %v352 = vsel %vm235, %v347, 0
      %354 = vmatprep.subr.bf16.mxu0 0
      %355 = vmatpush1.bf16.msra.mxu0 0
      %356 = vmatprep.subr.bf16.mxu0 0
      %357 = vmatpush1.bf16.msra.mxu0 0
      %358 = vmatprep.subr.bf16.mxu0 0
      %359 = vmatpush1.bf16.msra.mxu0 0
      %360 = vmatprep.subr.bf16.mxu0 0
      %361 = vmatpush1.bf16.msra.mxu0 0
      %362 = vmatprep.subr.bf16.mxu0 0
      %363 = vmatpush1.bf16.msra.mxu0 0
      %364 = vmatprep.subr.bf16.mxu0 0
      %365 = vmatpush1.bf16.msra.mxu0 0
      %366 = vmatprep.subr.bf16.mxu0 0
      %367 = vmatpush1.bf16.msra.mxu0 0
      %368 = vmatprep.subr.bf16.mxu0 0
      %369 = vmatpush1.bf16.msra.mxu0 %v352
      %370 = vmatprep.subr.bf16.mxu0 0
      %371 = vmatpush2.bf16.msra.mxu0 0
      %372 = vmatprep.subr.bf16.mxu0 0
      %373 = vmatpush2.bf16.msra.mxu0 0
      %374 = vmatprep.subr.bf16.mxu0 0
      %375 = vmatpush2.bf16.msra.mxu0 0
      %376 = vmatprep.subr.bf16.mxu0 0
      %377 = vmatpush2.bf16.msra.mxu0 0
      %378 = vmatprep.subr.bf16.mxu0 0
      %379 = vmatpush2.bf16.msra.mxu0 0
      %380 = vmatprep.subr.bf16.mxu0 0
      %381 = vmatpush2.bf16.msra.mxu0 0
      %382 = vmatprep.subr.bf16.mxu0 0
      %383 = vmatpush2.bf16.msra.mxu0 0
      %384 = vmatprep.subr.bf16.mxu0 0
      %385 = vmatpush2.bf16.msra.mxu0 0
      %386 = vmatprep.mubr.bf16.mxu0 0
      %387 = vmatmul.mubr.bf16.gmra.mxu0 %v349
      %v388 = vpop.f32.mrf.mxu0
      %v389 = vadd.f32 0.0, %v388
      %v390 = vpop.f32.mrf.mxu0
      %v391 = vpop.f32.mrf.mxu0
      %v392 = vpop.f32.mrf.mxu0
      %393 = vdwg.mxu0
      %394 = vrot.lane.b32.xlu0 %v161, 64
      %v395 = vpop.permute.xlu0 %394
      %396 = vrot.lane.b32.xlu0 %v162, 64
      %v397 = vpop.permute.xlu0 %396
      %v399 = vsel %vm164, %v395, 0
      %v402 = vsel %vm164, %v397, 0
      %404 = vmatprep.subr.bf16.mxu0 0
      %405 = vmatpush1.bf16.xpose.msra.mxu0 0
      %406 = vmatprep.subr.bf16.mxu0 0
      %407 = vmatpush1.bf16.xpose.msra.mxu0 0
      %408 = vmatprep.subr.bf16.mxu0 0
      %409 = vmatpush1.bf16.xpose.msra.mxu0 0
      %410 = vmatprep.subr.bf16.mxu0 0
      %411 = vmatpush1.bf16.xpose.msra.mxu0 0
      %412 = vmatprep.subr.bf16.mxu0 0
      %413 = vmatpush1.bf16.xpose.msra.mxu0 0
      %414 = vmatprep.subr.bf16.mxu0 0
      %415 = vmatpush1.bf16.xpose.msra.mxu0 0
      %416 = vmatprep.subr.bf16.mxu0 0
      %417 = vmatpush1.bf16.xpose.msra.mxu0 0
      %418 = vmatprep.subr.bf16.mxu0 0
      %419 = vmatpush1.bf16.xpose.msra.mxu0 %v402
      %420 = vmatprep.subr.bf16.mxu0 0
      %421 = vmatpush2.bf16.xpose.msra.mxu0 0
      %422 = vmatprep.subr.bf16.mxu0 0
      %423 = vmatpush2.bf16.xpose.msra.mxu0 0
      %424 = vmatprep.subr.bf16.mxu0 0
      %425 = vmatpush2.bf16.xpose.msra.mxu0 0
      %426 = vmatprep.subr.bf16.mxu0 0
      %427 = vmatpush2.bf16.xpose.msra.mxu0 0
      %428 = vmatprep.subr.bf16.mxu0 0
      %429 = vmatpush2.bf16.xpose.msra.mxu0 0
      %430 = vmatprep.subr.bf16.mxu0 0
      %431 = vmatpush2.bf16.xpose.msra.mxu0 0
      %432 = vmatprep.subr.bf16.mxu0 0
      %433 = vmatpush2.bf16.xpose.msra.mxu0 0
      %434 = vmatprep.subr.bf16.mxu0 0
      %435 = vmatpush2.bf16.xpose.msra.mxu0 0
      %436 = vmatprep.mubr.bf16.mxu0 0
      %437 = vmatmul.mubr.bf16.gmra.mxu0 %v399
      %v438 = vpop.f32.mrf.mxu0
      %v439 = vadd.f32 0.0, %v438
      %v440 = vpop.f32.mrf.mxu0
      %v441 = vpop.f32.mrf.mxu0
      %v442 = vpop.f32.mrf.mxu0
      %443 = vdwg.mxu0
      %v444 = vmul.f32 %v439, 0.17677669
      %v445 = vadd.f32 %v444, %v216
      %v446 = vsel %vm219, %v445, -inf
      %447 = vmax.xlane.f32.xlu0 %v446
      %v448 = vpop.xlane.xlu0 %447
      %v449 = vsub.f32 %v445, %v448
      %v450 = vmul.f32 %v449, 1.442695
      %v451 = vpow.pop %v450
      %v452 = vsel %vm219, %v451, 0.0
      %453 = vadd.xlane.f32.xlu0 %v452
      %v454 = vpop.xlane.xlu0 %453
      %v455 = vrcp.pop %v454
      %v456 = vmul.f32 %v451, %v455
      %v457 = vpack.c.bf16 %v456, %v456
      %458 = vrot.lane.b32.xlu0 %v163, 64
      %v459 = vpop.permute.xlu0 %458
      %v461 = vsel %vm219, %v457, 0
      %v464 = vsel %vm235, %v459, 0
      %466 = vmatprep.subr.bf16.mxu0 0
      %467 = vmatpush1.bf16.msra.mxu0 0
      %468 = vmatprep.subr.bf16.mxu0 0
      %469 = vmatpush1.bf16.msra.mxu0 0
      %470 = vmatprep.subr.bf16.mxu0 0
      %471 = vmatpush1.bf16.msra.mxu0 0
      %472 = vmatprep.subr.bf16.mxu0 0
      %473 = vmatpush1.bf16.msra.mxu0 0
      %474 = vmatprep.subr.bf16.mxu0 0
      %475 = vmatpush1.bf16.msra.mxu0 0
      %476 = vmatprep.subr.bf16.mxu0 0
      %477 = vmatpush1.bf16.msra.mxu0 0
      %478 = vmatprep.subr.bf16.mxu0 0
      %479 = vmatpush1.bf16.msra.mxu0 0
      %480 = vmatprep.subr.bf16.mxu0 0
      %481 = vmatpush1.bf16.msra.mxu0 %v464
      %482 = vmatprep.subr.bf16.mxu0 0
      %483 = vmatpush2.bf16.msra.mxu0 0
      %484 = vmatprep.subr.bf16.mxu0 0
      %485 = vmatpush2.bf16.msra.mxu0 0
      %486 = vmatprep.subr.bf16.mxu0 0
      %487 = vmatpush2.bf16.msra.mxu0 0
      %488 = vmatprep.subr.bf16.mxu0 0
      %489 = vmatpush2.bf16.msra.mxu0 0
      %490 = vmatprep.subr.bf16.mxu0 0
      %491 = vmatpush2.bf16.msra.mxu0 0
      %492 = vmatprep.subr.bf16.mxu0 0
      %493 = vmatpush2.bf16.msra.mxu0 0
      %494 = vmatprep.subr.bf16.mxu0 0
      %495 = vmatpush2.bf16.msra.mxu0 0
      %496 = vmatprep.subr.bf16.mxu0 0
      %497 = vmatpush2.bf16.msra.mxu0 0
      %498 = vmatprep.mubr.bf16.mxu0 0
      %499 = vmatmul.mubr.bf16.gmra.mxu0 %v461
      %v500 = vpop.f32.mrf.mxu0
      %v501 = vadd.f32 0.0, %v500
      %v502 = vpop.f32.mrf.mxu0
      %v503 = vpop.f32.mrf.mxu0
      %v504 = vpop.f32.mrf.mxu0
      %505 = vdwg.mxu0
      %506 = vrot.lane.b32.xlu0 %v161, 32
      %v507 = vpop.permute.xlu0 %506
      %508 = vrot.lane.b32.xlu0 %v162, 32
      %v509 = vpop.permute.xlu0 %508
      %v511 = vsel %vm164, %v507, 0
      %v514 = vsel %vm164, %v509, 0
      %516 = vmatprep.subr.bf16.mxu0 0
      %517 = vmatpush1.bf16.xpose.msra.mxu0 0
      %518 = vmatprep.subr.bf16.mxu0 0
      %519 = vmatpush1.bf16.xpose.msra.mxu0 0
      %520 = vmatprep.subr.bf16.mxu0 0
      %521 = vmatpush1.bf16.xpose.msra.mxu0 0
      %522 = vmatprep.subr.bf16.mxu0 0
      %523 = vmatpush1.bf16.xpose.msra.mxu0 0
      %524 = vmatprep.subr.bf16.mxu0 0
      %525 = vmatpush1.bf16.xpose.msra.mxu0 0
      %526 = vmatprep.subr.bf16.mxu0 0
      %527 = vmatpush1.bf16.xpose.msra.mxu0 0
      %528 = vmatprep.subr.bf16.mxu0 0
      %529 = vmatpush1.bf16.xpose.msra.mxu0 0
      %530 = vmatprep.subr.bf16.mxu0 0
      %531 = vmatpush1.bf16.xpose.msra.mxu0 %v514
      %532 = vmatprep.subr.bf16.mxu0 0
      %533 = vmatpush2.bf16.xpose.msra.mxu0 0
      %534 = vmatprep.subr.bf16.mxu0 0
      %535 = vmatpush2.bf16.xpose.msra.mxu0 0
      %536 = vmatprep.subr.bf16.mxu0 0
      %537 = vmatpush2.bf16.xpose.msra.mxu0 0
      %538 = vmatprep.subr.bf16.mxu0 0
      %539 = vmatpush2.bf16.xpose.msra.mxu0 0
      %540 = vmatprep.subr.bf16.mxu0 0
      %541 = vmatpush2.bf16.xpose.msra.mxu0 0
      %542 = vmatprep.subr.bf16.mxu0 0
      %543 = vmatpush2.bf16.xpose.msra.mxu0 0
      %544 = vmatprep.subr.bf16.mxu0 0
      %545 = vmatpush2.bf16.xpose.msra.mxu0 0
      %546 = vmatprep.subr.bf16.mxu0 0
      %547 = vmatpush2.bf16.xpose.msra.mxu0 0
      %548 = vmatprep.mubr.bf16.mxu0 0
      %549 = vmatmul.mubr.bf16.gmra.mxu0 %v511
      %v550 = vpop.f32.mrf.mxu0
      %v551 = vadd.f32 0.0, %v550
      %v552 = vpop.f32.mrf.mxu0
      %v553 = vpop.f32.mrf.mxu0
      %v554 = vpop.f32.mrf.mxu0
      %555 = vdwg.mxu0
      %v556 = vmul.f32 %v551, 0.17677669
      %v557 = vadd.f32 %v556, %v216
      %v558 = vsel %vm219, %v557, -inf
      %559 = vmax.xlane.f32.xlu0 %v558
      %v560 = vpop.xlane.xlu0 %559
      %v561 = vsub.f32 %v557, %v560
      %v562 = vmul.f32 %v561, 1.442695
      %v563 = vpow.pop %v562
      %v564 = vsel %vm219, %v563, 0.0
      %565 = vadd.xlane.f32.xlu0 %v564
      %v566 = vpop.xlane.xlu0 %565
      %v567 = vrcp.pop %v566
      %v568 = vmul.f32 %v563, %v567
      %v569 = vpack.c.bf16 %v568, %v568
      %570 = vrot.lane.b32.xlu0 %v163, 32
      %v571 = vpop.permute.xlu0 %570
      %v573 = vsel %vm219, %v569, 0
      %v576 = vsel %vm235, %v571, 0
      %578 = vmatprep.subr.bf16.mxu0 0
      %579 = vmatpush1.bf16.msra.mxu0 0
      %580 = vmatprep.subr.bf16.mxu0 0
      %581 = vmatpush1.bf16.msra.mxu0 0
      %582 = vmatprep.subr.bf16.mxu0 0
      %583 = vmatpush1.bf16.msra.mxu0 0
      %584 = vmatprep.subr.bf16.mxu0 0
      %585 = vmatpush1.bf16.msra.mxu0 0
      %586 = vmatprep.subr.bf16.mxu0 0
      %587 = vmatpush1.bf16.msra.mxu0 0
      %588 = vmatprep.subr.bf16.mxu0 0
      %589 = vmatpush1.bf16.msra.mxu0 0
      %590 = vmatprep.subr.bf16.mxu0 0
      %591 = vmatpush1.bf16.msra.mxu0 0
      %592 = vmatprep.subr.bf16.mxu0 0
      %593 = vmatpush1.bf16.msra.mxu0 %v576
      %594 = vmatprep.subr.bf16.mxu0 0
      %595 = vmatpush2.bf16.msra.mxu0 0
      %596 = vmatprep.subr.bf16.mxu0 0
      %597 = vmatpush2.bf16.msra.mxu0 0
      %598 = vmatprep.subr.bf16.mxu0 0
      %599 = vmatpush2.bf16.msra.mxu0 0
      %600 = vmatprep.subr.bf16.mxu0 0
      %601 = vmatpush2.bf16.msra.mxu0 0
      %602 = vmatprep.subr.bf16.mxu0 0
      %603 = vmatpush2.bf16.msra.mxu0 0
      %604 = vmatprep.subr.bf16.mxu0 0
      %605 = vmatpush2.bf16.msra.mxu0 0
      %606 = vmatprep.subr.bf16.mxu0 0
      %607 = vmatpush2.bf16.msra.mxu0 0
      %608 = vmatprep.subr.bf16.mxu0 0
      %609 = vmatpush2.bf16.msra.mxu0 0
      %610 = vmatprep.mubr.bf16.mxu0 0
      %611 = vmatmul.mubr.bf16.gmra.mxu0 %v573
      %v612 = vpop.f32.mrf.mxu0
      %v613 = vadd.f32 0.0, %v612
      %v614 = vpop.f32.mrf.mxu0
      %v615 = vpop.f32.mrf.mxu0
      %v616 = vpop.f32.mrf.mxu0
      %617 = vdwg.mxu0
      %619 = vrot.lane.b32.xlu0 %v389, 32
      %v620 = vpop.permute.xlu0 %619
      %623 = vrot.lane.b32.xlu0 %v501, 64
      %v624 = vpop.permute.xlu0 %623
      %627 = vrot.lane.b32.xlu0 %v613, 96
      %v628 = vpop.permute.xlu0 %627
      %v630 = vsel %vm164, %v274, %v620
      %vm631 = vcmask 523264
      %v632 = vsel %vm631, %v630, %v624
      %vm633 = vcmask 785408
      %v634 = vsel %vm633, %v632, %v628
      %635 = vst [vmem:[%s155] sm:$0xff] %v634
      %p636 = scmp.lt.s32.totalorder %s13, 1
      %s637 = scalar_select %p636, %s13, 1
      %s638 = smul.addr %s637, 8
      %s639 = scalar_lea.vmem %s2, %s638
      // Predicated region
      $region29: #{forward.14} parent=27 // pred_check
        %p640 = pneg %p83
      $region30: #{forward.14} parent=27 // pred_check_branch
        %642 = sbr.rel (%p640) target = $region32
      $region31: #{forward.14} parent=27 // pred_region
        _
      $region32: #{forward.14} parent=27 // pred_fallthru
        _
    $region28: #{forward.14} parent=5 // pred_fallthru
      _
    %p643 = scmp.le.s32.totalorder 2, %s8
    // Predicated region
    $region33: #{forward.14} parent=5 // pred_check
      %p644 = pneg %p643
    $region34: #{forward.14} parent=5 // pred_check_branch
      %646 = sbr.rel (%p644) target = $region36
    $region35: #{forward.14} parent=5 // pred_region
      %s647 = ssub.s32 %s8, 2
      // Predicated region
      $region37: #{forward.14} parent=35 // pred_check
        %p648 = pneg %p89
      $region38: #{forward.14} parent=35 // pred_check_branch
        %650 = sbr.rel (%p648) target = $region40
      $region39: #{forward.14} parent=35 // pred_region
        %p651 = scmp.lt.s32.totalorder %s14, 1
        %s652 = scalar_select %p651, %s14, 1
        %s653 = smul.addr %s652, 8
        %s654 = scalar_lea.vmem %s2, %s653
      $region40: #{forward.14} parent=35 // pred_fallthru
        _
    $region36: #{forward.14} parent=5 // pred_fallthru
      _
  $region6: #{forward.14} parent=0 // loop_footer
    %s12 = sadd.s32 1, %s8
  $region7: #{forward.14} parent=0 // loop_footer_branch
    %7 = sbr.rel target = $region3
  $region8: #{forward.14} parent=0 // loop_exit
    _

// kernel: forward.16
$region0: #{forward.16}
  #allocation0 [shape = 'u32[]', space=smem, size = 0x4, offset = 0x4, fixed_abs, tag = 'smem constant byte address 0x4 - core index']
  #allocation1 [shape = 'u32[144,128]{1,0:T(1,128)}', space=vmem, size = 0x12000, scoped, tag = 'internal scratch']
  %s0 = inlined_call_operand.vmem [shape: f32[16,128], index: 0, kind: input, shape index: {}]
  %s1 = inlined_call_operand.vmem [shape: bf16[128,512], index: 1, kind: input, shape index: {}]
  %s2 = inlined_call_operand.vmem [shape: f32[1,512], index: 2, kind: input, shape index: {}]
  %s3 = inlined_call_operand.vmem [shape: f32[16,512], index: 3, kind: output, shape index: {}]
  %s4 = sld [smem:[#allocation0]]
  $region45: #{forward.16} parent=0
    _
  %s6 = ssub.s32 1, %s4
  %s7 = scalar_select 0, %s6, %s4
  loop: start=0, step=1, limit=4
  $region2: #{forward.16} parent=0 // loop_pre_header
    _
  $region3: #{forward.16} parent=0 // loop_header
    %s9 = sphi 0, %s13
    %p10 = scmp.ge.s32.totalorder %s9, 4
    %s19 = sphi 0, %s21
    %s22 = sphi 0, %s19
    %s23 = sphi 0, %s22
    %s39 = sphi 0, %s23
    %s43 = sphi 0, %s43
    %s45 = sphi 0, %s43
    %s46 = sphi 0, %s45
    %s60 = sphi 0, %s46
    %s64 = sphi 0, %s64
    %s66 = sphi 0, %s64
    %s67 = sphi 0, %s66
    %s81 = sphi 0, %s67
    %s87 = sphi 0, %s89
    %s90 = sphi 0, %s87
    %s91 = sphi 0, %s90
    %s107 = sphi 0, %s91
  $region4: #{forward.16} parent=0 // loop_header_branch
    %12 = sbr.rel (%p10) target = $region8
  $region5: #{forward.16} parent=0 // loop_body
    %s14 = ssub.s32 %s9, 1
    %s15 = ssub.s32 %s9, 2
    %s16 = sadd.s32 %s9, 1
    %s17 = ssub.s32 %s9, %s16
    %p18 = scmp.eq.s32.totalorder %s17, 0
    %s20 = sadd.s32 %s19, 1
    %s21 = scalar_select %p18, %s19, %s20
    %p24 = pneg %p18
    %p25 = scmp.eq.s32.totalorder %s9, 1
    %p26 = por %p24, %p25
    %p27 = scmp.ne.s32.totalorder %s19, %s22
    %p28 = scmp.eq.s32.totalorder %s9, 0
    %p29 = por %p27, %p28
    %p30 = scmp.ne.s32.totalorder %s19, %s22
    %p31 = scmp.eq.s32.totalorder %s14, 1
    %p32 = por %p30, %p31
    %p33 = scmp.ne.s32.totalorder %s22, %s23
    %p34 = scmp.eq.s32.totalorder %s14, 0
    %p35 = por %p33, %p34
    %p36 = scmp.ne.s32.totalorder %s22, %s23
    %p37 = scmp.eq.s32.totalorder %s15, 1
    %p38 = por %p36, %p37
    %p40 = scmp.ne.s32.totalorder %s23, %s39
    %p41 = scmp.eq.s32.totalorder %s15, 0
    %p42 = por %p40, %p41
    %s44 = sadd.s32 %s43, 1
    %p47 = scmp.eq.s32.totalorder %s9, 1
    %p48 = scmp.ne.s32.totalorder %s43, %s45
    %p49 = scmp.eq.s32.totalorder %s9, 0
    %p50 = por %p48, %p49
    %p51 = scmp.ne.s32.totalorder %s43, %s45
    %p52 = scmp.eq.s32.totalorder %s14, 1
    %p53 = por %p51, %p52
    %p54 = scmp.ne.s32.totalorder %s45, %s46
    %p55 = scmp.eq.s32.totalorder %s14, 0
    %p56 = por %p54, %p55
    %p57 = scmp.ne.s32.totalorder %s45, %s46
    %p58 = scmp.eq.s32.totalorder %s15, 1
    %p59 = por %p57, %p58
    %p61 = scmp.ne.s32.totalorder %s46, %s60
    %p62 = scmp.eq.s32.totalorder %s15, 0
    %p63 = por %p61, %p62
    %s65 = sadd.s32 %s64, 1
    %p68 = scmp.eq.s32.totalorder %s9, 1
    %p69 = scmp.ne.s32.totalorder %s64, %s66
    %p70 = scmp.eq.s32.totalorder %s9, 0
    %p71 = por %p69, %p70
    %p72 = scmp.ne.s32.totalorder %s64, %s66
    %p73 = scmp.eq.s32.totalorder %s14, 1
    %p74 = por %p72, %p73
    %p75 = scmp.ne.s32.totalorder %s66, %s67
    %p76 = scmp.eq.s32.totalorder %s14, 0
    %p77 = por %p75, %p76
    %p78 = scmp.ne.s32.totalorder %s66, %s67
    %p79 = scmp.eq.s32.totalorder %s15, 1
    %p80 = por %p78, %p79
    %p82 = scmp.ne.s32.totalorder %s67, %s81
    %p83 = scmp.eq.s32.totalorder %s15, 0
    %p84 = por %p82, %p83
    %s85 = ssub.s32 %s9, %s16
    %p86 = scmp.eq.s32.totalorder %s85, 0
    %s88 = sadd.s32 %s87, 1
    %s89 = scalar_select %p86, %s87, %s88
    %p92 = pneg %p86
    %p93 = scmp.eq.s32.totalorder %s9, 1
    %p94 = por %p92, %p93
    %p95 = scmp.ne.s32.totalorder %s87, %s90
    %p96 = scmp.eq.s32.totalorder %s9, 0
    %p97 = por %p95, %p96
    %p98 = scmp.ne.s32.totalorder %s87, %s90
    %p99 = scmp.eq.s32.totalorder %s14, 1
    %p100 = por %p98, %p99
    %p101 = scmp.ne.s32.totalorder %s90, %s91
    %p102 = scmp.eq.s32.totalorder %s14, 0
    %p103 = por %p101, %p102
    %p104 = scmp.ne.s32.totalorder %s90, %s91
    %p105 = scmp.eq.s32.totalorder %s15, 1
    %p106 = por %p104, %p105
    %p108 = scmp.ne.s32.totalorder %s91, %s107
    %p109 = scmp.eq.s32.totalorder %s15, 0
    %p110 = por %p108, %p109
    %p111 = scmp.le.s32.totalorder 1, %s9
    %p112 = scmp.lt.s32.totalorder %s9, 3
    %p113 = pnand %p111, %p112
    %p114 = pneg %p113
    // Predicated region
    $region9: #{forward.16} parent=5 // pred_check
      _
    $region10: #{forward.16} parent=5 // pred_check_branch
      %116 = sbr.rel (%p113) target = $region12
    $region11: #{forward.16} parent=5 // pred_region
      %s117 = ssub.s32 %s9, 1
      // Predicated region
      $region13: #{forward.16} parent=11 // pred_check
        %p118 = pneg %p56
      $region14: #{forward.16} parent=11 // pred_check_branch
        %120 = sbr.rel (%p118) target = $region16
      $region15: #{forward.16} parent=11 // pred_region
        _
      $region16: #{forward.16} parent=11 // pred_fallthru
        _
      // Predicated region
      $region17: #{forward.16} parent=11 // pred_check
        %p121 = pneg %p77
      $region18: #{forward.16} parent=11 // pred_check_branch
        %123 = sbr.rel (%p121) target = $region20
      $region19: #{forward.16} parent=11 // pred_region
        _
      $region20: #{forward.16} parent=11 // pred_fallthru
        _
    $region12: #{forward.16} parent=5 // pred_fallthru
      _
    %p124 = scmp.lt.s32.totalorder %s9, 2
    // Predicated region
    $region21: #{forward.16} parent=5 // pred_check
      %p125 = pneg %p124
    $region22: #{forward.16} parent=5 // pred_check_branch
      %127 = sbr.rel (%p125) target = $region24
    $region23: #{forward.16} parent=5 // pred_region
      // Predicated region
      $region25: #{forward.16} parent=23 // pred_check
        %p128 = pneg %p29
      $region26: #{forward.16} parent=23 // pred_check_branch
        %130 = sbr.rel (%p128) target = $region28
      $region27: #{forward.16} parent=23 // pred_region
        %p131 = scmp.lt.s32.totalorder %s9, 1
        %s132 = scalar_select %p131, %s9, 1
        %s133 = smul.addr %s132, 8
        %s134 = scalar_lea.vmem %s0, %s133
      $region28: #{forward.16} parent=23 // pred_fallthru
        _
    $region24: #{forward.16} parent=5 // pred_fallthru
      _
    %p135 = scmp.le.s32.totalorder 1, %s9
    %p136 = scmp.lt.s32.totalorder %s9, 3
    %p137 = pnand %p135, %p136
    %p138 = pneg %p137
    // Predicated region
    $region29: #{forward.16} parent=5 // pred_check
      _
    $region30: #{forward.16} parent=5 // pred_check_branch
      %140 = sbr.rel (%p137) target = $region32
    $region31: #{forward.16} parent=5 // pred_region
      %s141 = ssub.s32 %s9, 1
      %p142 = scmp.lt.s32.totalorder %s14, 1
      %s143 = scalar_select %p142, %s14, 1
      %s144 = smul.addr %s143, 8
      %s145 = scalar_lea.vmem %s0, %s144
      %p146 = pneg %p35
      %p147 = pneg %p32
      %p148 = pneg %p56
      %p149 = pneg %p53
      %p150 = pneg %p77
      %p151 = pneg %p74
      %p152 = pneg %p103
      %p153 = pneg %p100
      %p154 = scmp.lt.s32.totalorder %s14, 1
      %s155 = scalar_select %p154, %s14, 1
      %s156 = smul.addr %s155, 4
      %s157 = smul.addr %s156, 8
      %s158 = scalar_lea.vmem %s3, %s157
      %p159 = scmp.lt.s32.totalorder %s14, 1
      %s160 = scalar_select %p159, %s14, 1
      %s161 = smul.addr %s160, 8
      %s162 = scalar_lea.vmem %s0, %s161
      %p163 = scmp.lt.s32.totalorder %s14, 1
      %s164 = scalar_select %p163, %s14, 1
      %s165 = smul.addr %s164, 4
      %s166 = smul.addr %s165, 8
      %s167 = scalar_lea.vmem %s3, %s166
      %v169 = vld [vmem:[%s162] sm:$0xff]
      %v170 = vpack.c.bf16 %v169, %v169
      %v171 = vld [vmem:[%s1] sm:$0xff]
      %v172 = vld [vmem:[%s1 + $0x8] sm:$0xff]
      %v173 = vld [vmem:[%s1 + $0x10] sm:$0xff]
      %v174 = vld [vmem:[%s1 + $0x18] sm:$0xff]
      %v175 = vld [vmem:[%s1 + $0x20] sm:$0xff]
      %v176 = vld [vmem:[%s1 + $0x28] sm:$0xff]
      %v177 = vld [vmem:[%s1 + $0x30] sm:$0xff]
      %v178 = vld [vmem:[%s1 + $0x38] sm:$0xff]
      %v179 = vld [vmem:[%s1 + $0x40] sm:$0xff]
      %v180 = vld [vmem:[%s1 + $0x48] sm:$0xff]
      %v181 = vld [vmem:[%s1 + $0x50] sm:$0xff]
      %v182 = vld [vmem:[%s1 + $0x58] sm:$0xff]
      %v183 = vld [vmem:[%s1 + $0x60] sm:$0xff]
      %v184 = vld [vmem:[%s1 + $0x68] sm:$0xff]
      %v185 = vld [vmem:[%s1 + $0x70] sm:$0xff]
      %v186 = vld [vmem:[%s1 + $0x78] sm:$0xff]
      %v187 = vld [vmem:[%s1 + $0x80] sm:$0xff]
      %v188 = vld [vmem:[%s1 + $0x88] sm:$0xff]
      %v189 = vld [vmem:[%s1 + $0x90] sm:$0xff]
      %v190 = vld [vmem:[%s1 + $0x98] sm:$0xff]
      %v191 = vld [vmem:[%s1 + $0xa0] sm:$0xff]
      %v192 = vld [vmem:[%s1 + $0xa8] sm:$0xff]
      %v193 = vld [vmem:[%s1 + $0xb0] sm:$0xff]
      %v194 = vld [vmem:[%s1 + $0xb8] sm:$0xff]
      %v195 = vld [vmem:[%s1 + $0xc0] sm:$0xff]
      %v196 = vld [vmem:[%s1 + $0xc8] sm:$0xff]
      %v197 = vld [vmem:[%s1 + $0xd0] sm:$0xff]
      %v198 = vld [vmem:[%s1 + $0xd8] sm:$0xff]
      %v199 = vld [vmem:[%s1 + $0xe0] sm:$0xff]
      %v200 = vld [vmem:[%s1 + $0xe8] sm:$0xff]
      %v201 = vld [vmem:[%s1 + $0xf0] sm:$0xff]
      %v202 = vld [vmem:[%s1 + $0xf8] sm:$0xff]
      %v203 = vld [vmem:[%s2] sm:$0xf]
      %v205 = vlaneseq
      %v206 = vshrl.u32 %v205, 7
      %v207 = vsub.s32 0, %v206
      %v208 = vrot.slane %v203, %v207
      %v209 = vlaneseq
      %v210 = vshrl.u32 %v209, 7
      %v211 = vsub.s32 1, %v210
      %v212 = vrot.slane %v203, %v211
      %v213 = vlaneseq
      %v214 = vshrl.u32 %v213, 7
      %v215 = vsub.s32 2, %v214
      %v216 = vrot.slane %v203, %v215
      %v217 = vlaneseq
      %v218 = vshrl.u32 %v217, 7
      %v219 = vsub.s32 3, %v218
      %v220 = vrot.slane %v203, %v219
      %v257 = vunpack.c.l.b16 %v171
      %v258 = vunpack.c.h.b16 %v171
      %v259 = vunpack.c.l.b16 %v172
      %v260 = vunpack.c.h.b16 %v172
      %v261 = vunpack.c.l.b16 %v173
      %v262 = vunpack.c.h.b16 %v173
      %v263 = vunpack.c.l.b16 %v174
      %v264 = vunpack.c.h.b16 %v174
      %v265 = vunpack.c.l.b16 %v175
      %v266 = vunpack.c.h.b16 %v175
      %v267 = vunpack.c.l.b16 %v176
      %v268 = vunpack.c.h.b16 %v176
      %v269 = vunpack.c.l.b16 %v177
      %v270 = vunpack.c.h.b16 %v177
      %v271 = vunpack.c.l.b16 %v178
      %v272 = vunpack.c.h.b16 %v178
      %v273 = vunpack.c.l.b16 %v179
      %v274 = vunpack.c.h.b16 %v179
      %v275 = vunpack.c.l.b16 %v180
      %v276 = vunpack.c.h.b16 %v180
      %v277 = vunpack.c.l.b16 %v181
      %v278 = vunpack.c.h.b16 %v181
      %v279 = vunpack.c.l.b16 %v182
      %v280 = vunpack.c.h.b16 %v182
      %v281 = vunpack.c.l.b16 %v183
      %v282 = vunpack.c.h.b16 %v183
      %v283 = vunpack.c.l.b16 %v184
      %v284 = vunpack.c.h.b16 %v184
      %v285 = vunpack.c.l.b16 %v185
      %v286 = vunpack.c.h.b16 %v185
      %v287 = vunpack.c.l.b16 %v186
      %v288 = vunpack.c.h.b16 %v186
      %v289 = vunpack.c.l.b16 %v187
      %v290 = vunpack.c.h.b16 %v187
      %v291 = vunpack.c.l.b16 %v188
      %v292 = vunpack.c.h.b16 %v188
      %v293 = vunpack.c.l.b16 %v189
      %v294 = vunpack.c.h.b16 %v189
      %v295 = vunpack.c.l.b16 %v190
      %v296 = vunpack.c.h.b16 %v190
      %v297 = vunpack.c.l.b16 %v191
      %v298 = vunpack.c.h.b16 %v191
      %v299 = vunpack.c.l.b16 %v192
      %v300 = vunpack.c.h.b16 %v192
      %v301 = vunpack.c.l.b16 %v193
      %v302 = vunpack.c.h.b16 %v193
      %v303 = vunpack.c.l.b16 %v194
      %v304 = vunpack.c.h.b16 %v194
      %v305 = vunpack.c.l.b16 %v195
      %v306 = vunpack.c.h.b16 %v195
      %v307 = vunpack.c.l.b16 %v196
      %v308 = vunpack.c.h.b16 %v196
      %v309 = vunpack.c.l.b16 %v197
      %v310 = vunpack.c.h.b16 %v197
      %v311 = vunpack.c.l.b16 %v198
      %v312 = vunpack.c.h.b16 %v198
      %v313 = vunpack.c.l.b16 %v199
      %v314 = vunpack.c.h.b16 %v199
      %v315 = vunpack.c.l.b16 %v200
      %v316 = vunpack.c.h.b16 %v200
      %v317 = vunpack.c.l.b16 %v201
      %v318 = vunpack.c.h.b16 %v201
      %v319 = vunpack.c.l.b16 %v202
      %v320 = vunpack.c.h.b16 %v202
      %v321 = vpack.c.b16 %v261, %v257
      %v322 = vpack.c.b16 %v262, %v258
      %v323 = vpack.c.b16 %v263, %v259
      %v324 = vpack.c.b16 %v264, %v260
      %v325 = vpack.c.b16 %v269, %v265
      %v326 = vpack.c.b16 %v270, %v266
      %v327 = vpack.c.b16 %v271, %v267
      %v328 = vpack.c.b16 %v272, %v268
      %v329 = vpack.c.b16 %v277, %v273
      %v330 = vpack.c.b16 %v278, %v274
      %v331 = vpack.c.b16 %v279, %v275
      %v332 = vpack.c.b16 %v280, %v276
      %v333 = vpack.c.b16 %v285, %v281
      %v334 = vpack.c.b16 %v286, %v282
      %v335 = vpack.c.b16 %v287, %v283
      %v336 = vpack.c.b16 %v288, %v284
      %v337 = vpack.c.b16 %v293, %v289
      %v338 = vpack.c.b16 %v294, %v290
      %v339 = vpack.c.b16 %v295, %v291
      %v340 = vpack.c.b16 %v296, %v292
      %v341 = vpack.c.b16 %v301, %v297
      %v342 = vpack.c.b16 %v302, %v298
      %v343 = vpack.c.b16 %v303, %v299
      %v344 = vpack.c.b16 %v304, %v300
      %v345 = vpack.c.b16 %v309, %v305
      %v346 = vpack.c.b16 %v310, %v306
      %v347 = vpack.c.b16 %v311, %v307
      %v348 = vpack.c.b16 %v312, %v308
      %v349 = vpack.c.b16 %v317, %v313
      %v350 = vpack.c.b16 %v318, %v314
      %v351 = vpack.c.b16 %v319, %v315
      %v352 = vpack.c.b16 %v320, %v316
      %385 = vmatprep.subr.bf16.mxu0 %v350
      %386 = vmatpush1.bf16.msra.mxu0 %v349
      %387 = vmatprep.subr.bf16.mxu0 %v346
      %388 = vmatpush1.bf16.msra.mxu0 %v345
      %389 = vmatprep.subr.bf16.mxu0 %v342
      %390 = vmatpush1.bf16.msra.mxu0 %v341
      %391 = vmatprep.subr.bf16.mxu0 %v338
      %392 = vmatpush1.bf16.msra.mxu0 %v337
      %393 = vmatprep.subr.bf16.mxu0 %v334
      %394 = vmatpush1.bf16.msra.mxu0 %v333
      %395 = vmatprep.subr.bf16.mxu0 %v330
      %396 = vmatpush1.bf16.msra.mxu0 %v329
      %397 = vmatprep.subr.bf16.mxu0 %v326
      %398 = vmatpush1.bf16.msra.mxu0 %v325
      %399 = vmatprep.subr.bf16.mxu0 %v322
      %400 = vmatpush1.bf16.msra.mxu0 %v321
      %401 = vmatprep.subr.bf16.mxu0 0
      %402 = vmatpush2.bf16.msra.mxu0 0
      %403 = vmatprep.subr.bf16.mxu0 0
      %404 = vmatpush2.bf16.msra.mxu0 0
      %405 = vmatprep.subr.bf16.mxu0 0
      %406 = vmatpush2.bf16.msra.mxu0 0
      %407 = vmatprep.subr.bf16.mxu0 0
      %408 = vmatpush2.bf16.msra.mxu0 0
      %409 = vmatprep.subr.bf16.mxu0 0
      %410 = vmatpush2.bf16.msra.mxu0 0
      %411 = vmatprep.subr.bf16.mxu0 0
      %412 = vmatpush2.bf16.msra.mxu0 0
      %413 = vmatprep.subr.bf16.mxu0 0
      %414 = vmatpush2.bf16.msra.mxu0 0
      %415 = vmatprep.subr.bf16.mxu0 0
      %416 = vmatpush2.bf16.msra.mxu0 0
      %417 = vmatprep.mubr.bf16.mxu0 0
      %418 = vmatmul.mubr.bf16.gmra.mxu0 %v170
      %v419 = vpop.f32.mrf.mxu0
      %v420 = vadd.f32 %v208, %v419
      %v421 = vpop.f32.mrf.mxu0
      %v422 = vadd.f32 %v212, %v421
      %v423 = vpop.f32.mrf.mxu0
      %v424 = vpop.f32.mrf.mxu0
      %425 = vdwg.mxu0
      %426 = vmatprep.subr.bf16.mxu0 %v352
      %427 = vmatpush1.bf16.msra.mxu0 %v351
      %428 = vmatprep.subr.bf16.mxu0 %v348
      %429 = vmatpush1.bf16.msra.mxu0 %v347
      %430 = vmatprep.subr.bf16.mxu0 %v344
      %431 = vmatpush1.bf16.msra.mxu0 %v343
      %432 = vmatprep.subr.bf16.mxu0 %v340
      %433 = vmatpush1.bf16.msra.mxu0 %v339
      %434 = vmatprep.subr.bf16.mxu0 %v336
      %435 = vmatpush1.bf16.msra.mxu0 %v335
      %436 = vmatprep.subr.bf16.mxu0 %v332
      %437 = vmatpush1.bf16.msra.mxu0 %v331
      %438 = vmatprep.subr.bf16.mxu0 %v328
      %439 = vmatpush1.bf16.msra.mxu0 %v327
      %440 = vmatprep.subr.bf16.mxu0 %v324
      %441 = vmatpush1.bf16.msra.mxu0 %v323
      %442 = vmatprep.subr.bf16.mxu0 0
      %443 = vmatpush2.bf16.msra.mxu0 0
      %444 = vmatprep.subr.bf16.mxu0 0
      %445 = vmatpush2.bf16.msra.mxu0 0
      %446 = vmatprep.subr.bf16.mxu0 0
      %447 = vmatpush2.bf16.msra.mxu0 0
      %448 = vmatprep.subr.bf16.mxu0 0
      %449 = vmatpush2.bf16.msra.mxu0 0
      %450 = vmatprep.subr.bf16.mxu0 0
      %451 = vmatpush2.bf16.msra.mxu0 0
      %452 = vmatprep.subr.bf16.mxu0 0
      %453 = vmatpush2.bf16.msra.mxu0 0
      %454 = vmatprep.subr.bf16.mxu0 0
      %455 = vmatpush2.bf16.msra.mxu0 0
      %456 = vmatprep.subr.bf16.mxu0 0
      %457 = vmatpush2.bf16.msra.mxu0 0
      %458 = vmatprep.mubr.bf16.mxu0 0
      %459 = vmatmul.mubr.bf16.gmra.mxu0 %v170
      %v460 = vpop.f32.mrf.mxu0
      %v461 = vadd.f32 %v216, %v460
      %v462 = vpop.f32.mrf.mxu0
      %v463 = vadd.f32 %v220, %v462
      %v464 = vpop.f32.mrf.mxu0
      %v465 = vpop.f32.mrf.mxu0
      %466 = vdwg.mxu0
      %v467 = vmul.f32 %v420, 0.5
      %v468 = vmul.f32 %v422, 0.5
      %v469 = vmul.f32 %v461, 0.5
      %v470 = vmul.f32 %v463, 0.5
      %v471 = vmul.f32 %v420, 0.044715
      %v472 = vmul.f32 %v422, 0.044715
      %v473 = vmul.f32 %v461, 0.044715
      %v474 = vmul.f32 %v463, 0.044715
      %v475 = vmul.f32 %v471, %v420
      %v476 = vmul.f32 %v472, %v422
      %v477 = vmul.f32 %v473, %v461
      %v478 = vmul.f32 %v474, %v463
      %v479 = vmul.f32 %v475, %v420
      %v480 = vmul.f32 %v476, %v422
      %v481 = vmul.f32 %v477, %v461
      %v482 = vmul.f32 %v478, %v463
      %v483 = vadd.f32 %v420, %v479
      %v484 = vadd.f32 %v422, %v480
      %v485 = vadd.f32 %v461, %v481
      %v486 = vadd.f32 %v463, %v482
      %v487 = vmul.f32 %v483, 0.7978846
      %v488 = vmul.f32 %v484, 0.7978846
      %v489 = vmul.f32 %v485, 0.7978846
      %v490 = vmul.f32 %v486, 0.7978846
      %v491 = vtanh.pop %v487
      %v492 = vtanh.pop %v488
      %v493 = vtanh.pop %v489
      %v494 = vtanh.pop %v490
      %v495 = vadd.f32 %v491, 1.0
      %v496 = vadd.f32 %v492, 1.0
      %v497 = vadd.f32 %v493, 1.0
      %v498 = vadd.f32 %v494, 1.0
      %v499 = vmul.f32 %v467, %v495
      %v500 = vmul.f32 %v468, %v496
      %v501 = vmul.f32 %v469, %v497
      %v502 = vmul.f32 %v470, %v498
      %503 = vst [vmem:[%s167] sm:$0xff] %v499
      %504 = vst [vmem:[%s167 + $0x8] sm:$0xff] %v500
      %505 = vst [vmem:[%s167 + $0x10] sm:$0xff] %v501
      %506 = vst [vmem:[%s167 + $0x18] sm:$0xff] %v502
      %p507 = scmp.lt.s32.totalorder %s14, 1
      %s508 = scalar_select %p507, %s14, 1
      %s509 = smul.addr %s508, 4
      %s510 = smul.addr %s509, 8
      %s511 = scalar_lea.vmem %s3, %s510
      // Predicated region
      $region33: #{forward.16} parent=31 // pred_check
        %p512 = pneg %p100
      $region34: #{forward.16} parent=31 // pred_check_branch
        %514 = sbr.rel (%p512) target = $region36
      $region35: #{forward.16} parent=31 // pred_region
        _
      $region36: #{forward.16} parent=31 // pred_fallthru
        _
    $region32: #{forward.16} parent=5 // pred_fallthru
      _
    %p515 = scmp.le.s32.totalorder 2, %s9
    // Predicated region
    $region37: #{forward.16} parent=5 // pred_check
      %p516 = pneg %p515
    $region38: #{forward.16} parent=5 // pred_check_branch
      %518 = sbr.rel (%p516) target = $region40
    $region39: #{forward.16} parent=5 // pred_region
      %s519 = ssub.s32 %s9, 2
      // Predicated region
      $region41: #{forward.16} parent=39 // pred_check
        %p520 = pneg %p106
      $region42: #{forward.16} parent=39 // pred_check_branch
        %522 = sbr.rel (%p520) target = $region44
      $region43: #{forward.16} parent=39 // pred_region
        %p523 = scmp.lt.s32.totalorder %s15, 1
        %s524 = scalar_select %p523, %s15, 1
        %s525 = smul.addr %s524, 4
        %s526 = smul.addr %s525, 8
        %s527 = scalar_lea.vmem %s3, %s526
      $region44: #{forward.16} parent=39 // pred_fallthru
        _
    $region40: #{forward.16} parent=5 // pred_fallthru
      _
  $region6: #{forward.16} parent=0 // loop_footer
    %s13 = sadd.s32 1, %s9
  $region7: #{forward.16} parent=0 // loop_footer_branch
    %8 = sbr.rel target = $region3
  $region8: #{forward.16} parent=0 // loop_exit
    _

// kernel: forward.23
$region0: #{forward.23}
  #allocation0 [shape = 'u32[]', space=smem, size = 0x4, offset = 0x4, fixed_abs, tag = 'smem constant byte address 0x4 - core index']
  #allocation1 [shape = 'u32[144,128]{1,0:T(1,128)}', space=vmem, size = 0x12000, scoped, tag = 'internal scratch']
  #allocation2 [shape = 'f32[1,1]{1,0:T(1,128)S(1)}', space=vmem, size = 0x200, scoped, tag = 'scoped memory for forward.23']
  %s0 = inlined_call_operand.vmem [shape: f32[2,128], index: 0, kind: input, shape index: {}]
  %s1 = inlined_call_operand.vmem [shape: bf16[128,128], index: 1, kind: input, shape index: {}]
  %s2 = inlined_call_operand.vmem [shape: f32[1,128], index: 2, kind: input, shape index: {}]
  %s3 = inlined_call_operand.vmem [shape: f32[1,128], index: 3, kind: input, shape index: {}]
  %s4 = inlined_call_operand.<no memory space> [shape: f32[1,1], index: 4, kind: input, shape index: {}]
  %s5 = inlined_call_operand.hbm [shape: f32[2,128], index: 5, kind: output, shape index: {0}]
  %s6 = inlined_call_operand.vmem [shape: f32[2,1], index: 6, kind: output, shape index: {1}]
  %7 = xla_tuple %s5, %s6
  %s8 = sld [smem:[#allocation0]]
  $region38: #{forward.23} parent=0
    _
  %s10 = ssub.s32 1, %s8
  %s11 = scalar_select 0, %s10, %s8
  %v12 = vstv %s4
  %13 = vst [vmem:[#allocation2] sm:$0x1] %v12
  $region1: #{forward.23} parent=0
    #allocation3 [shape = 'u8[1024]{0}', space=vmem, size = 0x400, scoped, tag = 'output window, operand 0, single buffered']
    #allocation4 [shape = 's32[1]{0}', space=sflag, size = 0x4, scoped, tag = 'scoped memory for forward.23']
    %14 = vsyncpa [#allocation4], 0
    // Predicated region
    $region2: #{forward.23} parent=1 // pred_check
      _
    $region3: #{forward.23} parent=1 // pred_check_branch
      %16 = sbr.rel (0) target = $region5
    $region4: #{forward.23} parent=1 // pred_region
      _
    $region5: #{forward.23} parent=1 // pred_fallthru
      _
    // Predicated region
    $region6: #{forward.23} parent=1 // pred_check
      _
    $region7: #{forward.23} parent=1 // pred_check_branch
      %18 = sbr.rel (0) target = $region9
    $region8: #{forward.23} parent=1 // pred_region
      _
    $region9: #{forward.23} parent=1 // pred_fallthru
      _
    // Predicated region
    $region10: #{forward.23} parent=1 // pred_check
      _
    $region11: #{forward.23} parent=1 // pred_check_branch
      %20 = sbr.rel (0) target = $region13
    $region12: #{forward.23} parent=1 // pred_region
      _
    $region13: #{forward.23} parent=1 // pred_fallthru
      _
    // Predicated region
    $region14: #{forward.23} parent=1 // pred_check
      _
    $region15: #{forward.23} parent=1 // pred_check_branch
      %22 = sbr.rel (0) target = $region17
    $region16: #{forward.23} parent=1 // pred_region
      _
    $region17: #{forward.23} parent=1 // pred_fallthru
      _
    // Predicated region
    $region18: #{forward.23} parent=1 // pred_check
      _
    $region19: #{forward.23} parent=1 // pred_check_branch
      %24 = sbr.rel (0) target = $region21
    $region20: #{forward.23} parent=1 // pred_region
      _
    $region21: #{forward.23} parent=1 // pred_fallthru
      _
    %v26 = vld [vmem:[%s0] sm:$0x3]
    %v27 = vpack.c.bf16 %v26, %v26
    %v28 = vld [vmem:[%s1] sm:$0xf]
    %v29 = vld [vmem:[%s1 + $0x4] sm:$0xf]
    %v30 = vld [vmem:[%s1 + $0x8] sm:$0xf]
    %v31 = vld [vmem:[%s1 + $0xc] sm:$0xf]
    %v32 = vld [vmem:[%s1 + $0x10] sm:$0xf]
    %v33 = vld [vmem:[%s1 + $0x14] sm:$0xf]
    %v34 = vld [vmem:[%s1 + $0x18] sm:$0xf]
    %v35 = vld [vmem:[%s1 + $0x1c] sm:$0xf]
    %v36 = vld [vmem:[%s1 + $0x20] sm:$0xf]
    %v37 = vld [vmem:[%s1 + $0x24] sm:$0xf]
    %v38 = vld [vmem:[%s1 + $0x28] sm:$0xf]
    %v39 = vld [vmem:[%s1 + $0x2c] sm:$0xf]
    %v40 = vld [vmem:[%s1 + $0x30] sm:$0xf]
    %v41 = vld [vmem:[%s1 + $0x34] sm:$0xf]
    %v42 = vld [vmem:[%s1 + $0x38] sm:$0xf]
    %v43 = vld [vmem:[%s1 + $0x3c] sm:$0xf]
    %v44 = vld [vmem:[%s2] sm:$0x1]
    %v46 = vlaneseq
    %v47 = vshrl.u32 %v46, 7
    %v48 = vsub.s32 0, %v47
    %v49 = vrot.slane %v44, %v48
    %v67 = vunpack.c.l.b16 %v28
    %v68 = vunpack.c.l.b16 %v29
    %v69 = vunpack.c.l.b16 %v30
    %v70 = vunpack.c.l.b16 %v31
    %v71 = vunpack.c.l.b16 %v32
    %v72 = vunpack.c.l.b16 %v33
    %v73 = vunpack.c.l.b16 %v34
    %v74 = vunpack.c.l.b16 %v35
    %v75 = vunpack.c.l.b16 %v36
    %v76 = vunpack.c.l.b16 %v37
    %v77 = vunpack.c.l.b16 %v38
    %v78 = vunpack.c.l.b16 %v39
    %v79 = vunpack.c.l.b16 %v40
    %v80 = vunpack.c.l.b16 %v41
    %v81 = vunpack.c.l.b16 %v42
    %v82 = vunpack.c.l.b16 %v43
    %v83 = vpack.c.b16 %v68, %v67
    %v84 = vpack.c.b16 %v70, %v69
    %v85 = vpack.c.b16 %v72, %v71
    %v86 = vpack.c.b16 %v74, %v73
    %v87 = vpack.c.b16 %v76, %v75
    %v88 = vpack.c.b16 %v78, %v77
    %v89 = vpack.c.b16 %v80, %v79
    %v90 = vpack.c.b16 %v82, %v81
    %99 = vmatprep.subr.bf16.mxu0 0
    %100 = vmatpush1.bf16.msra.mxu0 %v90
    %101 = vmatprep.subr.bf16.mxu0 0
    %102 = vmatpush1.bf16.msra.mxu0 %v89
    %103 = vmatprep.subr.bf16.mxu0 0
    %104 = vmatpush1.bf16.msra.mxu0 %v88
    %105 = vmatprep.subr.bf16.mxu0 0
    %106 = vmatpush1.bf16.msra.mxu0 %v87
    %107 = vmatprep.subr.bf16.mxu0 0
    %108 = vmatpush1.bf16.msra.mxu0 %v86
    %109 = vmatprep.subr.bf16.mxu0 0
    %110 = vmatpush1.bf16.msra.mxu0 %v85
    %111 = vmatprep.subr.bf16.mxu0 0
    %112 = vmatpush1.bf16.msra.mxu0 %v84
    %113 = vmatprep.subr.bf16.mxu0 0
    %114 = vmatpush1.bf16.msra.mxu0 %v83
    %115 = vmatprep.subr.bf16.mxu0 0
    %116 = vmatpush2.bf16.msra.mxu0 0
    %117 = vmatprep.subr.bf16.mxu0 0
    %118 = vmatpush2.bf16.msra.mxu0 0
    %119 = vmatprep.subr.bf16.mxu0 0
    %120 = vmatpush2.bf16.msra.mxu0 0
    %121 = vmatprep.subr.bf16.mxu0 0
    %122 = vmatpush2.bf16.msra.mxu0 0
    %123 = vmatprep.subr.bf16.mxu0 0
    %124 = vmatpush2.bf16.msra.mxu0 0
    %125 = vmatprep.subr.bf16.mxu0 0
    %126 = vmatpush2.bf16.msra.mxu0 0
    %127 = vmatprep.subr.bf16.mxu0 0
    %128 = vmatpush2.bf16.msra.mxu0 0
    %129 = vmatprep.subr.bf16.mxu0 0
    %130 = vmatpush2.bf16.msra.mxu0 0
    %131 = vmatprep.mubr.bf16.mxu0 0
    %132 = vmatmul.mubr.bf16.gmra.mxu0 %v27
    %v133 = vpop.f32.mrf.mxu0
    %v134 = vadd.f32 %v49, %v133
    %v135 = vpop.f32.mrf.mxu0
    %v136 = vpop.f32.mrf.mxu0
    %v137 = vpop.f32.mrf.mxu0
    %138 = vdwg.mxu0
    %v139 = vtanh.pop %v134
    %140 = vst [vmem:[#allocation3] sm:$0x3] %v139
    %v141 = vld [vmem:[%s3] sm:$0x1]
    %v143 = vlaneseq
    %v144 = vshrl.u32 %v143, 7
    %v145 = vsub.s32 0, %v144
    %v146 = vrot.slane %v141, %v145
    %v148 = vmul.f32 %v139, %v146
    %vm149 = vcmask 1041408
    %v150 = vsel %vm149, %v148, 0.0
    %151 = vadd.xlane.f32.xlu0 %v150
    %v152 = vpop.xlane.xlu0 %151
    %v153 = vld [vmem:[#allocation2] sm:$0x1]
    %v155 = vlaneseq
    %v156 = vshrl.u32 %v155, 7
    %v157 = vsub.s32 0, %v156
    %v158 = vrot.slane %v153, %v157
    %v160 = vadd.f32 %v152, %v158
    %vm161 = vcmask 1024
    %162 = vst.msk [vmem:[%s6] sm:$0x3] %vm161, %v160
    // Predicated region
    $region22: #{forward.23} parent=1 // pred_check
      _
    $region23: #{forward.23} parent=1 // pred_check_branch
      %164 = sbr.rel (0) target = $region25
    $region24: #{forward.23} parent=1 // pred_region
      %s166 = ssub.s32 32, 32
      %167 = vsyncadd [#allocation4], %s166
      %s169 = sshll.u32 [#allocation3], 4
      %s170 = int_to_ptr.vmem [resolvable:$true] %s169
      %172 = dma.vmem_to_hbm [thread:$0]  %s170, 32, %s5, [#allocation4]
    $region25: #{forward.23} parent=1 // pred_fallthru
      _
    // Predicated region
    $region26: #{forward.23} parent=1 // pred_check
      _
    $region27: #{forward.23} parent=1 // pred_check_branch
      %174 = sbr.rel (0) target = $region29
    $region28: #{forward.23} parent=1 // pred_region
      _
    $region29: #{forward.23} parent=1 // pred_fallthru
      _
    // Predicated region
    $region30: #{forward.23} parent=1 // pred_check
      _
    $region31: #{forward.23} parent=1 // pred_check_branch
      %176 = sbr.rel (0) target = $region33
    $region32: #{forward.23} parent=1 // pred_region
      %177 = dma.done [#allocation4], 32
    $region33: #{forward.23} parent=1 // pred_fallthru
      _
    // Predicated region
    $region34: #{forward.23} parent=1 // pred_check
      _
    $region35: #{forward.23} parent=1 // pred_check_branch
      %179 = sbr.rel (0) target = $region37
    $region36: #{forward.23} parent=1 // pred_region
      _
    $region37: #{forward.23} parent=1 // pred_fallthru
      _
    %180 = vsyncpa [#allocation4], 1

// kernel: forward.17
$region0: #{forward.17}
  #allocation0 [shape = 'u32[]', space=smem, size = 0x4, offset = 0x4, fixed_abs, tag = 'smem constant byte address 0x4 - core index']
  #allocation1 [shape = 'u32[144,128]{1,0:T(1,128)}', space=vmem, size = 0x12000, scoped, tag = 'internal scratch']
  %s0 = inlined_call_operand.vmem [shape: f32[16,512], index: 0, kind: input, shape index: {}]
  %s1 = inlined_call_operand.vmem [shape: bf16[512,128], index: 1, kind: input, shape index: {}]
  %s2 = inlined_call_operand.vmem [shape: f32[1,128], index: 2, kind: input, shape index: {}]
  %s3 = inlined_call_operand.vmem [shape: f32[16,128], index: 3, kind: input, shape index: {}, may-alias: {3,6}]
  %s4 = inlined_call_operand.vmem [shape: f32[1,128], index: 4, kind: input, shape index: {}]
  %s5 = inlined_call_operand.vmem [shape: f32[1,128], index: 5, kind: input, shape index: {}]
  %s6 = inlined_call_operand.vmem [shape: f32[16,128], index: 6, kind: output, shape index: {}, may-alias: {3,6}]
  %s7 = sld [smem:[#allocation0]]
  $region57: #{forward.17} parent=0
    _
  %s9 = ssub.s32 1, %s7
  %s10 = scalar_select 0, %s9, %s7
  loop: start=0, step=1, limit=4
  $region2: #{forward.17} parent=0 // loop_pre_header
    _
  $region3: #{forward.17} parent=0 // loop_header
    %s12 = sphi 0, %s16
    %p13 = scmp.ge.s32.totalorder %s12, 4
    %s22 = sphi 0, %s24
    %s25 = sphi 0, %s22
    %s26 = sphi 0, %s25
    %s42 = sphi 0, %s26
    %s46 = sphi 0, %s46
    %s48 = sphi 0, %s46
    %s49 = sphi 0, %s48
    %s63 = sphi 0, %s49
    %s67 = sphi 0, %s67
    %s69 = sphi 0, %s67
    %s70 = sphi 0, %s69
    %s84 = sphi 0, %s70
    %s90 = sphi 0, %s92
    %s93 = sphi 0, %s90
    %s94 = sphi 0, %s93
    %s110 = sphi 0, %s94
    %s114 = sphi 0, %s114
    %s116 = sphi 0, %s114
    %s117 = sphi 0, %s116
    %s131 = sphi 0, %s117
    %s135 = sphi 0, %s135
    %s137 = sphi 0, %s135
    %s138 = sphi 0, %s137
    %s152 = sphi 0, %s138
    %s158 = sphi 0, %s160
    %s161 = sphi 0, %s158
    %s162 = sphi 0, %s161
    %s178 = sphi 0, %s162
  $region4: #{forward.17} parent=0 // loop_header_branch
    %15 = sbr.rel (%p13) target = $region8
  $region5: #{forward.17} parent=0 // loop_body
    %s17 = ssub.s32 %s12, 1
    %s18 = ssub.s32 %s12, 2
    %s19 = sadd.s32 %s12, 1
    %s20 = ssub.s32 %s12, %s19
    %p21 = scmp.eq.s32.totalorder %s20, 0
    %s23 = sadd.s32 %s22, 1
    %s24 = scalar_select %p21, %s22, %s23
    %p27 = pneg %p21
    %p28 = scmp.eq.s32.totalorder %s12, 1
    %p29 = por %p27, %p28
    %p30 = scmp.ne.s32.totalorder %s22, %s25
    %p31 = scmp.eq.s32.totalorder %s12, 0
    %p32 = por %p30, %p31
    %p33 = scmp.ne.s32.totalorder %s22, %s25
    %p34 = scmp.eq.s32.totalorder %s17, 1
    %p35 = por %p33, %p34
    %p36 = scmp.ne.s32.totalorder %s25, %s26
    %p37 = scmp.eq.s32.totalorder %s17, 0
    %p38 = por %p36, %p37
    %p39 = scmp.ne.s32.totalorder %s25, %s26
    %p40 = scmp.eq.s32.totalorder %s18, 1
    %p41 = por %p39, %p40
    %p43 = scmp.ne.s32.totalorder %s26, %s42
    %p44 = scmp.eq.s32.totalorder %s18, 0
    %p45 = por %p43, %p44
    %s47 = sadd.s32 %s46, 1
    %p50 = scmp.eq.s32.totalorder %s12, 1
    %p51 = scmp.ne.s32.totalorder %s46, %s48
    %p52 = scmp.eq.s32.totalorder %s12, 0
    %p53 = por %p51, %p52
    %p54 = scmp.ne.s32.totalorder %s46, %s48
    %p55 = scmp.eq.s32.totalorder %s17, 1
    %p56 = por %p54, %p55
    %p57 = scmp.ne.s32.totalorder %s48, %s49
    %p58 = scmp.eq.s32.totalorder %s17, 0
    %p59 = por %p57, %p58
    %p60 = scmp.ne.s32.totalorder %s48, %s49
    %p61 = scmp.eq.s32.totalorder %s18, 1
    %p62 = por %p60, %p61
    %p64 = scmp.ne.s32.totalorder %s49, %s63
    %p65 = scmp.eq.s32.totalorder %s18, 0
    %p66 = por %p64, %p65
    %s68 = sadd.s32 %s67, 1
    %p71 = scmp.eq.s32.totalorder %s12, 1
    %p72 = scmp.ne.s32.totalorder %s67, %s69
    %p73 = scmp.eq.s32.totalorder %s12, 0
    %p74 = por %p72, %p73
    %p75 = scmp.ne.s32.totalorder %s67, %s69
    %p76 = scmp.eq.s32.totalorder %s17, 1
    %p77 = por %p75, %p76
    %p78 = scmp.ne.s32.totalorder %s69, %s70
    %p79 = scmp.eq.s32.totalorder %s17, 0
    %p80 = por %p78, %p79
    %p81 = scmp.ne.s32.totalorder %s69, %s70
    %p82 = scmp.eq.s32.totalorder %s18, 1
    %p83 = por %p81, %p82
    %p85 = scmp.ne.s32.totalorder %s70, %s84
    %p86 = scmp.eq.s32.totalorder %s18, 0
    %p87 = por %p85, %p86
    %s88 = ssub.s32 %s12, %s19
    %p89 = scmp.eq.s32.totalorder %s88, 0
    %s91 = sadd.s32 %s90, 1
    %s92 = scalar_select %p89, %s90, %s91
    %p95 = pneg %p89
    %p96 = scmp.eq.s32.totalorder %s12, 1
    %p97 = por %p95, %p96
    %p98 = scmp.ne.s32.totalorder %s90, %s93
    %p99 = scmp.eq.s32.totalorder %s12, 0
    %p100 = por %p98, %p99
    %p101 = scmp.ne.s32.totalorder %s90, %s93
    %p102 = scmp.eq.s32.totalorder %s17, 1
    %p103 = por %p101, %p102
    %p104 = scmp.ne.s32.totalorder %s93, %s94
    %p105 = scmp.eq.s32.totalorder %s17, 0
    %p106 = por %p104, %p105
    %p107 = scmp.ne.s32.totalorder %s93, %s94
    %p108 = scmp.eq.s32.totalorder %s18, 1
    %p109 = por %p107, %p108
    %p111 = scmp.ne.s32.totalorder %s94, %s110
    %p112 = scmp.eq.s32.totalorder %s18, 0
    %p113 = por %p111, %p112
    %s115 = sadd.s32 %s114, 1
    %p118 = scmp.eq.s32.totalorder %s12, 1
    %p119 = scmp.ne.s32.totalorder %s114, %s116
    %p120 = scmp.eq.s32.totalorder %s12, 0
    %p121 = por %p119, %p120
    %p122 = scmp.ne.s32.totalorder %s114, %s116
    %p123 = scmp.eq.s32.totalorder %s17, 1
    %p124 = por %p122, %p123
    %p125 = scmp.ne.s32.totalorder %s116, %s117
    %p126 = scmp.eq.s32.totalorder %s17, 0
    %p127 = por %p125, %p126
    %p128 = scmp.ne.s32.totalorder %s116, %s117
    %p129 = scmp.eq.s32.totalorder %s18, 1
    %p130 = por %p128, %p129
    %p132 = scmp.ne.s32.totalorder %s117, %s131
    %p133 = scmp.eq.s32.totalorder %s18, 0
    %p134 = por %p132, %p133
    %s136 = sadd.s32 %s135, 1
    %p139 = scmp.eq.s32.totalorder %s12, 1
    %p140 = scmp.ne.s32.totalorder %s135, %s137
    %p141 = scmp.eq.s32.totalorder %s12, 0
    %p142 = por %p140, %p141
    %p143 = scmp.ne.s32.totalorder %s135, %s137
    %p144 = scmp.eq.s32.totalorder %s17, 1
    %p145 = por %p143, %p144
    %p146 = scmp.ne.s32.totalorder %s137, %s138
    %p147 = scmp.eq.s32.totalorder %s17, 0
    %p148 = por %p146, %p147
    %p149 = scmp.ne.s32.totalorder %s137, %s138
    %p150 = scmp.eq.s32.totalorder %s18, 1
    %p151 = por %p149, %p150
    %p153 = scmp.ne.s32.totalorder %s138, %s152
    %p154 = scmp.eq.s32.totalorder %s18, 0
    %p155 = por %p153, %p154
    %s156 = ssub.s32 %s12, %s19
    %p157 = scmp.eq.s32.totalorder %s156, 0
    %s159 = sadd.s32 %s158, 1
    %s160 = scalar_select %p157, %s158, %s159
    %p163 = pneg %p157
    %p164 = scmp.eq.s32.totalorder %s12, 1
    %p165 = por %p163, %p164
    %p166 = scmp.ne.s32.totalorder %s158, %s161
    %p167 = scmp.eq.s32.totalorder %s12, 0
    %p168 = por %p166, %p167
    %p169 = scmp.ne.s32.totalorder %s158, %s161
    %p170 = scmp.eq.s32.totalorder %s17, 1
    %p171 = por %p169, %p170
    %p172 = scmp.ne.s32.totalorder %s161, %s162
    %p173 = scmp.eq.s32.totalorder %s17, 0
    %p174 = por %p172, %p173
    %p175 = scmp.ne.s32.totalorder %s161, %s162
    %p176 = scmp.eq.s32.totalorder %s18, 1
    %p177 = por %p175, %p176
    %p179 = scmp.ne.s32.totalorder %s162, %s178
    %p180 = scmp.eq.s32.totalorder %s18, 0
    %p181 = por %p179, %p180
    %p182 = scmp.le.s32.totalorder 1, %s12
    %p183 = scmp.lt.s32.totalorder %s12, 3
    %p184 = pnand %p182, %p183
    %p185 = pneg %p184
    // Predicated region
    $region9: #{forward.17} parent=5 // pred_check
      _
    $region10: #{forward.17} parent=5 // pred_check_branch
      %187 = sbr.rel (%p184) target = $region12
    $region11: #{forward.17} parent=5 // pred_region
      %s188 = ssub.s32 %s12, 1
      // Predicated region
      $region13: #{forward.17} parent=11 // pred_check
        %p189 = pneg %p59
      $region14: #{forward.17} parent=11 // pred_check_branch
        %191 = sbr.rel (%p189) target = $region16
      $region15: #{forward.17} parent=11 // pred_region
        _
      $region16: #{forward.17} parent=11 // pred_fallthru
        _
      // Predicated region
      $region17: #{forward.17} parent=11 // pred_check
        %p192 = pneg %p80
      $region18: #{forward.17} parent=11 // pred_check_branch
        %194 = sbr.rel (%p192) target = $region20
      $region19: #{forward.17} parent=11 // pred_region
        _
      $region20: #{forward.17} parent=11 // pred_fallthru
        _
      // Predicated region
      $region21: #{forward.17} parent=11 // pred_check
        %p195 = pneg %p127
      $region22: #{forward.17} parent=11 // pred_check_branch
        %197 = sbr.rel (%p195) target = $region24
      $region23: #{forward.17} parent=11 // pred_region
        _
      $region24: #{forward.17} parent=11 // pred_fallthru
        _
      // Predicated region
      $region25: #{forward.17} parent=11 // pred_check
        %p198 = pneg %p148
      $region26: #{forward.17} parent=11 // pred_check_branch
        %200 = sbr.rel (%p198) target = $region28
      $region27: #{forward.17} parent=11 // pred_region
        _
      $region28: #{forward.17} parent=11 // pred_fallthru
        _
    $region12: #{forward.17} parent=5 // pred_fallthru
      _
    %p201 = scmp.lt.s32.totalorder %s12, 2
    // Predicated region
    $region29: #{forward.17} parent=5 // pred_check
      %p202 = pneg %p201
    $region30: #{forward.17} parent=5 // pred_check_branch
      %204 = sbr.rel (%p202) target = $region32
    $region31: #{forward.17} parent=5 // pred_region
      // Predicated region
      $region33: #{forward.17} parent=31 // pred_check
        %p205 = pneg %p32
      $region34: #{forward.17} parent=31 // pred_check_branch
        %207 = sbr.rel (%p205) target = $region36
      $region35: #{forward.17} parent=31 // pred_region
        %p208 = scmp.lt.s32.totalorder %s12, 1
        %s209 = scalar_select %p208, %s12, 1
        %s210 = smul.addr %s209, 4
        %s211 = smul.addr %s210, 8
        %s212 = scalar_lea.vmem %s0, %s211
      $region36: #{forward.17} parent=31 // pred_fallthru
        _
      // Predicated region
      $region37: #{forward.17} parent=31 // pred_check
        %p213 = pneg %p100
      $region38: #{forward.17} parent=31 // pred_check_branch
        %215 = sbr.rel (%p213) target = $region40
      $region39: #{forward.17} parent=31 // pred_region
        %p216 = scmp.lt.s32.totalorder %s12, 1
        %s217 = scalar_select %p216, %s12, 1
        %s218 = smul.addr %s217, 8
        %s219 = scalar_lea.vmem %s3, %s218
      $region40: #{forward.17} parent=31 // pred_fallthru
        _
    $region32: #{forward.17} parent=5 // pred_fallthru
      _
    %p220 = scmp.le.s32.totalorder 1, %s12
    %p221 = scmp.lt.s32.totalorder %s12, 3
    %p222 = pnand %p220, %p221
    %p223 = pneg %p222
    // Predicated region
    $region41: #{forward.17} parent=5 // pred_check
      _
    $region42: #{forward.17} parent=5 // pred_check_branch
      %225 = sbr.rel (%p222) target = $region44
    $region43: #{forward.17} parent=5 // pred_region
      %s226 = ssub.s32 %s12, 1
      %p227 = scmp.lt.s32.totalorder %s17, 1
      %s228 = scalar_select %p227, %s17, 1
      %s229 = smul.addr %s228, 4
      %s230 = smul.addr %s229, 8
      %s231 = scalar_lea.vmem %s0, %s230
      %p232 = pneg %p38
      %p233 = pneg %p35
      %p234 = pneg %p59
      %p235 = pneg %p56
      %p236 = pneg %p80
      %p237 = pneg %p77
      %p238 = scmp.lt.s32.totalorder %s17, 1
      %s239 = scalar_select %p238, %s17, 1
      %s240 = smul.addr %s239, 8
      %s241 = scalar_lea.vmem %s3, %s240
      %p242 = pneg %p106
      %p243 = pneg %p103
      %p244 = pneg %p127
      %p245 = pneg %p124
      %p246 = pneg %p148
      %p247 = pneg %p145
      %p248 = pneg %p174
      %p249 = pneg %p171
      %p250 = scmp.lt.s32.totalorder %s17, 1
      %s251 = scalar_select %p250, %s17, 1
      %s252 = smul.addr %s251, 8
      %s253 = scalar_lea.vmem %s6, %s252
      %p254 = scmp.lt.s32.totalorder %s17, 1
      %s255 = scalar_select %p254, %s17, 1
      %s256 = smul.addr %s255, 4
      %s257 = smul.addr %s256, 8
      %s258 = scalar_lea.vmem %s0, %s257
      %p259 = scmp.lt.s32.totalorder %s17, 1
      %s260 = scalar_select %p259, %s17, 1
      %s261 = smul.addr %s260, 8
      %s262 = scalar_lea.vmem %s3, %s261
      %p263 = scmp.lt.s32.totalorder %s17, 1
      %s264 = scalar_select %p263, %s17, 1
      %s265 = smul.addr %s264, 8
      %s266 = scalar_lea.vmem %s6, %s265
      %v268 = vld [vmem:[%s258] sm:$0xff]
      %v269 = vld [vmem:[%s258 + $0x8] sm:$0xff]
      %v270 = vld [vmem:[%s258 + $0x10] sm:$0xff]
      %v271 = vld [vmem:[%s258 + $0x18] sm:$0xff]
      %v272 = vpack.c.bf16 %v268, %v268
      %v273 = vpack.c.bf16 %v269, %v269
      %v274 = vpack.c.bf16 %v270, %v270
      %v275 = vpack.c.bf16 %v271, %v271
      %v276 = vld [vmem:[%s1] sm:$0xf]
      %v277 = vld [vmem:[%s1 + $0x4] sm:$0xf]
      %v278 = vld [vmem:[%s1 + $0x8] sm:$0xf]
      %v279 = vld [vmem:[%s1 + $0xc] sm:$0xf]
      %v280 = vld [vmem:[%s1 + $0x10] sm:$0xf]
      %v281 = vld [vmem:[%s1 + $0x14] sm:$0xf]
      %v282 = vld [vmem:[%s1 + $0x18] sm:$0xf]
      %v283 = vld [vmem:[%s1 + $0x1c] sm:$0xf]
      %v284 = vld [vmem:[%s1 + $0x20] sm:$0xf]
      %v285 = vld [vmem:[%s1 + $0x24] sm:$0xf]
      %v286 = vld [vmem:[%s1 + $0x28] sm:$0xf]
      %v287 = vld [vmem:[%s1 + $0x2c] sm:$0xf]
      %v288 = vld [vmem:[%s1 + $0x30] sm:$0xf]
      %v289 = vld [vmem:[%s1 + $0x34] sm:$0xf]
      %v290 = vld [vmem:[%s1 + $0x38] sm:$0xf]
      %v291 = vld [vmem:[%s1 + $0x3c] sm:$0xf]
      %v292 = vld [vmem:[%s1 + $0x40] sm:$0xf]
      %v293 = vld [vmem:[%s1 + $0x44] sm:$0xf]
      %v294 = vld [vmem:[%s1 + $0x48] sm:$0xf]
      %v295 = vld [vmem:[%s1 + $0x4c] sm:$0xf]
      %v296 = vld [vmem:[%s1 + $0x50] sm:$0xf]
      %v297 = vld [vmem:[%s1 + $0x54] sm:$0xf]
      %v298 = vld [vmem:[%s1 + $0x58] sm:$0xf]
      %v299 = vld [vmem:[%s1 + $0x5c] sm:$0xf]
      %v300 = vld [vmem:[%s1 + $0x60] sm:$0xf]
      %v301 = vld [vmem:[%s1 + $0x64] sm:$0xf]
      %v302 = vld [vmem:[%s1 + $0x68] sm:$0xf]
      %v303 = vld [vmem:[%s1 + $0x6c] sm:$0xf]
      %v304 = vld [vmem:[%s1 + $0x70] sm:$0xf]
      %v305 = vld [vmem:[%s1 + $0x74] sm:$0xf]
      %v306 = vld [vmem:[%s1 + $0x78] sm:$0xf]
      %v307 = vld [vmem:[%s1 + $0x7c] sm:$0xf]
      %v308 = vld [vmem:[%s1 + $0x80] sm:$0xf]
      %v309 = vld [vmem:[%s1 + $0x84] sm:$0xf]
      %v310 = vld [vmem:[%s1 + $0x88] sm:$0xf]
      %v311 = vld [vmem:[%s1 + $0x8c] sm:$0xf]
      %v312 = vld [vmem:[%s1 + $0x90] sm:$0xf]
      %v313 = vld [vmem:[%s1 + $0x94] sm:$0xf]
      %v314 = vld [vmem:[%s1 + $0x98] sm:$0xf]
      %v315 = vld [vmem:[%s1 + $0x9c] sm:$0xf]
      %v316 = vld [vmem:[%s1 + $0xa0] sm:$0xf]
      %v317 = vld [vmem:[%s1 + $0xa4] sm:$0xf]
      %v318 = vld [vmem:[%s1 + $0xa8] sm:$0xf]
      %v319 = vld [vmem:[%s1 + $0xac] sm:$0xf]
      %v320 = vld [vmem:[%s1 + $0xb0] sm:$0xf]
      %v321 = vld [vmem:[%s1 + $0xb4] sm:$0xf]
      %v322 = vld [vmem:[%s1 + $0xb8] sm:$0xf]
      %v323 = vld [vmem:[%s1 + $0xbc] sm:$0xf]
      %v324 = vld [vmem:[%s1 + $0xc0] sm:$0xf]
      %v325 = vld [vmem:[%s1 + $0xc4] sm:$0xf]
      %v326 = vld [vmem:[%s1 + $0xc8] sm:$0xf]
      %v327 = vld [vmem:[%s1 + $0xcc] sm:$0xf]
      %v328 = vld [vmem:[%s1 + $0xd0] sm:$0xf]
      %v329 = vld [vmem:[%s1 + $0xd4] sm:$0xf]
      %v330 = vld [vmem:[%s1 + $0xd8] sm:$0xf]
      %v331 = vld [vmem:[%s1 + $0xdc] sm:$0xf]
      %v332 = vld [vmem:[%s1 + $0xe0] sm:$0xf]
      %v333 = vld [vmem:[%s1 + $0xe4] sm:$0xf]
      %v334 = vld [vmem:[%s1 + $0xe8] sm:$0xf]
      %v335 = vld [vmem:[%s1 + $0xec] sm:$0xf]
      %v336 = vld [vmem:[%s1 + $0xf0] sm:$0xf]
      %v337 = vld [vmem:[%s1 + $0xf4] sm:$0xf]
      %v338 = vld [vmem:[%s1 + $0xf8] sm:$0xf]
      %v339 = vld [vmem:[%s1 + $0xfc] sm:$0xf]
      %v340 = vld [vmem:[%s2] sm:$0x1]
      %v342 = vlaneseq
      %v343 = vshrl.u32 %v342, 7
      %v344 = vsub.s32 0, %v343
      %v345 = vrot.slane %v340, %v344
      %v411 = vunpack.c.l.b16 %v276
      %v412 = vunpack.c.l.b16 %v277
      %v413 = vunpack.c.l.b16 %v278
      %v414 = vunpack.c.l.b16 %v279
      %v415 = vunpack.c.l.b16 %v280
      %v416 = vunpack.c.l.b16 %v281
      %v417 = vunpack.c.l.b16 %v282
      %v418 = vunpack.c.l.b16 %v283
      %v419 = vunpack.c.l.b16 %v284
      %v420 = vunpack.c.l.b16 %v285
      %v421 = vunpack.c.l.b16 %v286
      %v422 = vunpack.c.l.b16 %v287
      %v423 = vunpack.c.l.b16 %v288
      %v424 = vunpack.c.l.b16 %v289
      %v425 = vunpack.c.l.b16 %v290
      %v426 = vunpack.c.l.b16 %v291
      %v427 = vunpack.c.l.b16 %v292
      %v428 = vunpack.c.l.b16 %v293
      %v429 = vunpack.c.l.b16 %v294
      %v430 = vunpack.c.l.b16 %v295
      %v431 = vunpack.c.l.b16 %v296
      %v432 = vunpack.c.l.b16 %v297
      %v433 = vunpack.c.l.b16 %v298
      %v434 = vunpack.c.l.b16 %v299
      %v435 = vunpack.c.l.b16 %v300
      %v436 = vunpack.c.l.b16 %v301
      %v437 = vunpack.c.l.b16 %v302
      %v438 = vunpack.c.l.b16 %v303
      %v439 = vunpack.c.l.b16 %v304
      %v440 = vunpack.c.l.b16 %v305
      %v441 = vunpack.c.l.b16 %v306
      %v442 = vunpack.c.l.b16 %v307
      %v443 = vunpack.c.l.b16 %v308
      %v444 = vunpack.c.l.b16 %v309
      %v445 = vunpack.c.l.b16 %v310
      %v446 = vunpack.c.l.b16 %v311
      %v447 = vunpack.c.l.b16 %v312
      %v448 = vunpack.c.l.b16 %v313
      %v449 = vunpack.c.l.b16 %v314
      %v450 = vunpack.c.l.b16 %v315
      %v451 = vunpack.c.l.b16 %v316
      %v452 = vunpack.c.l.b16 %v317
      %v453 = vunpack.c.l.b16 %v318
      %v454 = vunpack.c.l.b16 %v319
      %v455 = vunpack.c.l.b16 %v320
      %v456 = vunpack.c.l.b16 %v321
      %v457 = vunpack.c.l.b16 %v322
      %v458 = vunpack.c.l.b16 %v323
      %v459 = vunpack.c.l.b16 %v324
      %v460 = vunpack.c.l.b16 %v325
      %v461 = vunpack.c.l.b16 %v326
      %v462 = vunpack.c.l.b16 %v327
      %v463 = vunpack.c.l.b16 %v328
      %v464 = vunpack.c.l.b16 %v329
      %v465 = vunpack.c.l.b16 %v330
      %v466 = vunpack.c.l.b16 %v331
      %v467 = vunpack.c.l.b16 %v332
      %v468 = vunpack.c.l.b16 %v333
      %v469 = vunpack.c.l.b16 %v334
      %v470 = vunpack.c.l.b16 %v335
      %v471 = vunpack.c.l.b16 %v336
      %v472 = vunpack.c.l.b16 %v337
      %v473 = vunpack.c.l.b16 %v338
      %v474 = vunpack.c.l.b16 %v339
      %v475 = vpack.c.b16 %v412, %v411
      %v476 = vpack.c.b16 %v414, %v413
      %v477 = vpack.c.b16 %v416, %v415
      %v478 = vpack.c.b16 %v418, %v417
      %v479 = vpack.c.b16 %v420, %v419
      %v480 = vpack.c.b16 %v422, %v421
      %v481 = vpack.c.b16 %v424, %v423
      %v482 = vpack.c.b16 %v426, %v425
      %v483 = vpack.c.b16 %v428, %v427
      %v484 = vpack.c.b16 %v430, %v429
      %v485 = vpack.c.b16 %v432, %v431
      %v486 = vpack.c.b16 %v434, %v433
      %v487 = vpack.c.b16 %v436, %v435
      %v488 = vpack.c.b16 %v438, %v437
      %v489 = vpack.c.b16 %v440, %v439
      %v490 = vpack.c.b16 %v442, %v441
      %v491 = vpack.c.b16 %v444, %v443
      %v492 = vpack.c.b16 %v446, %v445
      %v493 = vpack.c.b16 %v448, %v447
      %v494 = vpack.c.b16 %v450, %v449
      %v495 = vpack.c.b16 %v452, %v451
      %v496 = vpack.c.b16 %v454, %v453
      %v497 = vpack.c.b16 %v456, %v455
      %v498 = vpack.c.b16 %v458, %v457
      %v499 = vpack.c.b16 %v460, %v459
      %v500 = vpack.c.b16 %v462, %v461
      %v501 = vpack.c.b16 %v464, %v463
      %v502 = vpack.c.b16 %v466, %v465
      %v503 = vpack.c.b16 %v468, %v467
      %v504 = vpack.c.b16 %v470, %v469
      %v505 = vpack.c.b16 %v472, %v471
      %v506 = vpack.c.b16 %v474, %v473
      %539 = vmatprep.subr.bf16.mxu0 0
      %540 = vmatpush1.bf16.msra.mxu0 %v482
      %541 = vmatprep.subr.bf16.mxu0 0
      %542 = vmatpush1.bf16.msra.mxu0 %v481
      %543 = vmatprep.subr.bf16.mxu0 0
      %544 = vmatpush1.bf16.msra.mxu0 %v480
      %545 = vmatprep.subr.bf16.mxu0 0
      %546 = vmatpush1.bf16.msra.mxu0 %v479
      %547 = vmatprep.subr.bf16.mxu0 0
      %548 = vmatpush1.bf16.msra.mxu0 %v478
      %549 = vmatprep.subr.bf16.mxu0 0
      %550 = vmatpush1.bf16.msra.mxu0 %v477
      %551 = vmatprep.subr.bf16.mxu0 0
      %552 = vmatpush1.bf16.msra.mxu0 %v476
      %553 = vmatprep.subr.bf16.mxu0 0
      %554 = vmatpush1.bf16.msra.mxu0 %v475
      %555 = vmatprep.subr.bf16.mxu0 0
      %556 = vmatpush2.bf16.msra.mxu0 %v490
      %557 = vmatprep.subr.bf16.mxu0 0
      %558 = vmatpush2.bf16.msra.mxu0 %v489
      %559 = vmatprep.subr.bf16.mxu0 0
      %560 = vmatpush2.bf16.msra.mxu0 %v488
      %561 = vmatprep.subr.bf16.mxu0 0
      %562 = vmatpush2.bf16.msra.mxu0 %v487
      %563 = vmatprep.subr.bf16.mxu0 0
      %564 = vmatpush2.bf16.msra.mxu0 %v486
      %565 = vmatprep.subr.bf16.mxu0 0
      %566 = vmatpush2.bf16.msra.mxu0 %v485
      %567 = vmatprep.subr.bf16.mxu0 0
      %568 = vmatpush2.bf16.msra.mxu0 %v484
      %569 = vmatprep.subr.bf16.mxu0 0
      %570 = vmatpush2.bf16.msra.mxu0 %v483
      %571 = vmatprep.mubr.bf16.mxu0 %v273
      %572 = vmatmul.mubr.bf16.gmra.mxu0 %v272
      %v573 = vpop.f32.mrf.mxu0
      %v574 = vadd.f32 %v345, %v573
      %v575 = vpop.f32.mrf.mxu0
      %v576 = vpop.f32.mrf.mxu0
      %v577 = vpop.f32.mrf.mxu0
      %578 = vdwg.mxu0
      %579 = vmatprep.subr.bf16.mxu0 0
      %580 = vmatpush1.bf16.msra.mxu0 %v498
      %581 = vmatprep.subr.bf16.mxu0 0
      %582 = vmatpush1.bf16.msra.mxu0 %v497
      %583 = vmatprep.subr.bf16.mxu0 0
      %584 = vmatpush1.bf16.msra.mxu0 %v496
      %585 = vmatprep.subr.bf16.mxu0 0
      %586 = vmatpush1.bf16.msra.mxu0 %v495
      %587 = vmatprep.subr.bf16.mxu0 0
      %588 = vmatpush1.bf16.msra.mxu0 %v494
      %589 = vmatprep.subr.bf16.mxu0 0
      %590 = vmatpush1.bf16.msra.mxu0 %v493
      %591 = vmatprep.subr.bf16.mxu0 0
      %592 = vmatpush1.bf16.msra.mxu0 %v492
      %593 = vmatprep.subr.bf16.mxu0 0
      %594 = vmatpush1.bf16.msra.mxu0 %v491
      %595 = vmatprep.subr.bf16.mxu0 0
      %596 = vmatpush2.bf16.msra.mxu0 %v506
      %597 = vmatprep.subr.bf16.mxu0 0
      %598 = vmatpush2.bf16.msra.mxu0 %v505
      %599 = vmatprep.subr.bf16.mxu0 0
      %600 = vmatpush2.bf16.msra.mxu0 %v504
      %601 = vmatprep.subr.bf16.mxu0 0
      %602 = vmatpush2.bf16.msra.mxu0 %v503
      %603 = vmatprep.subr.bf16.mxu0 0
      %604 = vmatpush2.bf16.msra.mxu0 %v502
      %605 = vmatprep.subr.bf16.mxu0 0
      %606 = vmatpush2.bf16.msra.mxu0 %v501
      %607 = vmatprep.subr.bf16.mxu0 0
      %608 = vmatpush2.bf16.msra.mxu0 %v500
      %609 = vmatprep.subr.bf16.mxu0 0
      %610 = vmatpush2.bf16.msra.mxu0 %v499
      %611 = vmatprep.mubr.bf16.mxu0 %v275
      %612 = vmatmul.mubr.bf16.gmra.mxu0 %v274
      %v613 = vpop.f32.mrf.mxu0
      %v614 = vadd.f32 %v574, %v613
      %v615 = vpop.f32.mrf.mxu0
      %v616 = vpop.f32.mrf.mxu0
      %v617 = vpop.f32.mrf.mxu0
      %618 = vdwg.mxu0
      %v619 = vld [vmem:[%s262] sm:$0xff]
      %v620 = vadd.f32 %v614, %v619
      %621 = vadd.xlane.f32.xlu0 %v620
      %v622 = vpop.xlane.xlu0 %621
      %v623 = vrcp.pop 128.0
      %v624 = vmul.f32 %v622, %v623
      %v625 = vsub.f32 %v620, %v624
      %v626 = vmul.f32 %v625, %v625
      %627 = vadd.xlane.f32.xlu0 %v626
      %v628 = vpop.xlane.xlu0 %627
      %v629 = vmul.f32 %v628, %v623
      %v630 = vadd.f32 %v629, 1e-12
      %v631 = vrsqrt.pop %v630
      %v632 = vmul.f32 %v625, %v631
      %v633 = vld [vmem:[%s4] sm:$0x1]
      %v635 = vlaneseq
      %v636 = vshrl.u32 %v635, 7
      %v637 = vsub.s32 0, %v636
      %v638 = vrot.slane %v633, %v637
      %v640 = vmul.f32 %v632, %v638
      %v641 = vld [vmem:[%s5] sm:$0x1]
      %v643 = vlaneseq
      %v644 = vshrl.u32 %v643, 7
      %v645 = vsub.s32 0, %v644
      %v646 = vrot.slane %v641, %v645
      %v648 = vadd.f32 %v640, %v646
      %649 = vst [vmem:[%s266] sm:$0xff] %v648
      %p650 = scmp.lt.s32.totalorder %s17, 1
      %s651 = scalar_select %p650, %s17, 1
      %s652 = smul.addr %s651, 8
      %s653 = scalar_lea.vmem %s6, %s652
      // Predicated region
      $region45: #{forward.17} parent=43 // pred_check
        %p654 = pneg %p171
      $region46: #{forward.17} parent=43 // pred_check_branch
        %656 = sbr.rel (%p654) target = $region48
      $region47: #{forward.17} parent=43 // pred_region
        _
      $region48: #{forward.17} parent=43 // pred_fallthru
        _
    $region44: #{forward.17} parent=5 // pred_fallthru
      _
    %p657 = scmp.le.s32.totalorder 2, %s12
    // Predicated region
    $region49: #{forward.17} parent=5 // pred_check
      %p658 = pneg %p657
    $region50: #{forward.17} parent=5 // pred_check_branch
      %660 = sbr.rel (%p658) target = $region52
    $region51: #{forward.17} parent=5 // pred_region
      %s661 = ssub.s32 %s12, 2
      // Predicated region
      $region53: #{forward.17} parent=51 // pred_check
        %p662 = pneg %p177
      $region54: #{forward.17} parent=51 // pred_check_branch
        %664 = sbr.rel (%p662) target = $region56
      $region55: #{forward.17} parent=51 // pred_region
        %p665 = scmp.lt.s32.totalorder %s18, 1
        %s666 = scalar_select %p665, %s18, 1
        %s667 = smul.addr %s666, 8
        %s668 = scalar_lea.vmem %s6, %s667
      $region56: #{forward.17} parent=51 // pred_fallthru
        _
    $region52: #{forward.17} parent=5 // pred_fallthru
      _
  $region6: #{forward.17} parent=0 // loop_footer
    %s16 = sadd.s32 1, %s12
  $region7: #{forward.17} parent=0 // loop_footer_branch
    %11 = sbr.rel target = $region3
  $region8: #{forward.17} parent=0 // loop_exit
    _

</llo_original>
